<compile_context>
chip_gen: v5e
topology: v5e:2x2
jax: 0.10.0
libtpu: 0.0.40
codegen_flags: <defaults>
</compile_context>

<pallas_src>
import functools

import numpy as np

import jax
import jax.numpy as jnp
from jax.experimental import pallas as pl
from jax.experimental.pallas import tpu as pltpu


def _basic_block_kernel(x_ref, w1_ref, b1_ref, mask_ref, w2_ref, b2_ref, o_ref,
                        *, Wp, L, Lext, A1, ID_OFF):
    """One image (one grid step) of the BasicBlock.

    x_ref    : (1, Lx, C)      zero-padded, flattened image with zero row caps
    w1_ref   : (3, 3*C, Cm)    conv1 rows; row dy stacks dx = -1, 0, +1 taps on K
    b1_ref   : (1, Cm)         folded BN1 bias (f32)
    mask_ref : (Lext, 1)       1.0 on the valid interior of the padded grid
    w2_ref   : (3, 3*Cm, Cm)   conv2 rows, same layout (BN2 scale folded in)
    b2_ref   : (1, Cm)         folded BN2 bias (f32)
    o_ref    : (1, L, Cm)      output over the padded grid (compute dtype);
                               the wrapper slices out the interior
    """
    Cm = w1_ref.shape[-1]
    cdt = w1_ref.dtype
    B1 = A1 + Lext + 2 * Wp          # conv1 base-row read range is [A1, B1)
    A2 = 8                            # conv2 base-row read range starts here
    R2 = L + 2 * Wp

    # ---- conv1 (3x3, stride 1, pad 1); BN1 scale pre-folded into the weights.
    # The three column shifts are absorbed once into a channel-concatenated LHS
    # (K = 3*C); every per-dy slice below then starts at a multiple of 8 rows.
    xcat = jnp.concatenate(
        [x_ref[0, A1 - 1:B1 - 1, :],      # column -1
         x_ref[0, A1:B1, :],              # column  0
         x_ref[0, A1 + 1:B1 + 1, :]],     # column +1
        axis=-1)
    acc1 = jnp.zeros((Lext, Cm), jnp.float32)
    for dy in range(3):                   # chained acc += dot (MRB-friendly on v7x)
        acc1 = acc1 + jnp.dot(xcat[dy * Wp:dy * Wp + Lext, :], w1_ref[dy],
                              preferred_element_type=jnp.float32)

    # ---- BN1 bias + ReLU; zero everything outside the valid interior ring ----
    # (the masked result doubles as conv2's zero-padded input: no scratch pass)
    mid = (jnp.maximum(acc1 + b1_ref[...], 0.0) * mask_ref[...]).astype(cdt)

    # ---- conv2 (3x3, stride 1, pad 1); BN2 scale pre-folded into the weights.
    midcat = jnp.concatenate(
        [mid[A2 - 1:A2 - 1 + R2, :],
         mid[A2:A2 + R2, :],
         mid[A2 + 1:A2 + 1 + R2, :]],
        axis=-1)
    acc2 = jnp.zeros((L, Cm), jnp.float32)
    for dy in range(3):
        acc2 = acc2 + jnp.dot(midcat[dy * Wp:dy * Wp + L, :], w2_ref[dy],
                              preferred_element_type=jnp.float32)

    # ---- BN2 bias + residual add + ReLU; store in compute dtype --------------
    identity = x_ref[0, ID_OFF:ID_OFF + L, :].astype(jnp.float32)
    o_ref[0] = jnp.maximum(acc2 + b2_ref[...] + identity, 0.0).astype(o_ref.dtype)


def _vmem_limit_bytes():
    """<= 3/4 of physical VMEM, capped at 64 MiB (v5e/v6e: 64 MiB, v7x: 48 MiB)."""
    cap = 128 * 1024 * 1024
    try:
        cap = int(pltpu.get_tpu_info().vmem_capacity_bytes)
    except Exception:
        pass
    return min(64 * 1024 * 1024, (cap * 3) // 4)


def basic_block_pallas(x_nchw, w1, g1, be1, m1, v1, w2, g2, be2, m2, v2,
                       eps=1e-5, compute_dtype=jnp.bfloat16):
    """x_nchw: (N, C, H, W) float32. Conv weights w*: (Cout, Cin, 3, 3) (PyTorch)."""
    N, C, H, W = x_nchw.shape
    Cmid = w1.shape[0]
    assert Cmid == C, "BasicBlock with downsample=None requires planes == inplanes"

    # --- flat padded geometry (everything a multiple of 8 sublanes) -----------
    Hp = H + 2                        # padded-grid rows (1 conv-pad row each side)
    Wp = -(-(W + 2) // 8) * 8         # padded-grid cols, rounded to a sublane mult
    L = Hp * Wp                       # flattened padded grid
    PRE = Wp + 8                      # how far before padded pos 0 conv1 is evaluated
    Lext = L + 2 * Wp + 16            # conv1 output range (== conv2's padded input)
    ID_OFF = 4 * Wp                   # flat offset of padded-grid pos 0 (4 cap rows)
    A1 = 2 * Wp - 8                   # conv1 base-row read start (aligned)
    Lx = L + 8 * Wp                   # input range incl. 4 zero cap rows each side

    # --- layout glue (NCHW -> zero-capped, padded, flattened NHWC) ------------
    x_nhwc = jnp.transpose(x_nchw, (0, 2, 3, 1))
    xext = jnp.pad(x_nhwc, ((0, 0), (5, 5), (1, Wp - W - 1), (0, 0)))
    xext = xext.reshape(N, Lx, C).astype(compute_dtype)

    # --- fold BN (inference) scale into the conv weights; keep bias in f32 ----
    inv1 = g1 / jnp.sqrt(v1 + eps)
    inv2 = g2 / jnp.sqrt(v2 + eps)
    # torch (Cout, Cin, kh, kw) -> (kh, kw*Cin, Cout): row dy stacks dx taps on K
    w1_k = (jnp.transpose(w1, (2, 3, 1, 0)) * inv1).reshape(3, 3 * C, Cmid)
    w2_k = (jnp.transpose(w2, (2, 3, 1, 0)) * inv2).reshape(3, 3 * Cmid, Cmid)
    w1_k = w1_k.astype(compute_dtype)
    w2_k = w2_k.astype(compute_dtype)
    b1 = (be1 - m1 * inv1).reshape(1, Cmid).astype(jnp.float32)
    b2 = (be2 - m2 * inv2).reshape(1, Cmid).astype(jnp.float32)

    # 0/1 mask of the valid interior of the extended padded flat grid,
    # precomputed on host so the kernel needs no integer div/mod.
    p = np.arange(Lext) - PRE
    r = p // Wp
    c = p - r * Wp
    interior = (r >= 1) & (r <= H) & (c >= 1) & (c <= W)
    mask = jnp.asarray(interior.astype(np.float32).reshape(Lext, 1))

    kernel = functools.partial(_basic_block_kernel, Wp=Wp, L=L, Lext=Lext,
                               A1=A1, ID_OFF=ID_OFF)

    itemsize = np.dtype(compute_dtype).itemsize
    cost = pl.CostEstimate(
        flops=2 * 9 * C * Cmid * (Lext + L) * N,
        transcendentals=0,
        bytes_accessed=int((N * (Lx * C + L * Cmid)
                            + 9 * C * Cmid + 9 * Cmid * Cmid) * itemsize
                           + (Lext + 2 * Cmid) * 4))

    out_flat = pl.pallas_call(
        kernel,
        out_shape=jax.ShapeDtypeStruct((N, L, Cmid), compute_dtype),
        grid_spec=pltpu.PrefetchScalarGridSpec(
            num_scalar_prefetch=0,
            grid=(N,),                                   # one image per grid step
            in_specs=[
                pl.BlockSpec((1, Lx, C), lambda n: (n, 0, 0)),
                pl.BlockSpec((3, 3 * C, Cmid), lambda n: (0, 0, 0)),
                pl.BlockSpec((1, Cmid), lambda n: (0, 0)),
                pl.BlockSpec((Lext, 1), lambda n: (0, 0)),
                pl.BlockSpec((3, 3 * Cmid, Cmid), lambda n: (0, 0, 0)),
                pl.BlockSpec((1, Cmid), lambda n: (0, 0)),
            ],
            out_specs=pl.BlockSpec((1, L, Cmid), lambda n: (n, 0, 0)),
        ),
        compiler_params=pltpu.CompilerParams(
            dimension_semantics=("parallel",),           # shard batch over v7x's 2 TCs
            vmem_limit_bytes=_vmem_limit_bytes()),
        cost_estimate=cost,
    )(xext, w1_k, b1, mask, w2_k, b2)

    # padded flat grid -> (N, H, W, C) interior -> NCHW (PyTorch convention)
    out = out_flat.reshape(N, Hp, Wp, Cmid)[:, 1:1 + H, 1:1 + W, :]
    return jnp.transpose(out, (0, 3, 1, 2))


def _reference(x, w1, g1, be1, m1, v1, w2, g2, be2, m2, v2, eps=1e-5):
    """Pure-JAX reference (lax conv, NCHW) for correctness checking."""
    dn = jax.lax.conv_dimension_numbers(x.shape, w1.shape, ("NCHW", "OIHW", "NCHW"))
    conv = functools.partial(jax.lax.conv_general_dilated,
                             window_strides=(1, 1), padding=((1, 1), (1, 1)),
                             dimension_numbers=dn)
    bn = lambda y, g, b, m, v: (y - m[None, :, None, None]) / jnp.sqrt(
        v[None, :, None, None] + eps) * g[None, :, None, None] + b[None, :, None, None]
    out = jnp.maximum(bn(conv(x, w1), g1, be1, m1, v1), 0.0)
    out = bn(conv(out, w2), g2, be2, m2, v2)
    return jnp.maximum(out + x, 0.0)


if __name__ == "__main__":
    key = jax.random.PRNGKey(0)
    ks = jax.random.split(key, 11)

    N, C, H, W = 2, 8, 16, 16          # inplanes = planes = 8, stride = 1
    x = jax.random.normal(ks[0], (N, C, H, W), jnp.float32)

    w1 = jax.random.normal(ks[1], (C, C, 3, 3), jnp.float32) * 0.1
    w2 = jax.random.normal(ks[2], (C, C, 3, 3), jnp.float32) * 0.1

    g1 = 1.0 + 0.1 * jax.random.normal(ks[3], (C,), jnp.float32)
    be1 = 0.1 * jax.random.normal(ks[4], (C,), jnp.float32)
    m1 = 0.1 * jax.random.normal(ks[5], (C,), jnp.float32)
    v1 = jnp.abs(jax.random.normal(ks[6], (C,), jnp.float32)) + 0.5

    g2 = 1.0 + 0.1 * jax.random.normal(ks[7], (C,), jnp.float32)
    be2 = 0.1 * jax.random.normal(ks[8], (C,), jnp.float32)
    m2 = 0.1 * jax.random.normal(ks[9], (C,), jnp.float32)
    v2 = jnp.abs(jax.random.normal(ks[10], (C,), jnp.float32)) + 0.5

    ref = _reference(x, w1, g1, be1, m1, v1, w2, g2, be2, m2, v2)

    # Exact-math check: f32 operands and f32 output in the same kernel.
    out_f32 = jax.block_until_ready(
        basic_block_pallas(x, w1, g1, be1, m1, v1, w2, g2, be2, m2, v2,
                           compute_dtype=jnp.float32))
    assert out_f32.shape == (N, C, H, W)
    assert jnp.max(jnp.abs(out_f32 - ref)) < 2e-3, "f32 kernel mismatch vs reference"

    # Fast path: bf16 operands/activations/output, f32 MXU accumulation.
    # Tolerance is loose because input, weights, the intermediate activation and
    # the output (incl. the residual path) all carry bf16 quantization.
    out_bf16 = jax.block_until_ready(
        basic_block_pallas(x, w1, g1, be1, m1, v1, w2, g2, be2, m2, v2))
    assert out_bf16.shape == (N, C, H, W)
    assert jnp.max(jnp.abs(out_bf16.astype(jnp.float32) - ref)) < 2e-1, \
        "bf16 kernel mismatch vs reference"

    print("KERNEL_OK")
</pallas_src>

<mosaic_0001>
module attributes {stable_mosaic.version = 11 : i64} {
  func.func @_basic_block_kernel(%arg0: i32, %arg1: memref<1x624x8xf32, #tpu.memory_space<vmem>>, %arg2: memref<3x24x8xf32, #tpu.memory_space<vmem>>, %arg3: memref<1x8xf32, #tpu.memory_space<vmem>>, %arg4: memref<496x1xf32, #tpu.memory_space<vmem>>, %arg5: memref<3x24x8xf32, #tpu.memory_space<vmem>>, %arg6: memref<1x8xf32, #tpu.memory_space<vmem>>, %arg7: memref<1x432x8xf32, #tpu.memory_space<vmem>>) attributes {dimension_semantics = [#tpu.dimension_semantics<parallel>], iteration_bounds = array<i64: 2>, scalar_prefetch = 0 : i64, scratch_operands = 0 : i64, tpu.core_type = #tpu.core_type<tc>, window_params = [{transform_indices = @transform_0, window_bounds = array<i64: 1, 624, 8>}, {pipeline_mode = #tpu.pipeline_mode<synchronous>, transform_indices = @transform_1, window_bounds = array<i64: 3, 24, 8>}, {pipeline_mode = #tpu.pipeline_mode<synchronous>, transform_indices = @transform_2, window_bounds = array<i64: 1, 8>}, {pipeline_mode = #tpu.pipeline_mode<synchronous>, transform_indices = @transform_3, window_bounds = array<i64: 496, 1>}, {pipeline_mode = #tpu.pipeline_mode<synchronous>, transform_indices = @transform_4, window_bounds = array<i64: 3, 24, 8>}, {pipeline_mode = #tpu.pipeline_mode<synchronous>, transform_indices = @transform_5, window_bounds = array<i64: 1, 8>}, {transform_indices = @transform_6, window_bounds = array<i64: 1, 432, 8>}]} {
    %c0 = arith.constant 0 : index
    %c39 = arith.constant 39 : index
    %c0_0 = arith.constant 0 : index
    %0 = vector.load %arg1[%c0, %c39, %c0_0] : memref<1x624x8xf32, #tpu.memory_space<vmem>>, vector<1x544x8xf32>
    %1 = vector.shape_cast %0 : vector<1x544x8xf32> to vector<544x8xf32>
    %c0_1 = arith.constant 0 : index
    %c40 = arith.constant 40 : index
    %c0_2 = arith.constant 0 : index
    %2 = vector.load %arg1[%c0_1, %c40, %c0_2] : memref<1x624x8xf32, #tpu.memory_space<vmem>>, vector<1x544x8xf32>
    %3 = vector.shape_cast %2 : vector<1x544x8xf32> to vector<544x8xf32>
    %c0_3 = arith.constant 0 : index
    %c41 = arith.constant 41 : index
    %c0_4 = arith.constant 0 : index
    %4 = vector.load %arg1[%c0_3, %c41, %c0_4] : memref<1x624x8xf32, #tpu.memory_space<vmem>>, vector<1x544x8xf32>
    %5 = vector.shape_cast %4 : vector<1x544x8xf32> to vector<544x8xf32>
    %6 = tpu.concatenate %1, %3, %5 in 1 : vector<544x8xf32>, vector<544x8xf32>, vector<544x8xf32> -> vector<544x24xf32>
    %cst = arith.constant 0.000000e+00 : f32
    %7 = vector.broadcast %cst : f32 to vector<496x8xf32>
    %8 = vector.extract_strided_slice %6 {offsets = [0, 0], sizes = [496, 24], strides = [1, 1]} : vector<544x24xf32> to vector<496x24xf32>
    %c0_5 = arith.constant 0 : index
    %c0_6 = arith.constant 0 : index
    %c0_7 = arith.constant 0 : index
    %9 = vector.load %arg2[%c0_5, %c0_6, %c0_7] : memref<3x24x8xf32, #tpu.memory_space<vmem>>, vector<1x24x8xf32>
    %10 = vector.shape_cast %9 : vector<1x24x8xf32> to vector<24x8xf32>
    %cst_8 = arith.constant dense<0.000000e+00> : vector<496x8xf32>
    %11 = tpu.matmul %8, %10, %cst_8 {dimension_numbers = #tpu.dot_dimension_numbers<[1], [0], [0], [1], [0, 0, 1, 1], [], []>} : vector<496x24xf32>, vector<24x8xf32>, vector<496x8xf32> -> vector<496x8xf32>
    %12 = arith.addf %7, %11 : vector<496x8xf32>
    %13 = vector.extract_strided_slice %6 {offsets = [24, 0], sizes = [496, 24], strides = [1, 1]} : vector<544x24xf32> to vector<496x24xf32>
    %c1 = arith.constant 1 : index
    %c0_9 = arith.constant 0 : index
    %c0_10 = arith.constant 0 : index
    %14 = vector.load %arg2[%c1, %c0_9, %c0_10] : memref<3x24x8xf32, #tpu.memory_space<vmem>>, vector<1x24x8xf32>
    %15 = vector.shape_cast %14 : vector<1x24x8xf32> to vector<24x8xf32>
    %cst_11 = arith.constant dense<0.000000e+00> : vector<496x8xf32>
    %16 = tpu.matmul %13, %15, %cst_11 {dimension_numbers = #tpu.dot_dimension_numbers<[1], [0], [0], [1], [0, 0, 1, 1], [], []>} : vector<496x24xf32>, vector<24x8xf32>, vector<496x8xf32> -> vector<496x8xf32>
    %17 = arith.addf %12, %16 : vector<496x8xf32>
    %18 = vector.extract_strided_slice %6 {offsets = [48, 0], sizes = [496, 24], strides = [1, 1]} : vector<544x24xf32> to vector<496x24xf32>
    %c2 = arith.constant 2 : index
    %c0_12 = arith.constant 0 : index
    %c0_13 = arith.constant 0 : index
    %19 = vector.load %arg2[%c2, %c0_12, %c0_13] : memref<3x24x8xf32, #tpu.memory_space<vmem>>, vector<1x24x8xf32>
    %20 = vector.shape_cast %19 : vector<1x24x8xf32> to vector<24x8xf32>
    %cst_14 = arith.constant dense<0.000000e+00> : vector<496x8xf32>
    %21 = tpu.matmul %18, %20, %cst_14 {dimension_numbers = #tpu.dot_dimension_numbers<[1], [0], [0], [1], [0, 0, 1, 1], [], []>} : vector<496x24xf32>, vector<24x8xf32>, vector<496x8xf32> -> vector<496x8xf32>
    %22 = arith.addf %17, %21 : vector<496x8xf32>
    %c0_15 = arith.constant 0 : index
    %c0_16 = arith.constant 0 : index
    %23 = vector.load %arg3[%c0_15, %c0_16] : memref<1x8xf32, #tpu.memory_space<vmem>>, vector<1x8xf32>
    %24 = vector.broadcast %23 : vector<1x8xf32> to vector<496x8xf32>
    %25 = arith.addf %22, %24 : vector<496x8xf32>
    %cst_17 = arith.constant 0.000000e+00 : f32
    %26 = vector.broadcast %cst_17 : f32 to vector<496x8xf32>
    %27 = arith.maximumf %25, %26 : vector<496x8xf32>
    %c0_18 = arith.constant 0 : index
    %c0_19 = arith.constant 0 : index
    %28 = vector.load %arg4[%c0_18, %c0_19] : memref<496x1xf32, #tpu.memory_space<vmem>>, vector<496x1xf32>
    %29 = vector.broadcast %28 : vector<496x1xf32> to vector<496x8xf32>
    %30 = arith.mulf %27, %29 : vector<496x8xf32>
    %31 = vector.extract_strided_slice %30 {offsets = [7, 0], sizes = [480, 8], strides = [1, 1]} : vector<496x8xf32> to vector<480x8xf32>
    %32 = vector.extract_strided_slice %30 {offsets = [8, 0], sizes = [480, 8], strides = [1, 1]} : vector<496x8xf32> to vector<480x8xf32>
    %33 = vector.extract_strided_slice %30 {offsets = [9, 0], sizes = [480, 8], strides = [1, 1]} : vector<496x8xf32> to vector<480x8xf32>
    %34 = tpu.concatenate %31, %32, %33 in 1 : vector<480x8xf32>, vector<480x8xf32>, vector<480x8xf32> -> vector<480x24xf32>
    %cst_20 = arith.constant 0.000000e+00 : f32
    %35 = vector.broadcast %cst_20 : f32 to vector<432x8xf32>
    %36 = vector.extract_strided_slice %34 {offsets = [0, 0], sizes = [432, 24], strides = [1, 1]} : vector<480x24xf32> to vector<432x24xf32>
    %c0_21 = arith.constant 0 : index
    %c0_22 = arith.constant 0 : index
    %c0_23 = arith.constant 0 : index
    %37 = vector.load %arg5[%c0_21, %c0_22, %c0_23] : memref<3x24x8xf32, #tpu.memory_space<vmem>>, vector<1x24x8xf32>
    %38 = vector.shape_cast %37 : vector<1x24x8xf32> to vector<24x8xf32>
    %cst_24 = arith.constant dense<0.000000e+00> : vector<432x8xf32>
    %39 = tpu.matmul %36, %38, %cst_24 {dimension_numbers = #tpu.dot_dimension_numbers<[1], [0], [0], [1], [0, 0, 1, 1], [], []>} : vector<432x24xf32>, vector<24x8xf32>, vector<432x8xf32> -> vector<432x8xf32>
    %40 = arith.addf %35, %39 : vector<432x8xf32>
    %41 = vector.extract_strided_slice %34 {offsets = [24, 0], sizes = [432, 24], strides = [1, 1]} : vector<480x24xf32> to vector<432x24xf32>
    %c1_25 = arith.constant 1 : index
    %c0_26 = arith.constant 0 : index
    %c0_27 = arith.constant 0 : index
    %42 = vector.load %arg5[%c1_25, %c0_26, %c0_27] : memref<3x24x8xf32, #tpu.memory_space<vmem>>, vector<1x24x8xf32>
    %43 = vector.shape_cast %42 : vector<1x24x8xf32> to vector<24x8xf32>
    %cst_28 = arith.constant dense<0.000000e+00> : vector<432x8xf32>
    %44 = tpu.matmul %41, %43, %cst_28 {dimension_numbers = #tpu.dot_dimension_numbers<[1], [0], [0], [1], [0, 0, 1, 1], [], []>} : vector<432x24xf32>, vector<24x8xf32>, vector<432x8xf32> -> vector<432x8xf32>
    %45 = arith.addf %40, %44 : vector<432x8xf32>
    %46 = vector.extract_strided_slice %34 {offsets = [48, 0], sizes = [432, 24], strides = [1, 1]} : vector<480x24xf32> to vector<432x24xf32>
    %c2_29 = arith.constant 2 : index
    %c0_30 = arith.constant 0 : index
    %c0_31 = arith.constant 0 : index
    %47 = vector.load %arg5[%c2_29, %c0_30, %c0_31] : memref<3x24x8xf32, #tpu.memory_space<vmem>>, vector<1x24x8xf32>
    %48 = vector.shape_cast %47 : vector<1x24x8xf32> to vector<24x8xf32>
    %cst_32 = arith.constant dense<0.000000e+00> : vector<432x8xf32>
    %49 = tpu.matmul %46, %48, %cst_32 {dimension_numbers = #tpu.dot_dimension_numbers<[1], [0], [0], [1], [0, 0, 1, 1], [], []>} : vector<432x24xf32>, vector<24x8xf32>, vector<432x8xf32> -> vector<432x8xf32>
    %50 = arith.addf %45, %49 : vector<432x8xf32>
    %c0_33 = arith.constant 0 : index
    %c96 = arith.constant 96 : index
    %c0_34 = arith.constant 0 : index
    %51 = vector.load %arg1[%c0_33, %c96, %c0_34] : memref<1x624x8xf32, #tpu.memory_space<vmem>>, vector<1x432x8xf32>
    %52 = vector.shape_cast %51 : vector<1x432x8xf32> to vector<432x8xf32>
    %c0_35 = arith.constant 0 : index
    %c0_36 = arith.constant 0 : index
    %53 = vector.load %arg6[%c0_35, %c0_36] : memref<1x8xf32, #tpu.memory_space<vmem>>, vector<1x8xf32>
    %54 = vector.broadcast %53 : vector<1x8xf32> to vector<432x8xf32>
    %55 = arith.addf %50, %54 : vector<432x8xf32>
    %56 = arith.addf %55, %52 : vector<432x8xf32>
    %cst_37 = arith.constant 0.000000e+00 : f32
    %57 = vector.broadcast %cst_37 : f32 to vector<432x8xf32>
    %58 = arith.maximumf %56, %57 : vector<432x8xf32>
    %c0_38 = arith.constant 0 : index
    %c0_39 = arith.constant 0 : index
    %c0_40 = arith.constant 0 : index
    %59 = vector.load %arg7[%c0_38, %c0_39, %c0_40] : memref<1x432x8xf32, #tpu.memory_space<vmem>>, vector<1x432x8xf32>
    %60 = vector.shape_cast %59 : vector<1x432x8xf32> to vector<432x8xf32>
    %61 = vector.shape_cast %58 : vector<432x8xf32> to vector<1x432x8xf32>
    tpu.vector_store %arg7[%c0_38, %c0_39, %c0_40], %61 {strides = array<i32>} : memref<1x432x8xf32, #tpu.memory_space<vmem>>, vector<1x432x8xf32>,
    return
  }
  func.func @transform_0(%arg0: i32) -> (i32, i32, i32) {
    %c0_i32 = arith.constant 0 : i32
    %c0_i32_0 = arith.constant 0 : i32
    %c0_i32_1 = arith.constant 0 : i32
    return %arg0, %c0_i32, %c0_i32_0 : i32, i32, i32
  }
  func.func @transform_1(%arg0: i32) -> (i32, i32, i32) {
    %c0_i32 = arith.constant 0 : i32
    %c0_i32_0 = arith.constant 0 : i32
    %c0_i32_1 = arith.constant 0 : i32
    %c0_i32_2 = arith.constant 0 : i32
    return %c0_i32, %c0_i32_0, %c0_i32_1 : i32, i32, i32
  }
  func.func @transform_2(%arg0: i32) -> (i32, i32) {
    %c0_i32 = arith.constant 0 : i32
    %c0_i32_0 = arith.constant 0 : i32
    %c0_i32_1 = arith.constant 0 : i32
    return %c0_i32, %c0_i32_0 : i32, i32
  }
  func.func @transform_3(%arg0: i32) -> (i32, i32) {
    %c0_i32 = arith.constant 0 : i32
    %c0_i32_0 = arith.constant 0 : i32
    %c0_i32_1 = arith.constant 0 : i32
    return %c0_i32, %c0_i32_0 : i32, i32
  }
  func.func @transform_4(%arg0: i32) -> (i32, i32, i32) {
    %c0_i32 = arith.constant 0 : i32
    %c0_i32_0 = arith.constant 0 : i32
    %c0_i32_1 = arith.constant 0 : i32
    %c0_i32_2 = arith.constant 0 : i32
    return %c0_i32, %c0_i32_0, %c0_i32_1 : i32, i32, i32
  }
  func.func @transform_5(%arg0: i32) -> (i32, i32) {
    %c0_i32 = arith.constant 0 : i32
    %c0_i32_0 = arith.constant 0 : i32
    %c0_i32_1 = arith.constant 0 : i32
    return %c0_i32, %c0_i32_0 : i32, i32
  }
  func.func @transform_6(%arg0: i32) -> (i32, i32, i32) {
    %c0_i32 = arith.constant 0 : i32
    %c0_i32_0 = arith.constant 0 : i32
    %c0_i32_1 = arith.constant 0 : i32
    return %arg0, %c0_i32, %c0_i32_0 : i32, i32, i32
  }
}

</mosaic_0001>

<llo_original>
// kernel: tpu_custom_call.1
$region0: #{tpu_custom_call.1}
  #allocation0 [shape = 'u32[]', space=smem, size = 0x4, offset = 0x4, fixed_abs, tag = 'smem constant byte address 0x4 - core index']
  #allocation1 [shape = 'u32[72,128]{1,0:T(1,128)}', space=vmem, size = 0x9000, scoped, tag = 'internal scratch']
  %s0 = inlined_call_operand.vmem [shape: f32[2,624,8], index: 0, kind: input, shape index: {}]
  %s1 = inlined_call_operand.vmem [shape: f32[3,24,8], index: 1, kind: input, shape index: {}]
  %s2 = inlined_call_operand.vmem [shape: f32[1,8], index: 2, kind: input, shape index: {}]
  %s3 = inlined_call_operand.vmem [shape: f32[496,1], index: 3, kind: input, shape index: {}]
  %s4 = inlined_call_operand.vmem [shape: f32[3,24,8], index: 4, kind: input, shape index: {}]
  %s5 = inlined_call_operand.vmem [shape: f32[1,8], index: 5, kind: input, shape index: {}]
  %s6 = inlined_call_operand.vmem [shape: f32[2,432,8], index: 6, kind: output, shape index: {}]
  %s7 = sld [smem:[#allocation0]]
  $region57: #{tpu_custom_call.1} parent=0
    _
  %s9 = ssub.s32 1, %s7
  %s10 = scalar_select 0, %s9, %s7
  loop: start=0, step=1, limit=4
  $region2: #{tpu_custom_call.1} parent=0 // loop_pre_header
    _
  $region3: #{tpu_custom_call.1} parent=0 // loop_header
    %s12 = sphi 0, %s16
    %p13 = scmp.ge.s32.totalorder %s12, 4
    %s22 = sphi 0, %s24
    %s25 = sphi 0, %s22
    %s26 = sphi 0, %s25
    %s42 = sphi 0, %s26
    %s46 = sphi 0, %s46
    %s48 = sphi 0, %s46
    %s49 = sphi 0, %s48
    %s63 = sphi 0, %s49
    %s67 = sphi 0, %s67
    %s69 = sphi 0, %s67
    %s70 = sphi 0, %s69
    %s84 = sphi 0, %s70
    %s88 = sphi 0, %s88
    %s90 = sphi 0, %s88
    %s91 = sphi 0, %s90
    %s105 = sphi 0, %s91
    %s109 = sphi 0, %s109
    %s111 = sphi 0, %s109
    %s112 = sphi 0, %s111
    %s126 = sphi 0, %s112
    %s130 = sphi 0, %s130
    %s132 = sphi 0, %s130
    %s133 = sphi 0, %s132
    %s147 = sphi 0, %s133
    %s153 = sphi 0, %s155
    %s156 = sphi 0, %s153
    %s157 = sphi 0, %s156
    %s173 = sphi 0, %s157
  $region4: #{tpu_custom_call.1} parent=0 // loop_header_branch
    %15 = sbr.rel (%p13) target = $region8
  $region5: #{tpu_custom_call.1} parent=0 // loop_body
    %s17 = ssub.s32 %s12, 1
    %s18 = ssub.s32 %s12, 2
    %s19 = sadd.s32 %s12, 1
    %s20 = ssub.s32 %s12, %s19
    %p21 = scmp.eq.s32.totalorder %s20, 0
    %s23 = sadd.s32 %s22, 1
    %s24 = scalar_select %p21, %s22, %s23
    %p27 = pneg %p21
    %p28 = scmp.eq.s32.totalorder %s12, 1
    %p29 = por %p27, %p28
    %p30 = scmp.ne.s32.totalorder %s22, %s25
    %p31 = scmp.eq.s32.totalorder %s12, 0
    %p32 = por %p30, %p31
    %p33 = scmp.ne.s32.totalorder %s22, %s25
    %p34 = scmp.eq.s32.totalorder %s17, 1
    %p35 = por %p33, %p34
    %p36 = scmp.ne.s32.totalorder %s25, %s26
    %p37 = scmp.eq.s32.totalorder %s17, 0
    %p38 = por %p36, %p37
    %p39 = scmp.ne.s32.totalorder %s25, %s26
    %p40 = scmp.eq.s32.totalorder %s18, 1
    %p41 = por %p39, %p40
    %p43 = scmp.ne.s32.totalorder %s26, %s42
    %p44 = scmp.eq.s32.totalorder %s18, 0
    %p45 = por %p43, %p44
    %s47 = sadd.s32 %s46, 1
    %p50 = scmp.eq.s32.totalorder %s12, 1
    %p51 = scmp.ne.s32.totalorder %s46, %s48
    %p52 = scmp.eq.s32.totalorder %s12, 0
    %p53 = por %p51, %p52
    %p54 = scmp.ne.s32.totalorder %s46, %s48
    %p55 = scmp.eq.s32.totalorder %s17, 1
    %p56 = por %p54, %p55
    %p57 = scmp.ne.s32.totalorder %s48, %s49
    %p58 = scmp.eq.s32.totalorder %s17, 0
    %p59 = por %p57, %p58
    %p60 = scmp.ne.s32.totalorder %s48, %s49
    %p61 = scmp.eq.s32.totalorder %s18, 1
    %p62 = por %p60, %p61
    %p64 = scmp.ne.s32.totalorder %s49, %s63
    %p65 = scmp.eq.s32.totalorder %s18, 0
    %p66 = por %p64, %p65
    %s68 = sadd.s32 %s67, 1
    %p71 = scmp.eq.s32.totalorder %s12, 1
    %p72 = scmp.ne.s32.totalorder %s67, %s69
    %p73 = scmp.eq.s32.totalorder %s12, 0
    %p74 = por %p72, %p73
    %p75 = scmp.ne.s32.totalorder %s67, %s69
    %p76 = scmp.eq.s32.totalorder %s17, 1
    %p77 = por %p75, %p76
    %p78 = scmp.ne.s32.totalorder %s69, %s70
    %p79 = scmp.eq.s32.totalorder %s17, 0
    %p80 = por %p78, %p79
    %p81 = scmp.ne.s32.totalorder %s69, %s70
    %p82 = scmp.eq.s32.totalorder %s18, 1
    %p83 = por %p81, %p82
    %p85 = scmp.ne.s32.totalorder %s70, %s84
    %p86 = scmp.eq.s32.totalorder %s18, 0
    %p87 = por %p85, %p86
    %s89 = sadd.s32 %s88, 1
    %p92 = scmp.eq.s32.totalorder %s12, 1
    %p93 = scmp.ne.s32.totalorder %s88, %s90
    %p94 = scmp.eq.s32.totalorder %s12, 0
    %p95 = por %p93, %p94
    %p96 = scmp.ne.s32.totalorder %s88, %s90
    %p97 = scmp.eq.s32.totalorder %s17, 1
    %p98 = por %p96, %p97
    %p99 = scmp.ne.s32.totalorder %s90, %s91
    %p100 = scmp.eq.s32.totalorder %s17, 0
    %p101 = por %p99, %p100
    %p102 = scmp.ne.s32.totalorder %s90, %s91
    %p103 = scmp.eq.s32.totalorder %s18, 1
    %p104 = por %p102, %p103
    %p106 = scmp.ne.s32.totalorder %s91, %s105
    %p107 = scmp.eq.s32.totalorder %s18, 0
    %p108 = por %p106, %p107
    %s110 = sadd.s32 %s109, 1
    %p113 = scmp.eq.s32.totalorder %s12, 1
    %p114 = scmp.ne.s32.totalorder %s109, %s111
    %p115 = scmp.eq.s32.totalorder %s12, 0
    %p116 = por %p114, %p115
    %p117 = scmp.ne.s32.totalorder %s109, %s111
    %p118 = scmp.eq.s32.totalorder %s17, 1
    %p119 = por %p117, %p118
    %p120 = scmp.ne.s32.totalorder %s111, %s112
    %p121 = scmp.eq.s32.totalorder %s17, 0
    %p122 = por %p120, %p121
    %p123 = scmp.ne.s32.totalorder %s111, %s112
    %p124 = scmp.eq.s32.totalorder %s18, 1
    %p125 = por %p123, %p124
    %p127 = scmp.ne.s32.totalorder %s112, %s126
    %p128 = scmp.eq.s32.totalorder %s18, 0
    %p129 = por %p127, %p128
    %s131 = sadd.s32 %s130, 1
    %p134 = scmp.eq.s32.totalorder %s12, 1
    %p135 = scmp.ne.s32.totalorder %s130, %s132
    %p136 = scmp.eq.s32.totalorder %s12, 0
    %p137 = por %p135, %p136
    %p138 = scmp.ne.s32.totalorder %s130, %s132
    %p139 = scmp.eq.s32.totalorder %s17, 1
    %p140 = por %p138, %p139
    %p141 = scmp.ne.s32.totalorder %s132, %s133
    %p142 = scmp.eq.s32.totalorder %s17, 0
    %p143 = por %p141, %p142
    %p144 = scmp.ne.s32.totalorder %s132, %s133
    %p145 = scmp.eq.s32.totalorder %s18, 1
    %p146 = por %p144, %p145
    %p148 = scmp.ne.s32.totalorder %s133, %s147
    %p149 = scmp.eq.s32.totalorder %s18, 0
    %p150 = por %p148, %p149
    %s151 = ssub.s32 %s12, %s19
    %p152 = scmp.eq.s32.totalorder %s151, 0
    %s154 = sadd.s32 %s153, 1
    %s155 = scalar_select %p152, %s153, %s154
    %p158 = pneg %p152
    %p159 = scmp.eq.s32.totalorder %s12, 1
    %p160 = por %p158, %p159
    %p161 = scmp.ne.s32.totalorder %s153, %s156
    %p162 = scmp.eq.s32.totalorder %s12, 0
    %p163 = por %p161, %p162
    %p164 = scmp.ne.s32.totalorder %s153, %s156
    %p165 = scmp.eq.s32.totalorder %s17, 1
    %p166 = por %p164, %p165
    %p167 = scmp.ne.s32.totalorder %s156, %s157
    %p168 = scmp.eq.s32.totalorder %s17, 0
    %p169 = por %p167, %p168
    %p170 = scmp.ne.s32.totalorder %s156, %s157
    %p171 = scmp.eq.s32.totalorder %s18, 1
    %p172 = por %p170, %p171
    %p174 = scmp.ne.s32.totalorder %s157, %s173
    %p175 = scmp.eq.s32.totalorder %s18, 0
    %p176 = por %p174, %p175
    %p177 = scmp.le.s32.totalorder 1, %s12
    %p178 = scmp.lt.s32.totalorder %s12, 3
    %p179 = pnand %p177, %p178
    %p180 = pneg %p179
    // Predicated region
    $region9: #{tpu_custom_call.1} parent=5 // pred_check
      _
    $region10: #{tpu_custom_call.1} parent=5 // pred_check_branch
      %182 = sbr.rel (%p179) target = $region12
    $region11: #{tpu_custom_call.1} parent=5 // pred_region
      %s183 = ssub.s32 %s12, 1
      // Predicated region
      $region13: #{tpu_custom_call.1} parent=11 // pred_check
        %p184 = pneg %p59
      $region14: #{tpu_custom_call.1} parent=11 // pred_check_branch
        %186 = sbr.rel (%p184) target = $region16
      $region15: #{tpu_custom_call.1} parent=11 // pred_region
        _
      $region16: #{tpu_custom_call.1} parent=11 // pred_fallthru
        _
      // Predicated region
      $region17: #{tpu_custom_call.1} parent=11 // pred_check
        %p187 = pneg %p80
      $region18: #{tpu_custom_call.1} parent=11 // pred_check_branch
        %189 = sbr.rel (%p187) target = $region20
      $region19: #{tpu_custom_call.1} parent=11 // pred_region
        _
      $region20: #{tpu_custom_call.1} parent=11 // pred_fallthru
        _
      // Predicated region
      $region21: #{tpu_custom_call.1} parent=11 // pred_check
        %p190 = pneg %p101
      $region22: #{tpu_custom_call.1} parent=11 // pred_check_branch
        %192 = sbr.rel (%p190) target = $region24
      $region23: #{tpu_custom_call.1} parent=11 // pred_region
        _
      $region24: #{tpu_custom_call.1} parent=11 // pred_fallthru
        _
      // Predicated region
      $region25: #{tpu_custom_call.1} parent=11 // pred_check
        %p193 = pneg %p122
      $region26: #{tpu_custom_call.1} parent=11 // pred_check_branch
        %195 = sbr.rel (%p193) target = $region28
      $region27: #{tpu_custom_call.1} parent=11 // pred_region
        _
      $region28: #{tpu_custom_call.1} parent=11 // pred_fallthru
        _
      // Predicated region
      $region29: #{tpu_custom_call.1} parent=11 // pred_check
        %p196 = pneg %p143
      $region30: #{tpu_custom_call.1} parent=11 // pred_check_branch
        %198 = sbr.rel (%p196) target = $region32
      $region31: #{tpu_custom_call.1} parent=11 // pred_region
        _
      $region32: #{tpu_custom_call.1} parent=11 // pred_fallthru
        _
    $region12: #{tpu_custom_call.1} parent=5 // pred_fallthru
      _
    %p199 = scmp.lt.s32.totalorder %s12, 2
    // Predicated region
    $region33: #{tpu_custom_call.1} parent=5 // pred_check
      %p200 = pneg %p199
    $region34: #{tpu_custom_call.1} parent=5 // pred_check_branch
      %202 = sbr.rel (%p200) target = $region36
    $region35: #{tpu_custom_call.1} parent=5 // pred_region
      // Predicated region
      $region37: #{tpu_custom_call.1} parent=35 // pred_check
        %p203 = pneg %p32
      $region38: #{tpu_custom_call.1} parent=35 // pred_check_branch
        %205 = sbr.rel (%p203) target = $region40
      $region39: #{tpu_custom_call.1} parent=35 // pred_region
        %p206 = scmp.lt.s32.totalorder %s12, 1
        %s207 = scalar_select %p206, %s12, 1
        %s208 = smul.addr %s207, 78
        %s209 = smul.addr %s208, 8
        %s210 = scalar_lea.vmem %s0, %s209
      $region40: #{tpu_custom_call.1} parent=35 // pred_fallthru
        _
    $region36: #{tpu_custom_call.1} parent=5 // pred_fallthru
      _
    %p211 = scmp.le.s32.totalorder 1, %s12
    %p212 = scmp.lt.s32.totalorder %s12, 3
    %p213 = pnand %p211, %p212
    %p214 = pneg %p213
    // Predicated region
    $region41: #{tpu_custom_call.1} parent=5 // pred_check
      _
    $region42: #{tpu_custom_call.1} parent=5 // pred_check_branch
      %216 = sbr.rel (%p213) target = $region44
    $region43: #{tpu_custom_call.1} parent=5 // pred_region
      %s217 = ssub.s32 %s12, 1
      %p218 = scmp.lt.s32.totalorder %s17, 1
      %s219 = scalar_select %p218, %s17, 1
      %s220 = smul.addr %s219, 78
      %s221 = smul.addr %s220, 8
      %s222 = scalar_lea.vmem %s0, %s221
      %p223 = pneg %p38
      %p224 = pneg %p35
      %p225 = pneg %p59
      %p226 = pneg %p56
      %p227 = pneg %p80
      %p228 = pneg %p77
      %p229 = pneg %p101
      %p230 = pneg %p98
      %p231 = pneg %p122
      %p232 = pneg %p119
      %p233 = pneg %p143
      %p234 = pneg %p140
      %p235 = pneg %p169
      %p236 = pneg %p166
      %p237 = scmp.lt.s32.totalorder %s17, 1
      %s238 = scalar_select %p237, %s17, 1
      %s239 = smul.addr %s238, 54
      %s240 = smul.addr %s239, 8
      %s241 = scalar_lea.vmem %s6, %s240
      %p242 = scmp.lt.s32.totalorder %s17, 1
      %s243 = scalar_select %p242, %s17, 1
      %s244 = smul.addr %s243, 78
      %s245 = smul.addr %s244, 8
      %s246 = scalar_lea.vmem %s0, %s245
      %p247 = scmp.lt.s32.totalorder %s17, 1
      %s248 = scalar_select %p247, %s17, 1
      %s249 = smul.addr %s248, 54
      %s250 = smul.addr %s249, 8
      %s251 = scalar_lea.vmem %s6, %s250
      %v252 = vld [vmem:[%s246 + $0x27] sm:$0xff]
      %v253 = vld [vmem:[%s246 + $0x2f] sm:$0xff]
      %v254 = vld [vmem:[%s246 + $0x37] sm:$0xff]
      %v255 = vld [vmem:[%s246 + $0x3f] sm:$0xff]
      %v256 = vld [vmem:[%s246 + $0x47] sm:$0xff]
      %v257 = vld [vmem:[%s246 + $0x4f] sm:$0xff]
      %v258 = vld [vmem:[%s246 + $0x57] sm:$0xff]
      %v259 = vld [vmem:[%s246 + $0x5f] sm:$0xff]
      %v260 = vld [vmem:[%s246 + $0x67] sm:$0xff]
      %v261 = vld [vmem:[%s246 + $0x6f] sm:$0xff]
      %v262 = vld [vmem:[%s246 + $0x77] sm:$0xff]
      %v263 = vld [vmem:[%s246 + $0x7f] sm:$0xff]
      %v264 = vld [vmem:[%s246 + $0x87] sm:$0xff]
      %v265 = vld [vmem:[%s246 + $0x8f] sm:$0xff]
      %v266 = vld [vmem:[%s246 + $0x97] sm:$0xff]
      %v267 = vld [vmem:[%s246 + $0x9f] sm:$0xff]
      %v268 = vld [vmem:[%s246 + $0xa7] sm:$0xff]
      %v269 = vld [vmem:[%s246 + $0xaf] sm:$0xff]
      %v270 = vld [vmem:[%s246 + $0xb7] sm:$0xff]
      %v271 = vld [vmem:[%s246 + $0xbf] sm:$0xff]
      %v272 = vld [vmem:[%s246 + $0xc7] sm:$0xff]
      %v273 = vld [vmem:[%s246 + $0xcf] sm:$0xff]
      %v274 = vld [vmem:[%s246 + $0xd7] sm:$0xff]
      %v275 = vld [vmem:[%s246 + $0xdf] sm:$0xff]
      %v276 = vld [vmem:[%s246 + $0xe7] sm:$0xff]
      %v277 = vld [vmem:[%s246 + $0xef] sm:$0xff]
      %v278 = vld [vmem:[%s246 + $0xf7] sm:$0xff]
      %v279 = vld [vmem:[%s246 + $0xff] sm:$0xff]
      %v280 = vld [vmem:[%s246 + $0x107] sm:$0xff]
      %v281 = vld [vmem:[%s246 + $0x10f] sm:$0xff]
      %v282 = vld [vmem:[%s246 + $0x117] sm:$0xff]
      %v283 = vld [vmem:[%s246 + $0x11f] sm:$0xff]
      %v284 = vld [vmem:[%s246 + $0x127] sm:$0xff]
      %v285 = vld [vmem:[%s246 + $0x12f] sm:$0xff]
      %v286 = vld [vmem:[%s246 + $0x137] sm:$0xff]
      %v287 = vld [vmem:[%s246 + $0x13f] sm:$0xff]
      %v288 = vld [vmem:[%s246 + $0x147] sm:$0xff]
      %v289 = vld [vmem:[%s246 + $0x14f] sm:$0xff]
      %v290 = vld [vmem:[%s246 + $0x157] sm:$0xff]
      %v291 = vld [vmem:[%s246 + $0x15f] sm:$0xff]
      %v292 = vld [vmem:[%s246 + $0x167] sm:$0xff]
      %v293 = vld [vmem:[%s246 + $0x16f] sm:$0xff]
      %v294 = vld [vmem:[%s246 + $0x177] sm:$0xff]
      %v295 = vld [vmem:[%s246 + $0x17f] sm:$0xff]
      %v296 = vld [vmem:[%s246 + $0x187] sm:$0xff]
      %v297 = vld [vmem:[%s246 + $0x18f] sm:$0xff]
      %v298 = vld [vmem:[%s246 + $0x197] sm:$0xff]
      %v299 = vld [vmem:[%s246 + $0x19f] sm:$0xff]
      %v300 = vld [vmem:[%s246 + $0x1a7] sm:$0xff]
      %v301 = vld [vmem:[%s246 + $0x1af] sm:$0xff]
      %v302 = vld [vmem:[%s246 + $0x1b7] sm:$0xff]
      %v303 = vld [vmem:[%s246 + $0x1bf] sm:$0xff]
      %v304 = vld [vmem:[%s246 + $0x1c7] sm:$0xff]
      %v305 = vld [vmem:[%s246 + $0x1cf] sm:$0xff]
      %v306 = vld [vmem:[%s246 + $0x1d7] sm:$0xff]
      %v307 = vld [vmem:[%s246 + $0x1df] sm:$0xff]
      %v308 = vld [vmem:[%s246 + $0x1e7] sm:$0xff]
      %v309 = vld [vmem:[%s246 + $0x1ef] sm:$0xff]
      %v310 = vld [vmem:[%s246 + $0x1f7] sm:$0xff]
      %v311 = vld [vmem:[%s246 + $0x1ff] sm:$0xff]
      %v312 = vld [vmem:[%s246 + $0x207] sm:$0xff]
      %v313 = vld [vmem:[%s246 + $0x20f] sm:$0xff]
      %v314 = vld [vmem:[%s246 + $0x217] sm:$0xff]
      %v315 = vld [vmem:[%s246 + $0x21f] sm:$0xff]
      %v316 = vld [vmem:[%s246 + $0x227] sm:$0xff]
      %v317 = vld [vmem:[%s246 + $0x22f] sm:$0xff]
      %v318 = vld [vmem:[%s246 + $0x237] sm:$0xff]
      %v319 = vld [vmem:[%s246 + $0x23f] sm:$0xff]
      %v320 = vld [vmem:[%s246 + $0x28] sm:$0xff]
      %v321 = vld [vmem:[%s246 + $0x30] sm:$0xff]
      %v322 = vld [vmem:[%s246 + $0x38] sm:$0xff]
      %v323 = vld [vmem:[%s246 + $0x40] sm:$0xff]
      %v324 = vld [vmem:[%s246 + $0x48] sm:$0xff]
      %v325 = vld [vmem:[%s246 + $0x50] sm:$0xff]
      %v326 = vld [vmem:[%s246 + $0x58] sm:$0xff]
      %v327 = vld [vmem:[%s246 + $0x60] sm:$0xff]
      %v328 = vld [vmem:[%s246 + $0x68] sm:$0xff]
      %v329 = vld [vmem:[%s246 + $0x70] sm:$0xff]
      %v330 = vld [vmem:[%s246 + $0x78] sm:$0xff]
      %v331 = vld [vmem:[%s246 + $0x80] sm:$0xff]
      %v332 = vld [vmem:[%s246 + $0x88] sm:$0xff]
      %v333 = vld [vmem:[%s246 + $0x90] sm:$0xff]
      %v334 = vld [vmem:[%s246 + $0x98] sm:$0xff]
      %v335 = vld [vmem:[%s246 + $0xa0] sm:$0xff]
      %v336 = vld [vmem:[%s246 + $0xa8] sm:$0xff]
      %v337 = vld [vmem:[%s246 + $0xb0] sm:$0xff]
      %v338 = vld [vmem:[%s246 + $0xb8] sm:$0xff]
      %v339 = vld [vmem:[%s246 + $0xc0] sm:$0xff]
      %v340 = vld [vmem:[%s246 + $0xc8] sm:$0xff]
      %v341 = vld [vmem:[%s246 + $0xd0] sm:$0xff]
      %v342 = vld [vmem:[%s246 + $0xd8] sm:$0xff]
      %v343 = vld [vmem:[%s246 + $0xe0] sm:$0xff]
      %v344 = vld [vmem:[%s246 + $0xe8] sm:$0xff]
      %v345 = vld [vmem:[%s246 + $0xf0] sm:$0xff]
      %v346 = vld [vmem:[%s246 + $0xf8] sm:$0xff]
      %v347 = vld [vmem:[%s246 + $0x100] sm:$0xff]
      %v348 = vld [vmem:[%s246 + $0x108] sm:$0xff]
      %v349 = vld [vmem:[%s246 + $0x110] sm:$0xff]
      %v350 = vld [vmem:[%s246 + $0x118] sm:$0xff]
      %v351 = vld [vmem:[%s246 + $0x120] sm:$0xff]
      %v352 = vld [vmem:[%s246 + $0x128] sm:$0xff]
      %v353 = vld [vmem:[%s246 + $0x130] sm:$0xff]
      %v354 = vld [vmem:[%s246 + $0x138] sm:$0xff]
      %v355 = vld [vmem:[%s246 + $0x140] sm:$0xff]
      %v356 = vld [vmem:[%s246 + $0x148] sm:$0xff]
      %v357 = vld [vmem:[%s246 + $0x150] sm:$0xff]
      %v358 = vld [vmem:[%s246 + $0x158] sm:$0xff]
      %v359 = vld [vmem:[%s246 + $0x160] sm:$0xff]
      %v360 = vld [vmem:[%s246 + $0x168] sm:$0xff]
      %v361 = vld [vmem:[%s246 + $0x170] sm:$0xff]
      %v362 = vld [vmem:[%s246 + $0x178] sm:$0xff]
      %v363 = vld [vmem:[%s246 + $0x180] sm:$0xff]
      %v364 = vld [vmem:[%s246 + $0x188] sm:$0xff]
      %v365 = vld [vmem:[%s246 + $0x190] sm:$0xff]
      %v366 = vld [vmem:[%s246 + $0x198] sm:$0xff]
      %v367 = vld [vmem:[%s246 + $0x1a0] sm:$0xff]
      %v368 = vld [vmem:[%s246 + $0x1a8] sm:$0xff]
      %v369 = vld [vmem:[%s246 + $0x1b0] sm:$0xff]
      %v370 = vld [vmem:[%s246 + $0x1b8] sm:$0xff]
      %v371 = vld [vmem:[%s246 + $0x1c0] sm:$0xff]
      %v372 = vld [vmem:[%s246 + $0x1c8] sm:$0xff]
      %v373 = vld [vmem:[%s246 + $0x1d0] sm:$0xff]
      %v374 = vld [vmem:[%s246 + $0x1d8] sm:$0xff]
      %v375 = vld [vmem:[%s246 + $0x1e0] sm:$0xff]
      %v376 = vld [vmem:[%s246 + $0x1e8] sm:$0xff]
      %v377 = vld [vmem:[%s246 + $0x1f0] sm:$0xff]
      %v378 = vld [vmem:[%s246 + $0x1f8] sm:$0xff]
      %v379 = vld [vmem:[%s246 + $0x200] sm:$0xff]
      %v380 = vld [vmem:[%s246 + $0x208] sm:$0xff]
      %v381 = vld [vmem:[%s246 + $0x210] sm:$0xff]
      %v382 = vld [vmem:[%s246 + $0x218] sm:$0xff]
      %v383 = vld [vmem:[%s246 + $0x220] sm:$0xff]
      %v384 = vld [vmem:[%s246 + $0x228] sm:$0xff]
      %v385 = vld [vmem:[%s246 + $0x230] sm:$0xff]
      %v386 = vld [vmem:[%s246 + $0x238] sm:$0xff]
      %v387 = vld [vmem:[%s246 + $0x240] sm:$0xff]
      %v388 = vld [vmem:[%s246 + $0x29] sm:$0xff]
      %v389 = vld [vmem:[%s246 + $0x31] sm:$0xff]
      %v390 = vld [vmem:[%s246 + $0x39] sm:$0xff]
      %v391 = vld [vmem:[%s246 + $0x41] sm:$0xff]
      %v392 = vld [vmem:[%s246 + $0x49] sm:$0xff]
      %v393 = vld [vmem:[%s246 + $0x51] sm:$0xff]
      %v394 = vld [vmem:[%s246 + $0x59] sm:$0xff]
      %v395 = vld [vmem:[%s246 + $0x61] sm:$0xff]
      %v396 = vld [vmem:[%s246 + $0x69] sm:$0xff]
      %v397 = vld [vmem:[%s246 + $0x71] sm:$0xff]
      %v398 = vld [vmem:[%s246 + $0x79] sm:$0xff]
      %v399 = vld [vmem:[%s246 + $0x81] sm:$0xff]
      %v400 = vld [vmem:[%s246 + $0x89] sm:$0xff]
      %v401 = vld [vmem:[%s246 + $0x91] sm:$0xff]
      %v402 = vld [vmem:[%s246 + $0x99] sm:$0xff]
      %v403 = vld [vmem:[%s246 + $0xa1] sm:$0xff]
      %v404 = vld [vmem:[%s246 + $0xa9] sm:$0xff]
      %v405 = vld [vmem:[%s246 + $0xb1] sm:$0xff]
      %v406 = vld [vmem:[%s246 + $0xb9] sm:$0xff]
      %v407 = vld [vmem:[%s246 + $0xc1] sm:$0xff]
      %v408 = vld [vmem:[%s246 + $0xc9] sm:$0xff]
      %v409 = vld [vmem:[%s246 + $0xd1] sm:$0xff]
      %v410 = vld [vmem:[%s246 + $0xd9] sm:$0xff]
      %v411 = vld [vmem:[%s246 + $0xe1] sm:$0xff]
      %v412 = vld [vmem:[%s246 + $0xe9] sm:$0xff]
      %v413 = vld [vmem:[%s246 + $0xf1] sm:$0xff]
      %v414 = vld [vmem:[%s246 + $0xf9] sm:$0xff]
      %v415 = vld [vmem:[%s246 + $0x101] sm:$0xff]
      %v416 = vld [vmem:[%s246 + $0x109] sm:$0xff]
      %v417 = vld [vmem:[%s246 + $0x111] sm:$0xff]
      %v418 = vld [vmem:[%s246 + $0x119] sm:$0xff]
      %v419 = vld [vmem:[%s246 + $0x121] sm:$0xff]
      %v420 = vld [vmem:[%s246 + $0x129] sm:$0xff]
      %v421 = vld [vmem:[%s246 + $0x131] sm:$0xff]
      %v422 = vld [vmem:[%s246 + $0x139] sm:$0xff]
      %v423 = vld [vmem:[%s246 + $0x141] sm:$0xff]
      %v424 = vld [vmem:[%s246 + $0x149] sm:$0xff]
      %v425 = vld [vmem:[%s246 + $0x151] sm:$0xff]
      %v426 = vld [vmem:[%s246 + $0x159] sm:$0xff]
      %v427 = vld [vmem:[%s246 + $0x161] sm:$0xff]
      %v428 = vld [vmem:[%s246 + $0x169] sm:$0xff]
      %v429 = vld [vmem:[%s246 + $0x171] sm:$0xff]
      %v430 = vld [vmem:[%s246 + $0x179] sm:$0xff]
      %v431 = vld [vmem:[%s246 + $0x181] sm:$0xff]
      %v432 = vld [vmem:[%s246 + $0x189] sm:$0xff]
      %v433 = vld [vmem:[%s246 + $0x191] sm:$0xff]
      %v434 = vld [vmem:[%s246 + $0x199] sm:$0xff]
      %v435 = vld [vmem:[%s246 + $0x1a1] sm:$0xff]
      %v436 = vld [vmem:[%s246 + $0x1a9] sm:$0xff]
      %v437 = vld [vmem:[%s246 + $0x1b1] sm:$0xff]
      %v438 = vld [vmem:[%s246 + $0x1b9] sm:$0xff]
      %v439 = vld [vmem:[%s246 + $0x1c1] sm:$0xff]
      %v440 = vld [vmem:[%s246 + $0x1c9] sm:$0xff]
      %v441 = vld [vmem:[%s246 + $0x1d1] sm:$0xff]
      %v442 = vld [vmem:[%s246 + $0x1d9] sm:$0xff]
      %v443 = vld [vmem:[%s246 + $0x1e1] sm:$0xff]
      %v444 = vld [vmem:[%s246 + $0x1e9] sm:$0xff]
      %v445 = vld [vmem:[%s246 + $0x1f1] sm:$0xff]
      %v446 = vld [vmem:[%s246 + $0x1f9] sm:$0xff]
      %v447 = vld [vmem:[%s246 + $0x201] sm:$0xff]
      %v448 = vld [vmem:[%s246 + $0x209] sm:$0xff]
      %v449 = vld [vmem:[%s246 + $0x211] sm:$0xff]
      %v450 = vld [vmem:[%s246 + $0x219] sm:$0xff]
      %v451 = vld [vmem:[%s246 + $0x221] sm:$0xff]
      %v452 = vld [vmem:[%s246 + $0x229] sm:$0xff]
      %v453 = vld [vmem:[%s246 + $0x231] sm:$0xff]
      %v454 = vld [vmem:[%s246 + $0x239] sm:$0xff]
      %v455 = vld [vmem:[%s246 + $0x241] sm:$0xff]
      %524 = vrot.lane.b32.xlu0 %v320, 8
      %v525 = vpop.permute.xlu0 %524
      %526 = vrot.lane.b32.xlu0 %v321, 8
      %v527 = vpop.permute.xlu0 %526
      %528 = vrot.lane.b32.xlu0 %v322, 8
      %v529 = vpop.permute.xlu0 %528
      %530 = vrot.lane.b32.xlu0 %v323, 8
      %v531 = vpop.permute.xlu0 %530
      %532 = vrot.lane.b32.xlu0 %v324, 8
      %v533 = vpop.permute.xlu0 %532
      %534 = vrot.lane.b32.xlu0 %v325, 8
      %v535 = vpop.permute.xlu0 %534
      %536 = vrot.lane.b32.xlu0 %v326, 8
      %v537 = vpop.permute.xlu0 %536
      %538 = vrot.lane.b32.xlu0 %v327, 8
      %v539 = vpop.permute.xlu0 %538
      %540 = vrot.lane.b32.xlu0 %v328, 8
      %v541 = vpop.permute.xlu0 %540
      %542 = vrot.lane.b32.xlu0 %v329, 8
      %v543 = vpop.permute.xlu0 %542
      %544 = vrot.lane.b32.xlu0 %v330, 8
      %v545 = vpop.permute.xlu0 %544
      %546 = vrot.lane.b32.xlu0 %v331, 8
      %v547 = vpop.permute.xlu0 %546
      %548 = vrot.lane.b32.xlu0 %v332, 8
      %v549 = vpop.permute.xlu0 %548
      %550 = vrot.lane.b32.xlu0 %v333, 8
      %v551 = vpop.permute.xlu0 %550
      %552 = vrot.lane.b32.xlu0 %v334, 8
      %v553 = vpop.permute.xlu0 %552
      %554 = vrot.lane.b32.xlu0 %v335, 8
      %v555 = vpop.permute.xlu0 %554
      %556 = vrot.lane.b32.xlu0 %v336, 8
      %v557 = vpop.permute.xlu0 %556
      %558 = vrot.lane.b32.xlu0 %v337, 8
      %v559 = vpop.permute.xlu0 %558
      %560 = vrot.lane.b32.xlu0 %v338, 8
      %v561 = vpop.permute.xlu0 %560
      %562 = vrot.lane.b32.xlu0 %v339, 8
      %v563 = vpop.permute.xlu0 %562
      %564 = vrot.lane.b32.xlu0 %v340, 8
      %v565 = vpop.permute.xlu0 %564
      %566 = vrot.lane.b32.xlu0 %v341, 8
      %v567 = vpop.permute.xlu0 %566
      %568 = vrot.lane.b32.xlu0 %v342, 8
      %v569 = vpop.permute.xlu0 %568
      %570 = vrot.lane.b32.xlu0 %v343, 8
      %v571 = vpop.permute.xlu0 %570
      %572 = vrot.lane.b32.xlu0 %v344, 8
      %v573 = vpop.permute.xlu0 %572
      %574 = vrot.lane.b32.xlu0 %v345, 8
      %v575 = vpop.permute.xlu0 %574
      %576 = vrot.lane.b32.xlu0 %v346, 8
      %v577 = vpop.permute.xlu0 %576
      %578 = vrot.lane.b32.xlu0 %v347, 8
      %v579 = vpop.permute.xlu0 %578
      %580 = vrot.lane.b32.xlu0 %v348, 8
      %v581 = vpop.permute.xlu0 %580
      %582 = vrot.lane.b32.xlu0 %v349, 8
      %v583 = vpop.permute.xlu0 %582
      %584 = vrot.lane.b32.xlu0 %v350, 8
      %v585 = vpop.permute.xlu0 %584
      %586 = vrot.lane.b32.xlu0 %v351, 8
      %v587 = vpop.permute.xlu0 %586
      %588 = vrot.lane.b32.xlu0 %v352, 8
      %v589 = vpop.permute.xlu0 %588
      %590 = vrot.lane.b32.xlu0 %v353, 8
      %v591 = vpop.permute.xlu0 %590
      %592 = vrot.lane.b32.xlu0 %v354, 8
      %v593 = vpop.permute.xlu0 %592
      %594 = vrot.lane.b32.xlu0 %v355, 8
      %v595 = vpop.permute.xlu0 %594
      %596 = vrot.lane.b32.xlu0 %v356, 8
      %v597 = vpop.permute.xlu0 %596
      %598 = vrot.lane.b32.xlu0 %v357, 8
      %v599 = vpop.permute.xlu0 %598
      %600 = vrot.lane.b32.xlu0 %v358, 8
      %v601 = vpop.permute.xlu0 %600
      %602 = vrot.lane.b32.xlu0 %v359, 8
      %v603 = vpop.permute.xlu0 %602
      %604 = vrot.lane.b32.xlu0 %v360, 8
      %v605 = vpop.permute.xlu0 %604
      %606 = vrot.lane.b32.xlu0 %v361, 8
      %v607 = vpop.permute.xlu0 %606
      %608 = vrot.lane.b32.xlu0 %v362, 8
      %v609 = vpop.permute.xlu0 %608
      %610 = vrot.lane.b32.xlu0 %v363, 8
      %v611 = vpop.permute.xlu0 %610
      %612 = vrot.lane.b32.xlu0 %v364, 8
      %v613 = vpop.permute.xlu0 %612
      %614 = vrot.lane.b32.xlu0 %v365, 8
      %v615 = vpop.permute.xlu0 %614
      %616 = vrot.lane.b32.xlu0 %v366, 8
      %v617 = vpop.permute.xlu0 %616
      %618 = vrot.lane.b32.xlu0 %v367, 8
      %v619 = vpop.permute.xlu0 %618
      %620 = vrot.lane.b32.xlu0 %v368, 8
      %v621 = vpop.permute.xlu0 %620
      %622 = vrot.lane.b32.xlu0 %v369, 8
      %v623 = vpop.permute.xlu0 %622
      %624 = vrot.lane.b32.xlu0 %v370, 8
      %v625 = vpop.permute.xlu0 %624
      %626 = vrot.lane.b32.xlu0 %v371, 8
      %v627 = vpop.permute.xlu0 %626
      %628 = vrot.lane.b32.xlu0 %v372, 8
      %v629 = vpop.permute.xlu0 %628
      %630 = vrot.lane.b32.xlu0 %v373, 8
      %v631 = vpop.permute.xlu0 %630
      %632 = vrot.lane.b32.xlu0 %v374, 8
      %v633 = vpop.permute.xlu0 %632
      %634 = vrot.lane.b32.xlu0 %v375, 8
      %v635 = vpop.permute.xlu0 %634
      %636 = vrot.lane.b32.xlu0 %v376, 8
      %v637 = vpop.permute.xlu0 %636
      %638 = vrot.lane.b32.xlu0 %v377, 8
      %v639 = vpop.permute.xlu0 %638
      %640 = vrot.lane.b32.xlu0 %v378, 8
      %v641 = vpop.permute.xlu0 %640
      %642 = vrot.lane.b32.xlu0 %v379, 8
      %v643 = vpop.permute.xlu0 %642
      %644 = vrot.lane.b32.xlu0 %v380, 8
      %v645 = vpop.permute.xlu0 %644
      %646 = vrot.lane.b32.xlu0 %v381, 8
      %v647 = vpop.permute.xlu0 %646
      %648 = vrot.lane.b32.xlu0 %v382, 8
      %v649 = vpop.permute.xlu0 %648
      %650 = vrot.lane.b32.xlu0 %v383, 8
      %v651 = vpop.permute.xlu0 %650
      %652 = vrot.lane.b32.xlu0 %v384, 8
      %v653 = vpop.permute.xlu0 %652
      %654 = vrot.lane.b32.xlu0 %v385, 8
      %v655 = vpop.permute.xlu0 %654
      %656 = vrot.lane.b32.xlu0 %v386, 8
      %v657 = vpop.permute.xlu0 %656
      %658 = vrot.lane.b32.xlu0 %v387, 8
      %v659 = vpop.permute.xlu0 %658
      %796 = vrot.lane.b32.xlu0 %v388, 16
      %v797 = vpop.permute.xlu0 %796
      %798 = vrot.lane.b32.xlu0 %v389, 16
      %v799 = vpop.permute.xlu0 %798
      %800 = vrot.lane.b32.xlu0 %v390, 16
      %v801 = vpop.permute.xlu0 %800
      %802 = vrot.lane.b32.xlu0 %v391, 16
      %v803 = vpop.permute.xlu0 %802
      %804 = vrot.lane.b32.xlu0 %v392, 16
      %v805 = vpop.permute.xlu0 %804
      %806 = vrot.lane.b32.xlu0 %v393, 16
      %v807 = vpop.permute.xlu0 %806
      %808 = vrot.lane.b32.xlu0 %v394, 16
      %v809 = vpop.permute.xlu0 %808
      %810 = vrot.lane.b32.xlu0 %v395, 16
      %v811 = vpop.permute.xlu0 %810
      %812 = vrot.lane.b32.xlu0 %v396, 16
      %v813 = vpop.permute.xlu0 %812
      %814 = vrot.lane.b32.xlu0 %v397, 16
      %v815 = vpop.permute.xlu0 %814
      %816 = vrot.lane.b32.xlu0 %v398, 16
      %v817 = vpop.permute.xlu0 %816
      %818 = vrot.lane.b32.xlu0 %v399, 16
      %v819 = vpop.permute.xlu0 %818
      %820 = vrot.lane.b32.xlu0 %v400, 16
      %v821 = vpop.permute.xlu0 %820
      %822 = vrot.lane.b32.xlu0 %v401, 16
      %v823 = vpop.permute.xlu0 %822
      %824 = vrot.lane.b32.xlu0 %v402, 16
      %v825 = vpop.permute.xlu0 %824
      %826 = vrot.lane.b32.xlu0 %v403, 16
      %v827 = vpop.permute.xlu0 %826
      %828 = vrot.lane.b32.xlu0 %v404, 16
      %v829 = vpop.permute.xlu0 %828
      %830 = vrot.lane.b32.xlu0 %v405, 16
      %v831 = vpop.permute.xlu0 %830
      %832 = vrot.lane.b32.xlu0 %v406, 16
      %v833 = vpop.permute.xlu0 %832
      %834 = vrot.lane.b32.xlu0 %v407, 16
      %v835 = vpop.permute.xlu0 %834
      %836 = vrot.lane.b32.xlu0 %v408, 16
      %v837 = vpop.permute.xlu0 %836
      %838 = vrot.lane.b32.xlu0 %v409, 16
      %v839 = vpop.permute.xlu0 %838
      %840 = vrot.lane.b32.xlu0 %v410, 16
      %v841 = vpop.permute.xlu0 %840
      %842 = vrot.lane.b32.xlu0 %v411, 16
      %v843 = vpop.permute.xlu0 %842
      %844 = vrot.lane.b32.xlu0 %v412, 16
      %v845 = vpop.permute.xlu0 %844
      %846 = vrot.lane.b32.xlu0 %v413, 16
      %v847 = vpop.permute.xlu0 %846
      %848 = vrot.lane.b32.xlu0 %v414, 16
      %v849 = vpop.permute.xlu0 %848
      %850 = vrot.lane.b32.xlu0 %v415, 16
      %v851 = vpop.permute.xlu0 %850
      %852 = vrot.lane.b32.xlu0 %v416, 16
      %v853 = vpop.permute.xlu0 %852
      %854 = vrot.lane.b32.xlu0 %v417, 16
      %v855 = vpop.permute.xlu0 %854
      %856 = vrot.lane.b32.xlu0 %v418, 16
      %v857 = vpop.permute.xlu0 %856
      %858 = vrot.lane.b32.xlu0 %v419, 16
      %v859 = vpop.permute.xlu0 %858
      %860 = vrot.lane.b32.xlu0 %v420, 16
      %v861 = vpop.permute.xlu0 %860
      %862 = vrot.lane.b32.xlu0 %v421, 16
      %v863 = vpop.permute.xlu0 %862
      %864 = vrot.lane.b32.xlu0 %v422, 16
      %v865 = vpop.permute.xlu0 %864
      %866 = vrot.lane.b32.xlu0 %v423, 16
      %v867 = vpop.permute.xlu0 %866
      %868 = vrot.lane.b32.xlu0 %v424, 16
      %v869 = vpop.permute.xlu0 %868
      %870 = vrot.lane.b32.xlu0 %v425, 16
      %v871 = vpop.permute.xlu0 %870
      %872 = vrot.lane.b32.xlu0 %v426, 16
      %v873 = vpop.permute.xlu0 %872
      %874 = vrot.lane.b32.xlu0 %v427, 16
      %v875 = vpop.permute.xlu0 %874
      %876 = vrot.lane.b32.xlu0 %v428, 16
      %v877 = vpop.permute.xlu0 %876
      %878 = vrot.lane.b32.xlu0 %v429, 16
      %v879 = vpop.permute.xlu0 %878
      %880 = vrot.lane.b32.xlu0 %v430, 16
      %v881 = vpop.permute.xlu0 %880
      %882 = vrot.lane.b32.xlu0 %v431, 16
      %v883 = vpop.permute.xlu0 %882
      %884 = vrot.lane.b32.xlu0 %v432, 16
      %v885 = vpop.permute.xlu0 %884
      %886 = vrot.lane.b32.xlu0 %v433, 16
      %v887 = vpop.permute.xlu0 %886
      %888 = vrot.lane.b32.xlu0 %v434, 16
      %v889 = vpop.permute.xlu0 %888
      %890 = vrot.lane.b32.xlu0 %v435, 16
      %v891 = vpop.permute.xlu0 %890
      %892 = vrot.lane.b32.xlu0 %v436, 16
      %v893 = vpop.permute.xlu0 %892
      %894 = vrot.lane.b32.xlu0 %v437, 16
      %v895 = vpop.permute.xlu0 %894
      %896 = vrot.lane.b32.xlu0 %v438, 16
      %v897 = vpop.permute.xlu0 %896
      %898 = vrot.lane.b32.xlu0 %v439, 16
      %v899 = vpop.permute.xlu0 %898
      %900 = vrot.lane.b32.xlu0 %v440, 16
      %v901 = vpop.permute.xlu0 %900
      %902 = vrot.lane.b32.xlu0 %v441, 16
      %v903 = vpop.permute.xlu0 %902
      %904 = vrot.lane.b32.xlu0 %v442, 16
      %v905 = vpop.permute.xlu0 %904
      %906 = vrot.lane.b32.xlu0 %v443, 16
      %v907 = vpop.permute.xlu0 %906
      %908 = vrot.lane.b32.xlu0 %v444, 16
      %v909 = vpop.permute.xlu0 %908
      %910 = vrot.lane.b32.xlu0 %v445, 16
      %v911 = vpop.permute.xlu0 %910
      %912 = vrot.lane.b32.xlu0 %v446, 16
      %v913 = vpop.permute.xlu0 %912
      %914 = vrot.lane.b32.xlu0 %v447, 16
      %v915 = vpop.permute.xlu0 %914
      %916 = vrot.lane.b32.xlu0 %v448, 16
      %v917 = vpop.permute.xlu0 %916
      %918 = vrot.lane.b32.xlu0 %v449, 16
      %v919 = vpop.permute.xlu0 %918
      %920 = vrot.lane.b32.xlu0 %v450, 16
      %v921 = vpop.permute.xlu0 %920
      %922 = vrot.lane.b32.xlu0 %v451, 16
      %v923 = vpop.permute.xlu0 %922
      %924 = vrot.lane.b32.xlu0 %v452, 16
      %v925 = vpop.permute.xlu0 %924
      %926 = vrot.lane.b32.xlu0 %v453, 16
      %v927 = vpop.permute.xlu0 %926
      %928 = vrot.lane.b32.xlu0 %v454, 16
      %v929 = vpop.permute.xlu0 %928
      %930 = vrot.lane.b32.xlu0 %v455, 16
      %v931 = vpop.permute.xlu0 %930
      %vm1000 = vcmask 64512
      %v1001 = vsel %vm1000, %v252, %v525
      %v1002 = vsel %vm1000, %v253, %v527
      %v1003 = vsel %vm1000, %v254, %v529
      %v1004 = vsel %vm1000, %v255, %v531
      %v1005 = vsel %vm1000, %v256, %v533
      %v1006 = vsel %vm1000, %v257, %v535
      %v1007 = vsel %vm1000, %v258, %v537
      %v1008 = vsel %vm1000, %v259, %v539
      %v1009 = vsel %vm1000, %v260, %v541
      %v1010 = vsel %vm1000, %v261, %v543
      %v1011 = vsel %vm1000, %v262, %v545
      %v1012 = vsel %vm1000, %v263, %v547
      %v1013 = vsel %vm1000, %v264, %v549
      %v1014 = vsel %vm1000, %v265, %v551
      %v1015 = vsel %vm1000, %v266, %v553
      %v1016 = vsel %vm1000, %v267, %v555
      %v1017 = vsel %vm1000, %v268, %v557
      %v1018 = vsel %vm1000, %v269, %v559
      %v1019 = vsel %vm1000, %v270, %v561
      %v1020 = vsel %vm1000, %v271, %v563
      %v1021 = vsel %vm1000, %v272, %v565
      %v1022 = vsel %vm1000, %v273, %v567
      %v1023 = vsel %vm1000, %v274, %v569
      %v1024 = vsel %vm1000, %v275, %v571
      %v1025 = vsel %vm1000, %v276, %v573
      %v1026 = vsel %vm1000, %v277, %v575
      %v1027 = vsel %vm1000, %v278, %v577
      %v1028 = vsel %vm1000, %v279, %v579
      %v1029 = vsel %vm1000, %v280, %v581
      %v1030 = vsel %vm1000, %v281, %v583
      %v1031 = vsel %vm1000, %v282, %v585
      %v1032 = vsel %vm1000, %v283, %v587
      %v1033 = vsel %vm1000, %v284, %v589
      %v1034 = vsel %vm1000, %v285, %v591
      %v1035 = vsel %vm1000, %v286, %v593
      %v1036 = vsel %vm1000, %v287, %v595
      %v1037 = vsel %vm1000, %v288, %v597
      %v1038 = vsel %vm1000, %v289, %v599
      %v1039 = vsel %vm1000, %v290, %v601
      %v1040 = vsel %vm1000, %v291, %v603
      %v1041 = vsel %vm1000, %v292, %v605
      %v1042 = vsel %vm1000, %v293, %v607
      %v1043 = vsel %vm1000, %v294, %v609
      %v1044 = vsel %vm1000, %v295, %v611
      %v1045 = vsel %vm1000, %v296, %v613
      %v1046 = vsel %vm1000, %v297, %v615
      %v1047 = vsel %vm1000, %v298, %v617
      %v1048 = vsel %vm1000, %v299, %v619
      %v1049 = vsel %vm1000, %v300, %v621
      %v1050 = vsel %vm1000, %v301, %v623
      %v1051 = vsel %vm1000, %v302, %v625
      %v1052 = vsel %vm1000, %v303, %v627
      %v1053 = vsel %vm1000, %v304, %v629
      %v1054 = vsel %vm1000, %v305, %v631
      %v1055 = vsel %vm1000, %v306, %v633
      %v1056 = vsel %vm1000, %v307, %v635
      %v1057 = vsel %vm1000, %v308, %v637
      %v1058 = vsel %vm1000, %v309, %v639
      %v1059 = vsel %vm1000, %v310, %v641
      %v1060 = vsel %vm1000, %v311, %v643
      %v1061 = vsel %vm1000, %v312, %v645
      %v1062 = vsel %vm1000, %v313, %v647
      %v1063 = vsel %vm1000, %v314, %v649
      %v1064 = vsel %vm1000, %v315, %v651
      %v1065 = vsel %vm1000, %v316, %v653
      %v1066 = vsel %vm1000, %v317, %v655
      %v1067 = vsel %vm1000, %v318, %v657
      %v1068 = vsel %vm1000, %v319, %v659
      %vm1069 = vcmask 130048
      %v1070 = vsel %vm1069, %v1001, %v797
      %v1071 = vsel %vm1069, %v1002, %v799
      %v1072 = vsel %vm1069, %v1003, %v801
      %v1073 = vsel %vm1069, %v1004, %v803
      %v1074 = vsel %vm1069, %v1005, %v805
      %v1075 = vsel %vm1069, %v1006, %v807
      %v1076 = vsel %vm1069, %v1007, %v809
      %v1077 = vsel %vm1069, %v1008, %v811
      %v1078 = vsel %vm1069, %v1009, %v813
      %v1079 = vsel %vm1069, %v1010, %v815
      %v1080 = vsel %vm1069, %v1011, %v817
      %v1081 = vsel %vm1069, %v1012, %v819
      %v1082 = vsel %vm1069, %v1013, %v821
      %v1083 = vsel %vm1069, %v1014, %v823
      %v1084 = vsel %vm1069, %v1015, %v825
      %v1085 = vsel %vm1069, %v1016, %v827
      %v1086 = vsel %vm1069, %v1017, %v829
      %v1087 = vsel %vm1069, %v1018, %v831
      %v1088 = vsel %vm1069, %v1019, %v833
      %v1089 = vsel %vm1069, %v1020, %v835
      %v1090 = vsel %vm1069, %v1021, %v837
      %v1091 = vsel %vm1069, %v1022, %v839
      %v1092 = vsel %vm1069, %v1023, %v841
      %v1093 = vsel %vm1069, %v1024, %v843
      %v1094 = vsel %vm1069, %v1025, %v845
      %v1095 = vsel %vm1069, %v1026, %v847
      %v1096 = vsel %vm1069, %v1027, %v849
      %v1097 = vsel %vm1069, %v1028, %v851
      %v1098 = vsel %vm1069, %v1029, %v853
      %v1099 = vsel %vm1069, %v1030, %v855
      %v1100 = vsel %vm1069, %v1031, %v857
      %v1101 = vsel %vm1069, %v1032, %v859
      %v1102 = vsel %vm1069, %v1033, %v861
      %v1103 = vsel %vm1069, %v1034, %v863
      %v1104 = vsel %vm1069, %v1035, %v865
      %v1105 = vsel %vm1069, %v1036, %v867
      %v1106 = vsel %vm1069, %v1037, %v869
      %v1107 = vsel %vm1069, %v1038, %v871
      %v1108 = vsel %vm1069, %v1039, %v873
      %v1109 = vsel %vm1069, %v1040, %v875
      %v1110 = vsel %vm1069, %v1041, %v877
      %v1111 = vsel %vm1069, %v1042, %v879
      %v1112 = vsel %vm1069, %v1043, %v881
      %v1113 = vsel %vm1069, %v1044, %v883
      %v1114 = vsel %vm1069, %v1045, %v885
      %v1115 = vsel %vm1069, %v1046, %v887
      %v1116 = vsel %vm1069, %v1047, %v889
      %v1117 = vsel %vm1069, %v1048, %v891
      %v1118 = vsel %vm1069, %v1049, %v893
      %v1119 = vsel %vm1069, %v1050, %v895
      %v1120 = vsel %vm1069, %v1051, %v897
      %v1121 = vsel %vm1069, %v1052, %v899
      %v1122 = vsel %vm1069, %v1053, %v901
      %v1123 = vsel %vm1069, %v1054, %v903
      %v1124 = vsel %vm1069, %v1055, %v905
      %v1125 = vsel %vm1069, %v1056, %v907
      %v1126 = vsel %vm1069, %v1057, %v909
      %v1127 = vsel %vm1069, %v1058, %v911
      %v1128 = vsel %vm1069, %v1059, %v913
      %v1129 = vsel %vm1069, %v1060, %v915
      %v1130 = vsel %vm1069, %v1061, %v917
      %v1131 = vsel %vm1069, %v1062, %v919
      %v1132 = vsel %vm1069, %v1063, %v921
      %v1133 = vsel %vm1069, %v1064, %v923
      %v1134 = vsel %vm1069, %v1065, %v925
      %v1135 = vsel %vm1069, %v1066, %v927
      %v1136 = vsel %vm1069, %v1067, %v929
      %v1137 = vsel %vm1069, %v1068, %v931
      %v1138 = vld [vmem:[%s1] sm:$0xff]
      %v1139 = vld [vmem:[%s1 + $0x8] sm:$0xff]
      %v1140 = vld [vmem:[%s1 + $0x10] sm:$0xff]
      %s1141 = scalar_lea.vmem %s1, 24
      %v1142 = vld [vmem:[%s1141] sm:$0xff]
      %v1143 = vld [vmem:[%s1141 + $0x8] sm:$0xff]
      %v1144 = vld [vmem:[%s1141 + $0x10] sm:$0xff]
      %vm1145 = vcmask 195584
      %v1147 = vsel %vm1145, %v1073, 0
      %v1150 = vsel %vm1145, %v1074, 0
      %v1153 = vsel %vm1145, %v1075, 0
      %v1156 = vsel %vm1145, %v1076, 0
      %v1159 = vsel %vm1145, %v1077, 0
      %v1162 = vsel %vm1145, %v1078, 0
      %v1165 = vsel %vm1145, %v1079, 0
      %v1168 = vsel %vm1145, %v1080, 0
      %v1171 = vsel %vm1145, %v1081, 0
      %v1174 = vsel %vm1145, %v1082, 0
      %v1177 = vsel %vm1145, %v1083, 0
      %v1180 = vsel %vm1145, %v1084, 0
      %v1183 = vsel %vm1145, %v1085, 0
      %v1186 = vsel %vm1145, %v1086, 0
      %v1189 = vsel %vm1145, %v1087, 0
      %v1192 = vsel %vm1145, %v1088, 0
      %v1195 = vsel %vm1145, %v1089, 0
      %v1198 = vsel %vm1145, %v1090, 0
      %v1201 = vsel %vm1145, %v1091, 0
      %v1204 = vsel %vm1145, %v1092, 0
      %v1207 = vsel %vm1145, %v1093, 0
      %v1210 = vsel %vm1145, %v1094, 0
      %v1213 = vsel %vm1145, %v1095, 0
      %v1216 = vsel %vm1145, %v1096, 0
      %v1219 = vsel %vm1145, %v1097, 0
      %v1222 = vsel %vm1145, %v1098, 0
      %v1225 = vsel %vm1145, %v1099, 0
      %v1228 = vsel %vm1145, %v1100, 0
      %v1231 = vsel %vm1145, %v1101, 0
      %v1234 = vsel %vm1145, %v1102, 0
      %v1237 = vsel %vm1145, %v1103, 0
      %v1240 = vsel %vm1145, %v1104, 0
      %v1243 = vsel %vm1145, %v1105, 0
      %v1246 = vsel %vm1145, %v1106, 0
      %v1249 = vsel %vm1145, %v1107, 0
      %v1252 = vsel %vm1145, %v1108, 0
      %v1255 = vsel %vm1145, %v1109, 0
      %v1258 = vsel %vm1145, %v1110, 0
      %v1261 = vsel %vm1145, %v1111, 0
      %v1264 = vsel %vm1145, %v1112, 0
      %v1267 = vsel %vm1145, %v1113, 0
      %v1270 = vsel %vm1145, %v1114, 0
      %v1273 = vsel %vm1145, %v1115, 0
      %v1276 = vsel %vm1145, %v1116, 0
      %v1279 = vsel %vm1145, %v1117, 0
      %v1282 = vsel %vm1145, %v1118, 0
      %v1285 = vsel %vm1145, %v1119, 0
      %v1288 = vsel %vm1145, %v1120, 0
      %v1291 = vsel %vm1145, %v1121, 0
      %v1294 = vsel %vm1145, %v1122, 0
      %v1297 = vsel %vm1145, %v1123, 0
      %v1300 = vsel %vm1145, %v1124, 0
      %v1303 = vsel %vm1145, %v1125, 0
      %v1306 = vsel %vm1145, %v1126, 0
      %v1309 = vsel %vm1145, %v1127, 0
      %v1312 = vsel %vm1145, %v1128, 0
      %v1315 = vsel %vm1145, %v1129, 0
      %v1318 = vsel %vm1145, %v1130, 0
      %v1321 = vsel %vm1145, %v1131, 0
      %v1324 = vsel %vm1145, %v1132, 0
      %v1327 = vsel %vm1145, %v1133, 0
      %v1330 = vsel %vm1145, %v1134, 0
      %1332 = vmatpush.msra.mxu0 0.0
      %1333 = vmatpush.msra.mxu0 0.0
      %1334 = vmatpush.msra.mxu0 0.0
      %1335 = vmatpush.msra.mxu0 0.0
      %1336 = vmatpush.msra.mxu0 0.0
      %1337 = vmatpush.msra.mxu0 0.0
      %1338 = vmatpush.msra.mxu0 0.0
      %1339 = vmatpush.msra.mxu0 0.0
      %1340 = vmatpush.msra.mxu0 0.0
      %1341 = vmatpush.msra.mxu0 0.0
      %1342 = vmatpush.msra.mxu0 0.0
      %1343 = vmatpush.msra.mxu0 0.0
      %1344 = vmatpush.msra.mxu0 0.0
      %1345 = vmatpush.msra.mxu0 %v1144
      %1346 = vmatpush.msra.mxu0 %v1143
      %1347 = vmatpush.msra.mxu0 %v1142
      %1348 = vmatmul.f32.gmra.mxu0 %v1147
      %v1349 = vpop.f32.mrf.mxu0
      %v1350 = vadd.f32 0.0, %v1349
      %1351 = vmatmul.f32.gmra.mxu0 %v1150
      %v1352 = vpop.f32.mrf.mxu0
      %v1353 = vadd.f32 0.0, %v1352
      %1354 = vmatmul.f32.gmra.mxu0 %v1153
      %v1355 = vpop.f32.mrf.mxu0
      %v1356 = vadd.f32 0.0, %v1355
      %1357 = vmatmul.f32.gmra.mxu0 %v1156
      %v1358 = vpop.f32.mrf.mxu0
      %v1359 = vadd.f32 0.0, %v1358
      %1360 = vmatmul.f32.gmra.mxu0 %v1159
      %v1361 = vpop.f32.mrf.mxu0
      %v1362 = vadd.f32 0.0, %v1361
      %1363 = vmatmul.f32.gmra.mxu0 %v1162
      %v1364 = vpop.f32.mrf.mxu0
      %v1365 = vadd.f32 0.0, %v1364
      %1366 = vmatmul.f32.gmra.mxu0 %v1165
      %v1367 = vpop.f32.mrf.mxu0
      %v1368 = vadd.f32 0.0, %v1367
      %1369 = vmatmul.f32.gmra.mxu0 %v1168
      %v1370 = vpop.f32.mrf.mxu0
      %v1371 = vadd.f32 0.0, %v1370
      %1372 = vmatmul.f32.gmra.mxu0 %v1171
      %v1373 = vpop.f32.mrf.mxu0
      %v1374 = vadd.f32 0.0, %v1373
      %1375 = vmatmul.f32.gmra.mxu0 %v1174
      %v1376 = vpop.f32.mrf.mxu0
      %v1377 = vadd.f32 0.0, %v1376
      %1378 = vmatmul.f32.gmra.mxu0 %v1177
      %v1379 = vpop.f32.mrf.mxu0
      %v1380 = vadd.f32 0.0, %v1379
      %1381 = vmatmul.f32.gmra.mxu0 %v1180
      %v1382 = vpop.f32.mrf.mxu0
      %v1383 = vadd.f32 0.0, %v1382
      %1384 = vmatmul.f32.gmra.mxu0 %v1183
      %v1385 = vpop.f32.mrf.mxu0
      %v1386 = vadd.f32 0.0, %v1385
      %1387 = vmatmul.f32.gmra.mxu0 %v1186
      %v1388 = vpop.f32.mrf.mxu0
      %v1389 = vadd.f32 0.0, %v1388
      %1390 = vmatmul.f32.gmra.mxu0 %v1189
      %v1391 = vpop.f32.mrf.mxu0
      %v1392 = vadd.f32 0.0, %v1391
      %1393 = vmatmul.f32.gmra.mxu0 %v1192
      %v1394 = vpop.f32.mrf.mxu0
      %v1395 = vadd.f32 0.0, %v1394
      %1396 = vmatmul.f32.gmra.mxu0 %v1195
      %v1397 = vpop.f32.mrf.mxu0
      %v1398 = vadd.f32 0.0, %v1397
      %1399 = vmatmul.f32.gmra.mxu0 %v1198
      %v1400 = vpop.f32.mrf.mxu0
      %v1401 = vadd.f32 0.0, %v1400
      %1402 = vmatmul.f32.gmra.mxu0 %v1201
      %v1403 = vpop.f32.mrf.mxu0
      %v1404 = vadd.f32 0.0, %v1403
      %1405 = vmatmul.f32.gmra.mxu0 %v1204
      %v1406 = vpop.f32.mrf.mxu0
      %v1407 = vadd.f32 0.0, %v1406
      %1408 = vmatmul.f32.gmra.mxu0 %v1207
      %v1409 = vpop.f32.mrf.mxu0
      %v1410 = vadd.f32 0.0, %v1409
      %1411 = vmatmul.f32.gmra.mxu0 %v1210
      %v1412 = vpop.f32.mrf.mxu0
      %v1413 = vadd.f32 0.0, %v1412
      %1414 = vmatmul.f32.gmra.mxu0 %v1213
      %v1415 = vpop.f32.mrf.mxu0
      %v1416 = vadd.f32 0.0, %v1415
      %1417 = vmatmul.f32.gmra.mxu0 %v1216
      %v1418 = vpop.f32.mrf.mxu0
      %v1419 = vadd.f32 0.0, %v1418
      %1420 = vmatmul.f32.gmra.mxu0 %v1219
      %v1421 = vpop.f32.mrf.mxu0
      %v1422 = vadd.f32 0.0, %v1421
      %1423 = vmatmul.f32.gmra.mxu0 %v1222
      %v1424 = vpop.f32.mrf.mxu0
      %v1425 = vadd.f32 0.0, %v1424
      %1426 = vmatmul.f32.gmra.mxu0 %v1225
      %v1427 = vpop.f32.mrf.mxu0
      %v1428 = vadd.f32 0.0, %v1427
      %1429 = vmatmul.f32.gmra.mxu0 %v1228
      %v1430 = vpop.f32.mrf.mxu0
      %v1431 = vadd.f32 0.0, %v1430
      %1432 = vmatmul.f32.gmra.mxu0 %v1231
      %v1433 = vpop.f32.mrf.mxu0
      %v1434 = vadd.f32 0.0, %v1433
      %1435 = vmatmul.f32.gmra.mxu0 %v1234
      %v1436 = vpop.f32.mrf.mxu0
      %v1437 = vadd.f32 0.0, %v1436
      %1438 = vmatmul.f32.gmra.mxu0 %v1237
      %v1439 = vpop.f32.mrf.mxu0
      %v1440 = vadd.f32 0.0, %v1439
      %1441 = vmatmul.f32.gmra.mxu0 %v1240
      %v1442 = vpop.f32.mrf.mxu0
      %v1443 = vadd.f32 0.0, %v1442
      %1444 = vmatmul.f32.gmra.mxu0 %v1243
      %v1445 = vpop.f32.mrf.mxu0
      %v1446 = vadd.f32 0.0, %v1445
      %1447 = vmatmul.f32.gmra.mxu0 %v1246
      %v1448 = vpop.f32.mrf.mxu0
      %v1449 = vadd.f32 0.0, %v1448
      %1450 = vmatmul.f32.gmra.mxu0 %v1249
      %v1451 = vpop.f32.mrf.mxu0
      %v1452 = vadd.f32 0.0, %v1451
      %1453 = vmatmul.f32.gmra.mxu0 %v1252
      %v1454 = vpop.f32.mrf.mxu0
      %v1455 = vadd.f32 0.0, %v1454
      %1456 = vmatmul.f32.gmra.mxu0 %v1255
      %v1457 = vpop.f32.mrf.mxu0
      %v1458 = vadd.f32 0.0, %v1457
      %1459 = vmatmul.f32.gmra.mxu0 %v1258
      %v1460 = vpop.f32.mrf.mxu0
      %v1461 = vadd.f32 0.0, %v1460
      %1462 = vmatmul.f32.gmra.mxu0 %v1261
      %v1463 = vpop.f32.mrf.mxu0
      %v1464 = vadd.f32 0.0, %v1463
      %1465 = vmatmul.f32.gmra.mxu0 %v1264
      %v1466 = vpop.f32.mrf.mxu0
      %v1467 = vadd.f32 0.0, %v1466
      %1468 = vmatmul.f32.gmra.mxu0 %v1267
      %v1469 = vpop.f32.mrf.mxu0
      %v1470 = vadd.f32 0.0, %v1469
      %1471 = vmatmul.f32.gmra.mxu0 %v1270
      %v1472 = vpop.f32.mrf.mxu0
      %v1473 = vadd.f32 0.0, %v1472
      %1474 = vmatmul.f32.gmra.mxu0 %v1273
      %v1475 = vpop.f32.mrf.mxu0
      %v1476 = vadd.f32 0.0, %v1475
      %1477 = vmatmul.f32.gmra.mxu0 %v1276
      %v1478 = vpop.f32.mrf.mxu0
      %v1479 = vadd.f32 0.0, %v1478
      %1480 = vmatmul.f32.gmra.mxu0 %v1279
      %v1481 = vpop.f32.mrf.mxu0
      %v1482 = vadd.f32 0.0, %v1481
      %1483 = vmatmul.f32.gmra.mxu0 %v1282
      %v1484 = vpop.f32.mrf.mxu0
      %v1485 = vadd.f32 0.0, %v1484
      %1486 = vmatmul.f32.gmra.mxu0 %v1285
      %v1487 = vpop.f32.mrf.mxu0
      %v1488 = vadd.f32 0.0, %v1487
      %1489 = vmatmul.f32.gmra.mxu0 %v1288
      %v1490 = vpop.f32.mrf.mxu0
      %v1491 = vadd.f32 0.0, %v1490
      %1492 = vmatmul.f32.gmra.mxu0 %v1291
      %v1493 = vpop.f32.mrf.mxu0
      %v1494 = vadd.f32 0.0, %v1493
      %1495 = vmatmul.f32.gmra.mxu0 %v1294
      %v1496 = vpop.f32.mrf.mxu0
      %v1497 = vadd.f32 0.0, %v1496
      %1498 = vmatmul.f32.gmra.mxu0 %v1297
      %v1499 = vpop.f32.mrf.mxu0
      %v1500 = vadd.f32 0.0, %v1499
      %1501 = vmatmul.f32.gmra.mxu0 %v1300
      %v1502 = vpop.f32.mrf.mxu0
      %v1503 = vadd.f32 0.0, %v1502
      %1504 = vmatmul.f32.gmra.mxu0 %v1303
      %v1505 = vpop.f32.mrf.mxu0
      %v1506 = vadd.f32 0.0, %v1505
      %1507 = vmatmul.f32.gmra.mxu0 %v1306
      %v1508 = vpop.f32.mrf.mxu0
      %v1509 = vadd.f32 0.0, %v1508
      %1510 = vmatmul.f32.gmra.mxu0 %v1309
      %v1511 = vpop.f32.mrf.mxu0
      %v1512 = vadd.f32 0.0, %v1511
      %1513 = vmatmul.f32.gmra.mxu0 %v1312
      %v1514 = vpop.f32.mrf.mxu0
      %v1515 = vadd.f32 0.0, %v1514
      %1516 = vmatmul.f32.gmra.mxu0 %v1315
      %v1517 = vpop.f32.mrf.mxu0
      %v1518 = vadd.f32 0.0, %v1517
      %1519 = vmatmul.f32.gmra.mxu0 %v1318
      %v1520 = vpop.f32.mrf.mxu0
      %v1521 = vadd.f32 0.0, %v1520
      %1522 = vmatmul.f32.gmra.mxu0 %v1321
      %v1523 = vpop.f32.mrf.mxu0
      %v1524 = vadd.f32 0.0, %v1523
      %1525 = vmatmul.f32.gmra.mxu0 %v1324
      %v1526 = vpop.f32.mrf.mxu0
      %v1527 = vadd.f32 0.0, %v1526
      %1528 = vmatmul.f32.gmra.mxu0 %v1327
      %v1529 = vpop.f32.mrf.mxu0
      %v1530 = vadd.f32 0.0, %v1529
      %1531 = vmatmul.f32.gmra.mxu0 %v1330
      %v1532 = vpop.f32.mrf.mxu0
      %v1533 = vadd.f32 0.0, %v1532
      %1534 = vdwg.mxu0
      %v1536 = vsel %vm1145, %v1070, 0
      %v1539 = vsel %vm1145, %v1071, 0
      %v1542 = vsel %vm1145, %v1072, 0
      %1544 = vmatpush.msra.mxu0 0.0
      %1545 = vmatpush.msra.mxu0 0.0
      %1546 = vmatpush.msra.mxu0 0.0
      %1547 = vmatpush.msra.mxu0 0.0
      %1548 = vmatpush.msra.mxu0 0.0
      %1549 = vmatpush.msra.mxu0 0.0
      %1550 = vmatpush.msra.mxu0 0.0
      %1551 = vmatpush.msra.mxu0 0.0
      %1552 = vmatpush.msra.mxu0 0.0
      %1553 = vmatpush.msra.mxu0 0.0
      %1554 = vmatpush.msra.mxu0 0.0
      %1555 = vmatpush.msra.mxu0 0.0
      %1556 = vmatpush.msra.mxu0 0.0
      %1557 = vmatpush.msra.mxu0 %v1140
      %1558 = vmatpush.msra.mxu0 %v1139
      %1559 = vmatpush.msra.mxu0 %v1138
      %1560 = vmatmul.f32.gmra.mxu0 %v1536
      %v1561 = vpop.f32.mrf.mxu0
      %v1562 = vadd.f32 %v1350, %v1561
      %1563 = vmatmul.f32.gmra.mxu0 %v1539
      %v1564 = vpop.f32.mrf.mxu0
      %v1565 = vadd.f32 %v1353, %v1564
      %1566 = vmatmul.f32.gmra.mxu0 %v1542
      %v1567 = vpop.f32.mrf.mxu0
      %v1568 = vadd.f32 %v1356, %v1567
      %1569 = vmatmul.f32.gmra.mxu0 %v1147
      %v1570 = vpop.f32.mrf.mxu0
      %v1571 = vadd.f32 %v1359, %v1570
      %1572 = vmatmul.f32.gmra.mxu0 %v1150
      %v1573 = vpop.f32.mrf.mxu0
      %v1574 = vadd.f32 %v1362, %v1573
      %1575 = vmatmul.f32.gmra.mxu0 %v1153
      %v1576 = vpop.f32.mrf.mxu0
      %v1577 = vadd.f32 %v1365, %v1576
      %1578 = vmatmul.f32.gmra.mxu0 %v1156
      %v1579 = vpop.f32.mrf.mxu0
      %v1580 = vadd.f32 %v1368, %v1579
      %1581 = vmatmul.f32.gmra.mxu0 %v1159
      %v1582 = vpop.f32.mrf.mxu0
      %v1583 = vadd.f32 %v1371, %v1582
      %1584 = vmatmul.f32.gmra.mxu0 %v1162
      %v1585 = vpop.f32.mrf.mxu0
      %v1586 = vadd.f32 %v1374, %v1585
      %1587 = vmatmul.f32.gmra.mxu0 %v1165
      %v1588 = vpop.f32.mrf.mxu0
      %v1589 = vadd.f32 %v1377, %v1588
      %1590 = vmatmul.f32.gmra.mxu0 %v1168
      %v1591 = vpop.f32.mrf.mxu0
      %v1592 = vadd.f32 %v1380, %v1591
      %1593 = vmatmul.f32.gmra.mxu0 %v1171
      %v1594 = vpop.f32.mrf.mxu0
      %v1595 = vadd.f32 %v1383, %v1594
      %1596 = vmatmul.f32.gmra.mxu0 %v1174
      %v1597 = vpop.f32.mrf.mxu0
      %v1598 = vadd.f32 %v1386, %v1597
      %1599 = vmatmul.f32.gmra.mxu0 %v1177
      %v1600 = vpop.f32.mrf.mxu0
      %v1601 = vadd.f32 %v1389, %v1600
      %1602 = vmatmul.f32.gmra.mxu0 %v1180
      %v1603 = vpop.f32.mrf.mxu0
      %v1604 = vadd.f32 %v1392, %v1603
      %1605 = vmatmul.f32.gmra.mxu0 %v1183
      %v1606 = vpop.f32.mrf.mxu0
      %v1607 = vadd.f32 %v1395, %v1606
      %1608 = vmatmul.f32.gmra.mxu0 %v1186
      %v1609 = vpop.f32.mrf.mxu0
      %v1610 = vadd.f32 %v1398, %v1609
      %1611 = vmatmul.f32.gmra.mxu0 %v1189
      %v1612 = vpop.f32.mrf.mxu0
      %v1613 = vadd.f32 %v1401, %v1612
      %1614 = vmatmul.f32.gmra.mxu0 %v1192
      %v1615 = vpop.f32.mrf.mxu0
      %v1616 = vadd.f32 %v1404, %v1615
      %1617 = vmatmul.f32.gmra.mxu0 %v1195
      %v1618 = vpop.f32.mrf.mxu0
      %v1619 = vadd.f32 %v1407, %v1618
      %1620 = vmatmul.f32.gmra.mxu0 %v1198
      %v1621 = vpop.f32.mrf.mxu0
      %v1622 = vadd.f32 %v1410, %v1621
      %1623 = vmatmul.f32.gmra.mxu0 %v1201
      %v1624 = vpop.f32.mrf.mxu0
      %v1625 = vadd.f32 %v1413, %v1624
      %1626 = vmatmul.f32.gmra.mxu0 %v1204
      %v1627 = vpop.f32.mrf.mxu0
      %v1628 = vadd.f32 %v1416, %v1627
      %1629 = vmatmul.f32.gmra.mxu0 %v1207
      %v1630 = vpop.f32.mrf.mxu0
      %v1631 = vadd.f32 %v1419, %v1630
      %1632 = vmatmul.f32.gmra.mxu0 %v1210
      %v1633 = vpop.f32.mrf.mxu0
      %v1634 = vadd.f32 %v1422, %v1633
      %1635 = vmatmul.f32.gmra.mxu0 %v1213
      %v1636 = vpop.f32.mrf.mxu0
      %v1637 = vadd.f32 %v1425, %v1636
      %1638 = vmatmul.f32.gmra.mxu0 %v1216
      %v1639 = vpop.f32.mrf.mxu0
      %v1640 = vadd.f32 %v1428, %v1639
      %1641 = vmatmul.f32.gmra.mxu0 %v1219
      %v1642 = vpop.f32.mrf.mxu0
      %v1643 = vadd.f32 %v1431, %v1642
      %1644 = vmatmul.f32.gmra.mxu0 %v1222
      %v1645 = vpop.f32.mrf.mxu0
      %v1646 = vadd.f32 %v1434, %v1645
      %1647 = vmatmul.f32.gmra.mxu0 %v1225
      %v1648 = vpop.f32.mrf.mxu0
      %v1649 = vadd.f32 %v1437, %v1648
      %1650 = vmatmul.f32.gmra.mxu0 %v1228
      %v1651 = vpop.f32.mrf.mxu0
      %v1652 = vadd.f32 %v1440, %v1651
      %1653 = vmatmul.f32.gmra.mxu0 %v1231
      %v1654 = vpop.f32.mrf.mxu0
      %v1655 = vadd.f32 %v1443, %v1654
      %1656 = vmatmul.f32.gmra.mxu0 %v1234
      %v1657 = vpop.f32.mrf.mxu0
      %v1658 = vadd.f32 %v1446, %v1657
      %1659 = vmatmul.f32.gmra.mxu0 %v1237
      %v1660 = vpop.f32.mrf.mxu0
      %v1661 = vadd.f32 %v1449, %v1660
      %1662 = vmatmul.f32.gmra.mxu0 %v1240
      %v1663 = vpop.f32.mrf.mxu0
      %v1664 = vadd.f32 %v1452, %v1663
      %1665 = vmatmul.f32.gmra.mxu0 %v1243
      %v1666 = vpop.f32.mrf.mxu0
      %v1667 = vadd.f32 %v1455, %v1666
      %1668 = vmatmul.f32.gmra.mxu0 %v1246
      %v1669 = vpop.f32.mrf.mxu0
      %v1670 = vadd.f32 %v1458, %v1669
      %1671 = vmatmul.f32.gmra.mxu0 %v1249
      %v1672 = vpop.f32.mrf.mxu0
      %v1673 = vadd.f32 %v1461, %v1672
      %1674 = vmatmul.f32.gmra.mxu0 %v1252
      %v1675 = vpop.f32.mrf.mxu0
      %v1676 = vadd.f32 %v1464, %v1675
      %1677 = vmatmul.f32.gmra.mxu0 %v1255
      %v1678 = vpop.f32.mrf.mxu0
      %v1679 = vadd.f32 %v1467, %v1678
      %1680 = vmatmul.f32.gmra.mxu0 %v1258
      %v1681 = vpop.f32.mrf.mxu0
      %v1682 = vadd.f32 %v1470, %v1681
      %1683 = vmatmul.f32.gmra.mxu0 %v1261
      %v1684 = vpop.f32.mrf.mxu0
      %v1685 = vadd.f32 %v1473, %v1684
      %1686 = vmatmul.f32.gmra.mxu0 %v1264
      %v1687 = vpop.f32.mrf.mxu0
      %v1688 = vadd.f32 %v1476, %v1687
      %1689 = vmatmul.f32.gmra.mxu0 %v1267
      %v1690 = vpop.f32.mrf.mxu0
      %v1691 = vadd.f32 %v1479, %v1690
      %1692 = vmatmul.f32.gmra.mxu0 %v1270
      %v1693 = vpop.f32.mrf.mxu0
      %v1694 = vadd.f32 %v1482, %v1693
      %1695 = vmatmul.f32.gmra.mxu0 %v1273
      %v1696 = vpop.f32.mrf.mxu0
      %v1697 = vadd.f32 %v1485, %v1696
      %1698 = vmatmul.f32.gmra.mxu0 %v1276
      %v1699 = vpop.f32.mrf.mxu0
      %v1700 = vadd.f32 %v1488, %v1699
      %1701 = vmatmul.f32.gmra.mxu0 %v1279
      %v1702 = vpop.f32.mrf.mxu0
      %v1703 = vadd.f32 %v1491, %v1702
      %1704 = vmatmul.f32.gmra.mxu0 %v1282
      %v1705 = vpop.f32.mrf.mxu0
      %v1706 = vadd.f32 %v1494, %v1705
      %1707 = vmatmul.f32.gmra.mxu0 %v1285
      %v1708 = vpop.f32.mrf.mxu0
      %v1709 = vadd.f32 %v1497, %v1708
      %1710 = vmatmul.f32.gmra.mxu0 %v1288
      %v1711 = vpop.f32.mrf.mxu0
      %v1712 = vadd.f32 %v1500, %v1711
      %1713 = vmatmul.f32.gmra.mxu0 %v1291
      %v1714 = vpop.f32.mrf.mxu0
      %v1715 = vadd.f32 %v1503, %v1714
      %1716 = vmatmul.f32.gmra.mxu0 %v1294
      %v1717 = vpop.f32.mrf.mxu0
      %v1718 = vadd.f32 %v1506, %v1717
      %1719 = vmatmul.f32.gmra.mxu0 %v1297
      %v1720 = vpop.f32.mrf.mxu0
      %v1721 = vadd.f32 %v1509, %v1720
      %1722 = vmatmul.f32.gmra.mxu0 %v1300
      %v1723 = vpop.f32.mrf.mxu0
      %v1724 = vadd.f32 %v1512, %v1723
      %1725 = vmatmul.f32.gmra.mxu0 %v1303
      %v1726 = vpop.f32.mrf.mxu0
      %v1727 = vadd.f32 %v1515, %v1726
      %1728 = vmatmul.f32.gmra.mxu0 %v1306
      %v1729 = vpop.f32.mrf.mxu0
      %v1730 = vadd.f32 %v1518, %v1729
      %1731 = vmatmul.f32.gmra.mxu0 %v1309
      %v1732 = vpop.f32.mrf.mxu0
      %v1733 = vadd.f32 %v1521, %v1732
      %1734 = vmatmul.f32.gmra.mxu0 %v1312
      %v1735 = vpop.f32.mrf.mxu0
      %v1736 = vadd.f32 %v1524, %v1735
      %1737 = vmatmul.f32.gmra.mxu0 %v1315
      %v1738 = vpop.f32.mrf.mxu0
      %v1739 = vadd.f32 %v1527, %v1738
      %1740 = vmatmul.f32.gmra.mxu0 %v1318
      %v1741 = vpop.f32.mrf.mxu0
      %v1742 = vadd.f32 %v1530, %v1741
      %1743 = vmatmul.f32.gmra.mxu0 %v1321
      %v1744 = vpop.f32.mrf.mxu0
      %v1745 = vadd.f32 %v1533, %v1744
      %1746 = vdwg.mxu0
      %s1747 = scalar_lea.vmem %s1, 48
      %v1748 = vld [vmem:[%s1747] sm:$0xff]
      %v1749 = vld [vmem:[%s1747 + $0x8] sm:$0xff]
      %v1750 = vld [vmem:[%s1747 + $0x10] sm:$0xff]
      %v1752 = vsel %vm1145, %v1135, 0
      %v1755 = vsel %vm1145, %v1136, 0
      %v1758 = vsel %vm1145, %v1137, 0
      %1760 = vmatpush.msra.mxu0 0.0
      %1761 = vmatpush.msra.mxu0 0.0
      %1762 = vmatpush.msra.mxu0 0.0
      %1763 = vmatpush.msra.mxu0 0.0
      %1764 = vmatpush.msra.mxu0 0.0
      %1765 = vmatpush.msra.mxu0 0.0
      %1766 = vmatpush.msra.mxu0 0.0
      %1767 = vmatpush.msra.mxu0 0.0
      %1768 = vmatpush.msra.mxu0 0.0
      %1769 = vmatpush.msra.mxu0 0.0
      %1770 = vmatpush.msra.mxu0 0.0
      %1771 = vmatpush.msra.mxu0 0.0
      %1772 = vmatpush.msra.mxu0 0.0
      %1773 = vmatpush.msra.mxu0 %v1750
      %1774 = vmatpush.msra.mxu0 %v1749
      %1775 = vmatpush.msra.mxu0 %v1748
      %1776 = vmatmul.f32.gmra.mxu0 %v1156
      %v1777 = vpop.f32.mrf.mxu0
      %v1778 = vadd.f32 0.0, %v1777
      %1779 = vmatmul.f32.gmra.mxu0 %v1159
      %v1780 = vpop.f32.mrf.mxu0
      %v1781 = vadd.f32 0.0, %v1780
      %1782 = vmatmul.f32.gmra.mxu0 %v1162
      %v1783 = vpop.f32.mrf.mxu0
      %v1784 = vadd.f32 0.0, %v1783
      %1785 = vmatmul.f32.gmra.mxu0 %v1165
      %v1786 = vpop.f32.mrf.mxu0
      %v1787 = vadd.f32 0.0, %v1786
      %1788 = vmatmul.f32.gmra.mxu0 %v1168
      %v1789 = vpop.f32.mrf.mxu0
      %v1790 = vadd.f32 0.0, %v1789
      %1791 = vmatmul.f32.gmra.mxu0 %v1171
      %v1792 = vpop.f32.mrf.mxu0
      %v1793 = vadd.f32 0.0, %v1792
      %1794 = vmatmul.f32.gmra.mxu0 %v1174
      %v1795 = vpop.f32.mrf.mxu0
      %v1796 = vadd.f32 0.0, %v1795
      %1797 = vmatmul.f32.gmra.mxu0 %v1177
      %v1798 = vpop.f32.mrf.mxu0
      %v1799 = vadd.f32 0.0, %v1798
      %1800 = vmatmul.f32.gmra.mxu0 %v1180
      %v1801 = vpop.f32.mrf.mxu0
      %v1802 = vadd.f32 0.0, %v1801
      %1803 = vmatmul.f32.gmra.mxu0 %v1183
      %v1804 = vpop.f32.mrf.mxu0
      %v1805 = vadd.f32 0.0, %v1804
      %1806 = vmatmul.f32.gmra.mxu0 %v1186
      %v1807 = vpop.f32.mrf.mxu0
      %v1808 = vadd.f32 0.0, %v1807
      %1809 = vmatmul.f32.gmra.mxu0 %v1189
      %v1810 = vpop.f32.mrf.mxu0
      %v1811 = vadd.f32 0.0, %v1810
      %1812 = vmatmul.f32.gmra.mxu0 %v1192
      %v1813 = vpop.f32.mrf.mxu0
      %v1814 = vadd.f32 0.0, %v1813
      %1815 = vmatmul.f32.gmra.mxu0 %v1195
      %v1816 = vpop.f32.mrf.mxu0
      %v1817 = vadd.f32 0.0, %v1816
      %1818 = vmatmul.f32.gmra.mxu0 %v1198
      %v1819 = vpop.f32.mrf.mxu0
      %v1820 = vadd.f32 0.0, %v1819
      %1821 = vmatmul.f32.gmra.mxu0 %v1201
      %v1822 = vpop.f32.mrf.mxu0
      %v1823 = vadd.f32 0.0, %v1822
      %1824 = vmatmul.f32.gmra.mxu0 %v1204
      %v1825 = vpop.f32.mrf.mxu0
      %v1826 = vadd.f32 0.0, %v1825
      %1827 = vmatmul.f32.gmra.mxu0 %v1207
      %v1828 = vpop.f32.mrf.mxu0
      %v1829 = vadd.f32 0.0, %v1828
      %1830 = vmatmul.f32.gmra.mxu0 %v1210
      %v1831 = vpop.f32.mrf.mxu0
      %v1832 = vadd.f32 0.0, %v1831
      %1833 = vmatmul.f32.gmra.mxu0 %v1213
      %v1834 = vpop.f32.mrf.mxu0
      %v1835 = vadd.f32 0.0, %v1834
      %1836 = vmatmul.f32.gmra.mxu0 %v1216
      %v1837 = vpop.f32.mrf.mxu0
      %v1838 = vadd.f32 0.0, %v1837
      %1839 = vmatmul.f32.gmra.mxu0 %v1219
      %v1840 = vpop.f32.mrf.mxu0
      %v1841 = vadd.f32 0.0, %v1840
      %1842 = vmatmul.f32.gmra.mxu0 %v1222
      %v1843 = vpop.f32.mrf.mxu0
      %v1844 = vadd.f32 0.0, %v1843
      %1845 = vmatmul.f32.gmra.mxu0 %v1225
      %v1846 = vpop.f32.mrf.mxu0
      %v1847 = vadd.f32 0.0, %v1846
      %1848 = vmatmul.f32.gmra.mxu0 %v1228
      %v1849 = vpop.f32.mrf.mxu0
      %v1850 = vadd.f32 0.0, %v1849
      %1851 = vmatmul.f32.gmra.mxu0 %v1231
      %v1852 = vpop.f32.mrf.mxu0
      %v1853 = vadd.f32 0.0, %v1852
      %1854 = vmatmul.f32.gmra.mxu0 %v1234
      %v1855 = vpop.f32.mrf.mxu0
      %v1856 = vadd.f32 0.0, %v1855
      %1857 = vmatmul.f32.gmra.mxu0 %v1237
      %v1858 = vpop.f32.mrf.mxu0
      %v1859 = vadd.f32 0.0, %v1858
      %1860 = vmatmul.f32.gmra.mxu0 %v1240
      %v1861 = vpop.f32.mrf.mxu0
      %v1862 = vadd.f32 0.0, %v1861
      %1863 = vmatmul.f32.gmra.mxu0 %v1243
      %v1864 = vpop.f32.mrf.mxu0
      %v1865 = vadd.f32 0.0, %v1864
      %1866 = vmatmul.f32.gmra.mxu0 %v1246
      %v1867 = vpop.f32.mrf.mxu0
      %v1868 = vadd.f32 0.0, %v1867
      %1869 = vmatmul.f32.gmra.mxu0 %v1249
      %v1870 = vpop.f32.mrf.mxu0
      %v1871 = vadd.f32 0.0, %v1870
      %1872 = vmatmul.f32.gmra.mxu0 %v1252
      %v1873 = vpop.f32.mrf.mxu0
      %v1874 = vadd.f32 0.0, %v1873
      %1875 = vmatmul.f32.gmra.mxu0 %v1255
      %v1876 = vpop.f32.mrf.mxu0
      %v1877 = vadd.f32 0.0, %v1876
      %1878 = vmatmul.f32.gmra.mxu0 %v1258
      %v1879 = vpop.f32.mrf.mxu0
      %v1880 = vadd.f32 0.0, %v1879
      %1881 = vmatmul.f32.gmra.mxu0 %v1261
      %v1882 = vpop.f32.mrf.mxu0
      %v1883 = vadd.f32 0.0, %v1882
      %1884 = vmatmul.f32.gmra.mxu0 %v1264
      %v1885 = vpop.f32.mrf.mxu0
      %v1886 = vadd.f32 0.0, %v1885
      %1887 = vmatmul.f32.gmra.mxu0 %v1267
      %v1888 = vpop.f32.mrf.mxu0
      %v1889 = vadd.f32 0.0, %v1888
      %1890 = vmatmul.f32.gmra.mxu0 %v1270
      %v1891 = vpop.f32.mrf.mxu0
      %v1892 = vadd.f32 0.0, %v1891
      %1893 = vmatmul.f32.gmra.mxu0 %v1273
      %v1894 = vpop.f32.mrf.mxu0
      %v1895 = vadd.f32 0.0, %v1894
      %1896 = vmatmul.f32.gmra.mxu0 %v1276
      %v1897 = vpop.f32.mrf.mxu0
      %v1898 = vadd.f32 0.0, %v1897
      %1899 = vmatmul.f32.gmra.mxu0 %v1279
      %v1900 = vpop.f32.mrf.mxu0
      %v1901 = vadd.f32 0.0, %v1900
      %1902 = vmatmul.f32.gmra.mxu0 %v1282
      %v1903 = vpop.f32.mrf.mxu0
      %v1904 = vadd.f32 0.0, %v1903
      %1905 = vmatmul.f32.gmra.mxu0 %v1285
      %v1906 = vpop.f32.mrf.mxu0
      %v1907 = vadd.f32 0.0, %v1906
      %1908 = vmatmul.f32.gmra.mxu0 %v1288
      %v1909 = vpop.f32.mrf.mxu0
      %v1910 = vadd.f32 0.0, %v1909
      %1911 = vmatmul.f32.gmra.mxu0 %v1291
      %v1912 = vpop.f32.mrf.mxu0
      %v1913 = vadd.f32 0.0, %v1912
      %1914 = vmatmul.f32.gmra.mxu0 %v1294
      %v1915 = vpop.f32.mrf.mxu0
      %v1916 = vadd.f32 0.0, %v1915
      %1917 = vmatmul.f32.gmra.mxu0 %v1297
      %v1918 = vpop.f32.mrf.mxu0
      %v1919 = vadd.f32 0.0, %v1918
      %1920 = vmatmul.f32.gmra.mxu0 %v1300
      %v1921 = vpop.f32.mrf.mxu0
      %v1922 = vadd.f32 0.0, %v1921
      %1923 = vmatmul.f32.gmra.mxu0 %v1303
      %v1924 = vpop.f32.mrf.mxu0
      %v1925 = vadd.f32 0.0, %v1924
      %1926 = vmatmul.f32.gmra.mxu0 %v1306
      %v1927 = vpop.f32.mrf.mxu0
      %v1928 = vadd.f32 0.0, %v1927
      %1929 = vmatmul.f32.gmra.mxu0 %v1309
      %v1930 = vpop.f32.mrf.mxu0
      %v1931 = vadd.f32 0.0, %v1930
      %1932 = vmatmul.f32.gmra.mxu0 %v1312
      %v1933 = vpop.f32.mrf.mxu0
      %v1934 = vadd.f32 0.0, %v1933
      %1935 = vmatmul.f32.gmra.mxu0 %v1315
      %v1936 = vpop.f32.mrf.mxu0
      %v1937 = vadd.f32 0.0, %v1936
      %1938 = vmatmul.f32.gmra.mxu0 %v1318
      %v1939 = vpop.f32.mrf.mxu0
      %v1940 = vadd.f32 0.0, %v1939
      %1941 = vmatmul.f32.gmra.mxu0 %v1321
      %v1942 = vpop.f32.mrf.mxu0
      %v1943 = vadd.f32 0.0, %v1942
      %1944 = vmatmul.f32.gmra.mxu0 %v1324
      %v1945 = vpop.f32.mrf.mxu0
      %v1946 = vadd.f32 0.0, %v1945
      %1947 = vmatmul.f32.gmra.mxu0 %v1327
      %v1948 = vpop.f32.mrf.mxu0
      %v1949 = vadd.f32 0.0, %v1948
      %1950 = vmatmul.f32.gmra.mxu0 %v1330
      %v1951 = vpop.f32.mrf.mxu0
      %v1952 = vadd.f32 0.0, %v1951
      %1953 = vmatmul.f32.gmra.mxu0 %v1752
      %v1954 = vpop.f32.mrf.mxu0
      %v1955 = vadd.f32 0.0, %v1954
      %1956 = vmatmul.f32.gmra.mxu0 %v1755
      %v1957 = vpop.f32.mrf.mxu0
      %v1958 = vadd.f32 0.0, %v1957
      %1959 = vmatmul.f32.gmra.mxu0 %v1758
      %v1960 = vpop.f32.mrf.mxu0
      %v1961 = vadd.f32 0.0, %v1960
      %1962 = vdwg.mxu0
      %v1963 = vadd.f32 %v1562, %v1778
      %v1964 = vadd.f32 %v1565, %v1781
      %v1965 = vadd.f32 %v1568, %v1784
      %v1966 = vadd.f32 %v1571, %v1787
      %v1967 = vadd.f32 %v1574, %v1790
      %v1968 = vadd.f32 %v1577, %v1793
      %v1969 = vadd.f32 %v1580, %v1796
      %v1970 = vadd.f32 %v1583, %v1799
      %v1971 = vadd.f32 %v1586, %v1802
      %v1972 = vadd.f32 %v1589, %v1805
      %v1973 = vadd.f32 %v1592, %v1808
      %v1974 = vadd.f32 %v1595, %v1811
      %v1975 = vadd.f32 %v1598, %v1814
      %v1976 = vadd.f32 %v1601, %v1817
      %v1977 = vadd.f32 %v1604, %v1820
      %v1978 = vadd.f32 %v1607, %v1823
      %v1979 = vadd.f32 %v1610, %v1826
      %v1980 = vadd.f32 %v1613, %v1829
      %v1981 = vadd.f32 %v1616, %v1832
      %v1982 = vadd.f32 %v1619, %v1835
      %v1983 = vadd.f32 %v1622, %v1838
      %v1984 = vadd.f32 %v1625, %v1841
      %v1985 = vadd.f32 %v1628, %v1844
      %v1986 = vadd.f32 %v1631, %v1847
      %v1987 = vadd.f32 %v1634, %v1850
      %v1988 = vadd.f32 %v1637, %v1853
      %v1989 = vadd.f32 %v1640, %v1856
      %v1990 = vadd.f32 %v1643, %v1859
      %v1991 = vadd.f32 %v1646, %v1862
      %v1992 = vadd.f32 %v1649, %v1865
      %v1993 = vadd.f32 %v1652, %v1868
      %v1994 = vadd.f32 %v1655, %v1871
      %v1995 = vadd.f32 %v1658, %v1874
      %v1996 = vadd.f32 %v1661, %v1877
      %v1997 = vadd.f32 %v1664, %v1880
      %v1998 = vadd.f32 %v1667, %v1883
      %v1999 = vadd.f32 %v1670, %v1886
      %v2000 = vadd.f32 %v1673, %v1889
      %v2001 = vadd.f32 %v1676, %v1892
      %v2002 = vadd.f32 %v1679, %v1895
      %v2003 = vadd.f32 %v1682, %v1898
      %v2004 = vadd.f32 %v1685, %v1901
      %v2005 = vadd.f32 %v1688, %v1904
      %v2006 = vadd.f32 %v1691, %v1907
      %v2007 = vadd.f32 %v1694, %v1910
      %v2008 = vadd.f32 %v1697, %v1913
      %v2009 = vadd.f32 %v1700, %v1916
      %v2010 = vadd.f32 %v1703, %v1919
      %v2011 = vadd.f32 %v1706, %v1922
      %v2012 = vadd.f32 %v1709, %v1925
      %v2013 = vadd.f32 %v1712, %v1928
      %v2014 = vadd.f32 %v1715, %v1931
      %v2015 = vadd.f32 %v1718, %v1934
      %v2016 = vadd.f32 %v1721, %v1937
      %v2017 = vadd.f32 %v1724, %v1940
      %v2018 = vadd.f32 %v1727, %v1943
      %v2019 = vadd.f32 %v1730, %v1946
      %v2020 = vadd.f32 %v1733, %v1949
      %v2021 = vadd.f32 %v1736, %v1952
      %v2022 = vadd.f32 %v1739, %v1955
      %v2023 = vadd.f32 %v1742, %v1958
      %v2024 = vadd.f32 %v1745, %v1961
      %v2025 = vld [vmem:[%s2] sm:$0x1]
      %v2027 = vperm.slane %v2025, 0
      %v2029 = vadd.f32 %v1963, %v2027
      %v2030 = vadd.f32 %v1964, %v2027
      %v2031 = vadd.f32 %v1965, %v2027
      %v2032 = vadd.f32 %v1966, %v2027
      %v2033 = vadd.f32 %v1967, %v2027
      %v2034 = vadd.f32 %v1968, %v2027
      %v2035 = vadd.f32 %v1969, %v2027
      %v2036 = vadd.f32 %v1970, %v2027
      %v2037 = vadd.f32 %v1971, %v2027
      %v2038 = vadd.f32 %v1972, %v2027
      %v2039 = vadd.f32 %v1973, %v2027
      %v2040 = vadd.f32 %v1974, %v2027
      %v2041 = vadd.f32 %v1975, %v2027
      %v2042 = vadd.f32 %v1976, %v2027
      %v2043 = vadd.f32 %v1977, %v2027
      %v2044 = vadd.f32 %v1978, %v2027
      %v2045 = vadd.f32 %v1979, %v2027
      %v2046 = vadd.f32 %v1980, %v2027
      %v2047 = vadd.f32 %v1981, %v2027
      %v2048 = vadd.f32 %v1982, %v2027
      %v2049 = vadd.f32 %v1983, %v2027
      %v2050 = vadd.f32 %v1984, %v2027
      %v2051 = vadd.f32 %v1985, %v2027
      %v2052 = vadd.f32 %v1986, %v2027
      %v2053 = vadd.f32 %v1987, %v2027
      %v2054 = vadd.f32 %v1988, %v2027
      %v2055 = vadd.f32 %v1989, %v2027
      %v2056 = vadd.f32 %v1990, %v2027
      %v2057 = vadd.f32 %v1991, %v2027
      %v2058 = vadd.f32 %v1992, %v2027
      %v2059 = vadd.f32 %v1993, %v2027
      %v2060 = vadd.f32 %v1994, %v2027
      %v2061 = vadd.f32 %v1995, %v2027
      %v2062 = vadd.f32 %v1996, %v2027
      %v2063 = vadd.f32 %v1997, %v2027
      %v2064 = vadd.f32 %v1998, %v2027
      %v2065 = vadd.f32 %v1999, %v2027
      %v2066 = vadd.f32 %v2000, %v2027
      %v2067 = vadd.f32 %v2001, %v2027
      %v2068 = vadd.f32 %v2002, %v2027
      %v2069 = vadd.f32 %v2003, %v2027
      %v2070 = vadd.f32 %v2004, %v2027
      %v2071 = vadd.f32 %v2005, %v2027
      %v2072 = vadd.f32 %v2006, %v2027
      %v2073 = vadd.f32 %v2007, %v2027
      %v2074 = vadd.f32 %v2008, %v2027
      %v2075 = vadd.f32 %v2009, %v2027
      %v2076 = vadd.f32 %v2010, %v2027
      %v2077 = vadd.f32 %v2011, %v2027
      %v2078 = vadd.f32 %v2012, %v2027
      %v2079 = vadd.f32 %v2013, %v2027
      %v2080 = vadd.f32 %v2014, %v2027
      %v2081 = vadd.f32 %v2015, %v2027
      %v2082 = vadd.f32 %v2016, %v2027
      %v2083 = vadd.f32 %v2017, %v2027
      %v2084 = vadd.f32 %v2018, %v2027
      %v2085 = vadd.f32 %v2019, %v2027
      %v2086 = vadd.f32 %v2020, %v2027
      %v2087 = vadd.f32 %v2021, %v2027
      %v2088 = vadd.f32 %v2022, %v2027
      %v2089 = vadd.f32 %v2023, %v2027
      %v2090 = vadd.f32 %v2024, %v2027
      %v2091 = vmax.f32 %v2029, 0.0
      %v2092 = vmax.f32 %v2030, 0.0
      %v2093 = vmax.f32 %v2031, 0.0
      %v2094 = vmax.f32 %v2032, 0.0
      %v2095 = vmax.f32 %v2033, 0.0
      %v2096 = vmax.f32 %v2034, 0.0
      %v2097 = vmax.f32 %v2035, 0.0
      %v2098 = vmax.f32 %v2036, 0.0
      %v2099 = vmax.f32 %v2037, 0.0
      %v2100 = vmax.f32 %v2038, 0.0
      %v2101 = vmax.f32 %v2039, 0.0
      %v2102 = vmax.f32 %v2040, 0.0
      %v2103 = vmax.f32 %v2041, 0.0
      %v2104 = vmax.f32 %v2042, 0.0
      %v2105 = vmax.f32 %v2043, 0.0
      %v2106 = vmax.f32 %v2044, 0.0
      %v2107 = vmax.f32 %v2045, 0.0
      %v2108 = vmax.f32 %v2046, 0.0
      %v2109 = vmax.f32 %v2047, 0.0
      %v2110 = vmax.f32 %v2048, 0.0
      %v2111 = vmax.f32 %v2049, 0.0
      %v2112 = vmax.f32 %v2050, 0.0
      %v2113 = vmax.f32 %v2051, 0.0
      %v2114 = vmax.f32 %v2052, 0.0
      %v2115 = vmax.f32 %v2053, 0.0
      %v2116 = vmax.f32 %v2054, 0.0
      %v2117 = vmax.f32 %v2055, 0.0
      %v2118 = vmax.f32 %v2056, 0.0
      %v2119 = vmax.f32 %v2057, 0.0
      %v2120 = vmax.f32 %v2058, 0.0
      %v2121 = vmax.f32 %v2059, 0.0
      %v2122 = vmax.f32 %v2060, 0.0
      %v2123 = vmax.f32 %v2061, 0.0
      %v2124 = vmax.f32 %v2062, 0.0
      %v2125 = vmax.f32 %v2063, 0.0
      %v2126 = vmax.f32 %v2064, 0.0
      %v2127 = vmax.f32 %v2065, 0.0
      %v2128 = vmax.f32 %v2066, 0.0
      %v2129 = vmax.f32 %v2067, 0.0
      %v2130 = vmax.f32 %v2068, 0.0
      %v2131 = vmax.f32 %v2069, 0.0
      %v2132 = vmax.f32 %v2070, 0.0
      %v2133 = vmax.f32 %v2071, 0.0
      %v2134 = vmax.f32 %v2072, 0.0
      %v2135 = vmax.f32 %v2073, 0.0
      %v2136 = vmax.f32 %v2074, 0.0
      %v2137 = vmax.f32 %v2075, 0.0
      %v2138 = vmax.f32 %v2076, 0.0
      %v2139 = vmax.f32 %v2077, 0.0
      %v2140 = vmax.f32 %v2078, 0.0
      %v2141 = vmax.f32 %v2079, 0.0
      %v2142 = vmax.f32 %v2080, 0.0
      %v2143 = vmax.f32 %v2081, 0.0
      %v2144 = vmax.f32 %v2082, 0.0
      %v2145 = vmax.f32 %v2083, 0.0
      %v2146 = vmax.f32 %v2084, 0.0
      %v2147 = vmax.f32 %v2085, 0.0
      %v2148 = vmax.f32 %v2086, 0.0
      %v2149 = vmax.f32 %v2087, 0.0
      %v2150 = vmax.f32 %v2088, 0.0
      %v2151 = vmax.f32 %v2089, 0.0
      %v2152 = vmax.f32 %v2090, 0.0
      %v2153 = vld [vmem:[%s3] sm:$0xff]
      %v2154 = vld [vmem:[%s3 + $0x8] sm:$0xff]
      %v2155 = vld [vmem:[%s3 + $0x10] sm:$0xff]
      %v2156 = vld [vmem:[%s3 + $0x18] sm:$0xff]
      %v2157 = vld [vmem:[%s3 + $0x20] sm:$0xff]
      %v2158 = vld [vmem:[%s3 + $0x28] sm:$0xff]
      %v2159 = vld [vmem:[%s3 + $0x30] sm:$0xff]
      %v2160 = vld [vmem:[%s3 + $0x38] sm:$0xff]
      %v2161 = vld [vmem:[%s3 + $0x40] sm:$0xff]
      %v2162 = vld [vmem:[%s3 + $0x48] sm:$0xff]
      %v2163 = vld [vmem:[%s3 + $0x50] sm:$0xff]
      %v2164 = vld [vmem:[%s3 + $0x58] sm:$0xff]
      %v2165 = vld [vmem:[%s3 + $0x60] sm:$0xff]
      %v2166 = vld [vmem:[%s3 + $0x68] sm:$0xff]
      %v2167 = vld [vmem:[%s3 + $0x70] sm:$0xff]
      %v2168 = vld [vmem:[%s3 + $0x78] sm:$0xff]
      %v2169 = vld [vmem:[%s3 + $0x80] sm:$0xff]
      %v2170 = vld [vmem:[%s3 + $0x88] sm:$0xff]
      %v2171 = vld [vmem:[%s3 + $0x90] sm:$0xff]
      %v2172 = vld [vmem:[%s3 + $0x98] sm:$0xff]
      %v2173 = vld [vmem:[%s3 + $0xa0] sm:$0xff]
      %v2174 = vld [vmem:[%s3 + $0xa8] sm:$0xff]
      %v2175 = vld [vmem:[%s3 + $0xb0] sm:$0xff]
      %v2176 = vld [vmem:[%s3 + $0xb8] sm:$0xff]
      %v2177 = vld [vmem:[%s3 + $0xc0] sm:$0xff]
      %v2178 = vld [vmem:[%s3 + $0xc8] sm:$0xff]
      %v2179 = vld [vmem:[%s3 + $0xd0] sm:$0xff]
      %v2180 = vld [vmem:[%s3 + $0xd8] sm:$0xff]
      %v2181 = vld [vmem:[%s3 + $0xe0] sm:$0xff]
      %v2182 = vld [vmem:[%s3 + $0xe8] sm:$0xff]
      %v2183 = vld [vmem:[%s3 + $0xf0] sm:$0xff]
      %v2184 = vld [vmem:[%s3 + $0xf8] sm:$0xff]
      %v2185 = vld [vmem:[%s3 + $0x100] sm:$0xff]
      %v2186 = vld [vmem:[%s3 + $0x108] sm:$0xff]
      %v2187 = vld [vmem:[%s3 + $0x110] sm:$0xff]
      %v2188 = vld [vmem:[%s3 + $0x118] sm:$0xff]
      %v2189 = vld [vmem:[%s3 + $0x120] sm:$0xff]
      %v2190 = vld [vmem:[%s3 + $0x128] sm:$0xff]
      %v2191 = vld [vmem:[%s3 + $0x130] sm:$0xff]
      %v2192 = vld [vmem:[%s3 + $0x138] sm:$0xff]
      %v2193 = vld [vmem:[%s3 + $0x140] sm:$0xff]
      %v2194 = vld [vmem:[%s3 + $0x148] sm:$0xff]
      %v2195 = vld [vmem:[%s3 + $0x150] sm:$0xff]
      %v2196 = vld [vmem:[%s3 + $0x158] sm:$0xff]
      %v2197 = vld [vmem:[%s3 + $0x160] sm:$0xff]
      %v2198 = vld [vmem:[%s3 + $0x168] sm:$0xff]
      %v2199 = vld [vmem:[%s3 + $0x170] sm:$0xff]
      %v2200 = vld [vmem:[%s3 + $0x178] sm:$0xff]
      %v2201 = vld [vmem:[%s3 + $0x180] sm:$0xff]
      %v2202 = vld [vmem:[%s3 + $0x188] sm:$0xff]
      %v2203 = vld [vmem:[%s3 + $0x190] sm:$0xff]
      %v2204 = vld [vmem:[%s3 + $0x198] sm:$0xff]
      %v2205 = vld [vmem:[%s3 + $0x1a0] sm:$0xff]
      %v2206 = vld [vmem:[%s3 + $0x1a8] sm:$0xff]
      %v2207 = vld [vmem:[%s3 + $0x1b0] sm:$0xff]
      %v2208 = vld [vmem:[%s3 + $0x1b8] sm:$0xff]
      %v2209 = vld [vmem:[%s3 + $0x1c0] sm:$0xff]
      %v2210 = vld [vmem:[%s3 + $0x1c8] sm:$0xff]
      %v2211 = vld [vmem:[%s3 + $0x1d0] sm:$0xff]
      %v2212 = vld [vmem:[%s3 + $0x1d8] sm:$0xff]
      %v2213 = vld [vmem:[%s3 + $0x1e0] sm:$0xff]
      %v2214 = vld [vmem:[%s3 + $0x1e8] sm:$0xff]
      %2216 = vset.pattern.permute.xlu0 0
      %2217 = vperm.xlu0 %2216, %v2153
      %v2218 = vpop.permute.xlu0 %2217
      %2221 = vset.pattern.permute.xlu0 0
      %2222 = vperm.xlu0 %2221, %v2154
      %v2223 = vpop.permute.xlu0 %2222
      %2226 = vset.pattern.permute.xlu0 0
      %2227 = vperm.xlu0 %2226, %v2155
      %v2228 = vpop.permute.xlu0 %2227
      %2231 = vset.pattern.permute.xlu0 0
      %2232 = vperm.xlu0 %2231, %v2156
      %v2233 = vpop.permute.xlu0 %2232
      %2236 = vset.pattern.permute.xlu0 0
      %2237 = vperm.xlu0 %2236, %v2157
      %v2238 = vpop.permute.xlu0 %2237
      %2241 = vset.pattern.permute.xlu0 0
      %2242 = vperm.xlu0 %2241, %v2158
      %v2243 = vpop.permute.xlu0 %2242
      %2246 = vset.pattern.permute.xlu0 0
      %2247 = vperm.xlu0 %2246, %v2159
      %v2248 = vpop.permute.xlu0 %2247
      %2251 = vset.pattern.permute.xlu0 0
      %2252 = vperm.xlu0 %2251, %v2160
      %v2253 = vpop.permute.xlu0 %2252
      %2256 = vset.pattern.permute.xlu0 0
      %2257 = vperm.xlu0 %2256, %v2161
      %v2258 = vpop.permute.xlu0 %2257
      %2261 = vset.pattern.permute.xlu0 0
      %2262 = vperm.xlu0 %2261, %v2162
      %v2263 = vpop.permute.xlu0 %2262
      %2266 = vset.pattern.permute.xlu0 0
      %2267 = vperm.xlu0 %2266, %v2163
      %v2268 = vpop.permute.xlu0 %2267
      %2271 = vset.pattern.permute.xlu0 0
      %2272 = vperm.xlu0 %2271, %v2164
      %v2273 = vpop.permute.xlu0 %2272
      %2276 = vset.pattern.permute.xlu0 0
      %2277 = vperm.xlu0 %2276, %v2165
      %v2278 = vpop.permute.xlu0 %2277
      %2281 = vset.pattern.permute.xlu0 0
      %2282 = vperm.xlu0 %2281, %v2166
      %v2283 = vpop.permute.xlu0 %2282
      %2286 = vset.pattern.permute.xlu0 0
      %2287 = vperm.xlu0 %2286, %v2167
      %v2288 = vpop.permute.xlu0 %2287
      %2291 = vset.pattern.permute.xlu0 0
      %2292 = vperm.xlu0 %2291, %v2168
      %v2293 = vpop.permute.xlu0 %2292
      %2296 = vset.pattern.permute.xlu0 0
      %2297 = vperm.xlu0 %2296, %v2169
      %v2298 = vpop.permute.xlu0 %2297
      %2301 = vset.pattern.permute.xlu0 0
      %2302 = vperm.xlu0 %2301, %v2170
      %v2303 = vpop.permute.xlu0 %2302
      %2306 = vset.pattern.permute.xlu0 0
      %2307 = vperm.xlu0 %2306, %v2171
      %v2308 = vpop.permute.xlu0 %2307
      %2311 = vset.pattern.permute.xlu0 0
      %2312 = vperm.xlu0 %2311, %v2172
      %v2313 = vpop.permute.xlu0 %2312
      %2316 = vset.pattern.permute.xlu0 0
      %2317 = vperm.xlu0 %2316, %v2173
      %v2318 = vpop.permute.xlu0 %2317
      %2321 = vset.pattern.permute.xlu0 0
      %2322 = vperm.xlu0 %2321, %v2174
      %v2323 = vpop.permute.xlu0 %2322
      %2326 = vset.pattern.permute.xlu0 0
      %2327 = vperm.xlu0 %2326, %v2175
      %v2328 = vpop.permute.xlu0 %2327
      %2331 = vset.pattern.permute.xlu0 0
      %2332 = vperm.xlu0 %2331, %v2176
      %v2333 = vpop.permute.xlu0 %2332
      %2336 = vset.pattern.permute.xlu0 0
      %2337 = vperm.xlu0 %2336, %v2177
      %v2338 = vpop.permute.xlu0 %2337
      %2341 = vset.pattern.permute.xlu0 0
      %2342 = vperm.xlu0 %2341, %v2178
      %v2343 = vpop.permute.xlu0 %2342
      %2346 = vset.pattern.permute.xlu0 0
      %2347 = vperm.xlu0 %2346, %v2179
      %v2348 = vpop.permute.xlu0 %2347
      %2351 = vset.pattern.permute.xlu0 0
      %2352 = vperm.xlu0 %2351, %v2180
      %v2353 = vpop.permute.xlu0 %2352
      %2356 = vset.pattern.permute.xlu0 0
      %2357 = vperm.xlu0 %2356, %v2181
      %v2358 = vpop.permute.xlu0 %2357
      %2361 = vset.pattern.permute.xlu0 0
      %2362 = vperm.xlu0 %2361, %v2182
      %v2363 = vpop.permute.xlu0 %2362
      %2366 = vset.pattern.permute.xlu0 0
      %2367 = vperm.xlu0 %2366, %v2183
      %v2368 = vpop.permute.xlu0 %2367
      %2371 = vset.pattern.permute.xlu0 0
      %2372 = vperm.xlu0 %2371, %v2184
      %v2373 = vpop.permute.xlu0 %2372
      %2376 = vset.pattern.permute.xlu0 0
      %2377 = vperm.xlu0 %2376, %v2185
      %v2378 = vpop.permute.xlu0 %2377
      %2381 = vset.pattern.permute.xlu0 0
      %2382 = vperm.xlu0 %2381, %v2186
      %v2383 = vpop.permute.xlu0 %2382
      %2386 = vset.pattern.permute.xlu0 0
      %2387 = vperm.xlu0 %2386, %v2187
      %v2388 = vpop.permute.xlu0 %2387
      %2391 = vset.pattern.permute.xlu0 0
      %2392 = vperm.xlu0 %2391, %v2188
      %v2393 = vpop.permute.xlu0 %2392
      %2396 = vset.pattern.permute.xlu0 0
      %2397 = vperm.xlu0 %2396, %v2189
      %v2398 = vpop.permute.xlu0 %2397
      %2401 = vset.pattern.permute.xlu0 0
      %2402 = vperm.xlu0 %2401, %v2190
      %v2403 = vpop.permute.xlu0 %2402
      %2406 = vset.pattern.permute.xlu0 0
      %2407 = vperm.xlu0 %2406, %v2191
      %v2408 = vpop.permute.xlu0 %2407
      %2411 = vset.pattern.permute.xlu0 0
      %2412 = vperm.xlu0 %2411, %v2192
      %v2413 = vpop.permute.xlu0 %2412
      %2416 = vset.pattern.permute.xlu0 0
      %2417 = vperm.xlu0 %2416, %v2193
      %v2418 = vpop.permute.xlu0 %2417
      %2421 = vset.pattern.permute.xlu0 0
      %2422 = vperm.xlu0 %2421, %v2194
      %v2423 = vpop.permute.xlu0 %2422
      %2426 = vset.pattern.permute.xlu0 0
      %2427 = vperm.xlu0 %2426, %v2195
      %v2428 = vpop.permute.xlu0 %2427
      %2431 = vset.pattern.permute.xlu0 0
      %2432 = vperm.xlu0 %2431, %v2196
      %v2433 = vpop.permute.xlu0 %2432
      %2436 = vset.pattern.permute.xlu0 0
      %2437 = vperm.xlu0 %2436, %v2197
      %v2438 = vpop.permute.xlu0 %2437
      %2441 = vset.pattern.permute.xlu0 0
      %2442 = vperm.xlu0 %2441, %v2198
      %v2443 = vpop.permute.xlu0 %2442
      %2446 = vset.pattern.permute.xlu0 0
      %2447 = vperm.xlu0 %2446, %v2199
      %v2448 = vpop.permute.xlu0 %2447
      %2451 = vset.pattern.permute.xlu0 0
      %2452 = vperm.xlu0 %2451, %v2200
      %v2453 = vpop.permute.xlu0 %2452
      %2456 = vset.pattern.permute.xlu0 0
      %2457 = vperm.xlu0 %2456, %v2201
      %v2458 = vpop.permute.xlu0 %2457
      %2461 = vset.pattern.permute.xlu0 0
      %2462 = vperm.xlu0 %2461, %v2202
      %v2463 = vpop.permute.xlu0 %2462
      %2466 = vset.pattern.permute.xlu0 0
      %2467 = vperm.xlu0 %2466, %v2203
      %v2468 = vpop.permute.xlu0 %2467
      %2471 = vset.pattern.permute.xlu0 0
      %2472 = vperm.xlu0 %2471, %v2204
      %v2473 = vpop.permute.xlu0 %2472
      %2476 = vset.pattern.permute.xlu0 0
      %2477 = vperm.xlu0 %2476, %v2205
      %v2478 = vpop.permute.xlu0 %2477
      %2481 = vset.pattern.permute.xlu0 0
      %2482 = vperm.xlu0 %2481, %v2206
      %v2483 = vpop.permute.xlu0 %2482
      %2486 = vset.pattern.permute.xlu0 0
      %2487 = vperm.xlu0 %2486, %v2207
      %v2488 = vpop.permute.xlu0 %2487
      %2491 = vset.pattern.permute.xlu0 0
      %2492 = vperm.xlu0 %2491, %v2208
      %v2493 = vpop.permute.xlu0 %2492
      %2496 = vset.pattern.permute.xlu0 0
      %2497 = vperm.xlu0 %2496, %v2209
      %v2498 = vpop.permute.xlu0 %2497
      %2501 = vset.pattern.permute.xlu0 0
      %2502 = vperm.xlu0 %2501, %v2210
      %v2503 = vpop.permute.xlu0 %2502
      %2506 = vset.pattern.permute.xlu0 0
      %2507 = vperm.xlu0 %2506, %v2211
      %v2508 = vpop.permute.xlu0 %2507
      %2511 = vset.pattern.permute.xlu0 0
      %2512 = vperm.xlu0 %2511, %v2212
      %v2513 = vpop.permute.xlu0 %2512
      %2516 = vset.pattern.permute.xlu0 0
      %2517 = vperm.xlu0 %2516, %v2213
      %v2518 = vpop.permute.xlu0 %2517
      %2521 = vset.pattern.permute.xlu0 0
      %2522 = vperm.xlu0 %2521, %v2214
      %v2523 = vpop.permute.xlu0 %2522
      %v2525 = vmul.f32 %v2091, %v2218
      %v2526 = vmul.f32 %v2092, %v2223
      %v2527 = vmul.f32 %v2093, %v2228
      %v2528 = vmul.f32 %v2094, %v2233
      %v2529 = vmul.f32 %v2095, %v2238
      %v2530 = vmul.f32 %v2096, %v2243
      %v2531 = vmul.f32 %v2097, %v2248
      %v2532 = vmul.f32 %v2098, %v2253
      %v2533 = vmul.f32 %v2099, %v2258
      %v2534 = vmul.f32 %v2100, %v2263
      %v2535 = vmul.f32 %v2101, %v2268
      %v2536 = vmul.f32 %v2102, %v2273
      %v2537 = vmul.f32 %v2103, %v2278
      %v2538 = vmul.f32 %v2104, %v2283
      %v2539 = vmul.f32 %v2105, %v2288
      %v2540 = vmul.f32 %v2106, %v2293
      %v2541 = vmul.f32 %v2107, %v2298
      %v2542 = vmul.f32 %v2108, %v2303
      %v2543 = vmul.f32 %v2109, %v2308
      %v2544 = vmul.f32 %v2110, %v2313
      %v2545 = vmul.f32 %v2111, %v2318
      %v2546 = vmul.f32 %v2112, %v2323
      %v2547 = vmul.f32 %v2113, %v2328
      %v2548 = vmul.f32 %v2114, %v2333
      %v2549 = vmul.f32 %v2115, %v2338
      %v2550 = vmul.f32 %v2116, %v2343
      %v2551 = vmul.f32 %v2117, %v2348
      %v2552 = vmul.f32 %v2118, %v2353
      %v2553 = vmul.f32 %v2119, %v2358
      %v2554 = vmul.f32 %v2120, %v2363
      %v2555 = vmul.f32 %v2121, %v2368
      %v2556 = vmul.f32 %v2122, %v2373
      %v2557 = vmul.f32 %v2123, %v2378
      %v2558 = vmul.f32 %v2124, %v2383
      %v2559 = vmul.f32 %v2125, %v2388
      %v2560 = vmul.f32 %v2126, %v2393
      %v2561 = vmul.f32 %v2127, %v2398
      %v2562 = vmul.f32 %v2128, %v2403
      %v2563 = vmul.f32 %v2129, %v2408
      %v2564 = vmul.f32 %v2130, %v2413
      %v2565 = vmul.f32 %v2131, %v2418
      %v2566 = vmul.f32 %v2132, %v2423
      %v2567 = vmul.f32 %v2133, %v2428
      %v2568 = vmul.f32 %v2134, %v2433
      %v2569 = vmul.f32 %v2135, %v2438
      %v2570 = vmul.f32 %v2136, %v2443
      %v2571 = vmul.f32 %v2137, %v2448
      %v2572 = vmul.f32 %v2138, %v2453
      %v2573 = vmul.f32 %v2139, %v2458
      %v2574 = vmul.f32 %v2140, %v2463
      %v2575 = vmul.f32 %v2141, %v2468
      %v2576 = vmul.f32 %v2142, %v2473
      %v2577 = vmul.f32 %v2143, %v2478
      %v2578 = vmul.f32 %v2144, %v2483
      %v2579 = vmul.f32 %v2145, %v2488
      %v2580 = vmul.f32 %v2146, %v2493
      %v2581 = vmul.f32 %v2147, %v2498
      %v2582 = vmul.f32 %v2148, %v2503
      %v2583 = vmul.f32 %v2149, %v2508
      %v2584 = vmul.f32 %v2150, %v2513
      %v2585 = vmul.f32 %v2151, %v2518
      %v2586 = vmul.f32 %v2152, %v2523
      %vm2647 = vcmask 1046528
      %v2648 = vrot.slane %v2526, 1
      %v2649 = vrot.slane %v2527, 1
      %v2650 = vsel %vm2647, %v2648, %v2649
      %v2651 = vrot.slane %v2528, 1
      %v2652 = vsel %vm2647, %v2649, %v2651
      %v2653 = vrot.slane %v2529, 1
      %v2654 = vsel %vm2647, %v2651, %v2653
      %v2655 = vrot.slane %v2530, 1
      %v2656 = vsel %vm2647, %v2653, %v2655
      %v2657 = vrot.slane %v2531, 1
      %v2658 = vsel %vm2647, %v2655, %v2657
      %v2659 = vrot.slane %v2532, 1
      %v2660 = vsel %vm2647, %v2657, %v2659
      %v2661 = vrot.slane %v2533, 1
      %v2662 = vsel %vm2647, %v2659, %v2661
      %v2663 = vrot.slane %v2534, 1
      %v2664 = vsel %vm2647, %v2661, %v2663
      %v2665 = vrot.slane %v2535, 1
      %v2666 = vsel %vm2647, %v2663, %v2665
      %v2667 = vrot.slane %v2536, 1
      %v2668 = vsel %vm2647, %v2665, %v2667
      %v2669 = vrot.slane %v2537, 1
      %v2670 = vsel %vm2647, %v2667, %v2669
      %v2671 = vrot.slane %v2538, 1
      %v2672 = vsel %vm2647, %v2669, %v2671
      %v2673 = vrot.slane %v2539, 1
      %v2674 = vsel %vm2647, %v2671, %v2673
      %v2675 = vrot.slane %v2540, 1
      %v2676 = vsel %vm2647, %v2673, %v2675
      %v2677 = vrot.slane %v2541, 1
      %v2678 = vsel %vm2647, %v2675, %v2677
      %v2679 = vrot.slane %v2542, 1
      %v2680 = vsel %vm2647, %v2677, %v2679
      %v2681 = vrot.slane %v2543, 1
      %v2682 = vsel %vm2647, %v2679, %v2681
      %v2683 = vrot.slane %v2544, 1
      %v2684 = vsel %vm2647, %v2681, %v2683
      %v2685 = vrot.slane %v2545, 1
      %v2686 = vsel %vm2647, %v2683, %v2685
      %v2687 = vrot.slane %v2546, 1
      %v2688 = vsel %vm2647, %v2685, %v2687
      %v2689 = vrot.slane %v2547, 1
      %v2690 = vsel %vm2647, %v2687, %v2689
      %v2691 = vrot.slane %v2548, 1
      %v2692 = vsel %vm2647, %v2689, %v2691
      %v2693 = vrot.slane %v2549, 1
      %v2694 = vsel %vm2647, %v2691, %v2693
      %v2695 = vrot.slane %v2550, 1
      %v2696 = vsel %vm2647, %v2693, %v2695
      %v2697 = vrot.slane %v2551, 1
      %v2698 = vsel %vm2647, %v2695, %v2697
      %v2699 = vrot.slane %v2552, 1
      %v2700 = vsel %vm2647, %v2697, %v2699
      %v2701 = vrot.slane %v2553, 1
      %v2702 = vsel %vm2647, %v2699, %v2701
      %v2703 = vrot.slane %v2554, 1
      %v2704 = vsel %vm2647, %v2701, %v2703
      %v2705 = vrot.slane %v2555, 1
      %v2706 = vsel %vm2647, %v2703, %v2705
      %v2707 = vrot.slane %v2556, 1
      %v2708 = vsel %vm2647, %v2705, %v2707
      %v2709 = vrot.slane %v2557, 1
      %v2710 = vsel %vm2647, %v2707, %v2709
      %v2711 = vrot.slane %v2558, 1
      %v2712 = vsel %vm2647, %v2709, %v2711
      %v2713 = vrot.slane %v2559, 1
      %v2714 = vsel %vm2647, %v2711, %v2713
      %v2715 = vrot.slane %v2560, 1
      %v2716 = vsel %vm2647, %v2713, %v2715
      %v2717 = vrot.slane %v2561, 1
      %v2718 = vsel %vm2647, %v2715, %v2717
      %v2719 = vrot.slane %v2562, 1
      %v2720 = vsel %vm2647, %v2717, %v2719
      %v2721 = vrot.slane %v2563, 1
      %v2722 = vsel %vm2647, %v2719, %v2721
      %v2723 = vrot.slane %v2564, 1
      %v2724 = vsel %vm2647, %v2721, %v2723
      %v2725 = vrot.slane %v2565, 1
      %v2726 = vsel %vm2647, %v2723, %v2725
      %v2727 = vrot.slane %v2566, 1
      %v2728 = vsel %vm2647, %v2725, %v2727
      %v2729 = vrot.slane %v2567, 1
      %v2730 = vsel %vm2647, %v2727, %v2729
      %v2731 = vrot.slane %v2568, 1
      %v2732 = vsel %vm2647, %v2729, %v2731
      %v2733 = vrot.slane %v2569, 1
      %v2734 = vsel %vm2647, %v2731, %v2733
      %v2735 = vrot.slane %v2570, 1
      %v2736 = vsel %vm2647, %v2733, %v2735
      %v2737 = vrot.slane %v2571, 1
      %v2738 = vsel %vm2647, %v2735, %v2737
      %v2739 = vrot.slane %v2572, 1
      %v2740 = vsel %vm2647, %v2737, %v2739
      %v2741 = vrot.slane %v2573, 1
      %v2742 = vsel %vm2647, %v2739, %v2741
      %v2743 = vrot.slane %v2574, 1
      %v2744 = vsel %vm2647, %v2741, %v2743
      %v2745 = vrot.slane %v2575, 1
      %v2746 = vsel %vm2647, %v2743, %v2745
      %v2747 = vrot.slane %v2576, 1
      %v2748 = vsel %vm2647, %v2745, %v2747
      %v2749 = vrot.slane %v2577, 1
      %v2750 = vsel %vm2647, %v2747, %v2749
      %v2751 = vrot.slane %v2578, 1
      %v2752 = vsel %vm2647, %v2749, %v2751
      %v2753 = vrot.slane %v2579, 1
      %v2754 = vsel %vm2647, %v2751, %v2753
      %v2755 = vrot.slane %v2580, 1
      %v2756 = vsel %vm2647, %v2753, %v2755
      %v2757 = vrot.slane %v2581, 1
      %v2758 = vsel %vm2647, %v2755, %v2757
      %v2759 = vrot.slane %v2582, 1
      %v2760 = vsel %vm2647, %v2757, %v2759
      %v2761 = vrot.slane %v2583, 1
      %v2762 = vsel %vm2647, %v2759, %v2761
      %v2763 = vrot.slane %v2584, 1
      %v2764 = vsel %vm2647, %v2761, %v2763
      %v2765 = vrot.slane %v2585, 1
      %v2766 = vsel %vm2647, %v2763, %v2765
      %2767 = vrot.lane.b32.xlu0 %v2648, 8
      %v2768 = vpop.permute.xlu0 %2767
      %2769 = vrot.lane.b32.xlu0 %v2650, 8
      %v2770 = vpop.permute.xlu0 %2769
      %2771 = vrot.lane.b32.xlu0 %v2652, 8
      %v2772 = vpop.permute.xlu0 %2771
      %2773 = vrot.lane.b32.xlu0 %v2654, 8
      %v2774 = vpop.permute.xlu0 %2773
      %2775 = vrot.lane.b32.xlu0 %v2656, 8
      %v2776 = vpop.permute.xlu0 %2775
      %2777 = vrot.lane.b32.xlu0 %v2658, 8
      %v2778 = vpop.permute.xlu0 %2777
      %2779 = vrot.lane.b32.xlu0 %v2660, 8
      %v2780 = vpop.permute.xlu0 %2779
      %2781 = vrot.lane.b32.xlu0 %v2662, 8
      %v2782 = vpop.permute.xlu0 %2781
      %2783 = vrot.lane.b32.xlu0 %v2664, 8
      %v2784 = vpop.permute.xlu0 %2783
      %2785 = vrot.lane.b32.xlu0 %v2666, 8
      %v2786 = vpop.permute.xlu0 %2785
      %2787 = vrot.lane.b32.xlu0 %v2668, 8
      %v2788 = vpop.permute.xlu0 %2787
      %2789 = vrot.lane.b32.xlu0 %v2670, 8
      %v2790 = vpop.permute.xlu0 %2789
      %2791 = vrot.lane.b32.xlu0 %v2672, 8
      %v2792 = vpop.permute.xlu0 %2791
      %2793 = vrot.lane.b32.xlu0 %v2674, 8
      %v2794 = vpop.permute.xlu0 %2793
      %2795 = vrot.lane.b32.xlu0 %v2676, 8
      %v2796 = vpop.permute.xlu0 %2795
      %2797 = vrot.lane.b32.xlu0 %v2678, 8
      %v2798 = vpop.permute.xlu0 %2797
      %2799 = vrot.lane.b32.xlu0 %v2680, 8
      %v2800 = vpop.permute.xlu0 %2799
      %2801 = vrot.lane.b32.xlu0 %v2682, 8
      %v2802 = vpop.permute.xlu0 %2801
      %2803 = vrot.lane.b32.xlu0 %v2684, 8
      %v2804 = vpop.permute.xlu0 %2803
      %2805 = vrot.lane.b32.xlu0 %v2686, 8
      %v2806 = vpop.permute.xlu0 %2805
      %2807 = vrot.lane.b32.xlu0 %v2688, 8
      %v2808 = vpop.permute.xlu0 %2807
      %2809 = vrot.lane.b32.xlu0 %v2690, 8
      %v2810 = vpop.permute.xlu0 %2809
      %2811 = vrot.lane.b32.xlu0 %v2692, 8
      %v2812 = vpop.permute.xlu0 %2811
      %2813 = vrot.lane.b32.xlu0 %v2694, 8
      %v2814 = vpop.permute.xlu0 %2813
      %2815 = vrot.lane.b32.xlu0 %v2696, 8
      %v2816 = vpop.permute.xlu0 %2815
      %2817 = vrot.lane.b32.xlu0 %v2698, 8
      %v2818 = vpop.permute.xlu0 %2817
      %2819 = vrot.lane.b32.xlu0 %v2700, 8
      %v2820 = vpop.permute.xlu0 %2819
      %2821 = vrot.lane.b32.xlu0 %v2702, 8
      %v2822 = vpop.permute.xlu0 %2821
      %2823 = vrot.lane.b32.xlu0 %v2704, 8
      %v2824 = vpop.permute.xlu0 %2823
      %2825 = vrot.lane.b32.xlu0 %v2706, 8
      %v2826 = vpop.permute.xlu0 %2825
      %2827 = vrot.lane.b32.xlu0 %v2708, 8
      %v2828 = vpop.permute.xlu0 %2827
      %2829 = vrot.lane.b32.xlu0 %v2710, 8
      %v2830 = vpop.permute.xlu0 %2829
      %2831 = vrot.lane.b32.xlu0 %v2712, 8
      %v2832 = vpop.permute.xlu0 %2831
      %2833 = vrot.lane.b32.xlu0 %v2714, 8
      %v2834 = vpop.permute.xlu0 %2833
      %2835 = vrot.lane.b32.xlu0 %v2716, 8
      %v2836 = vpop.permute.xlu0 %2835
      %2837 = vrot.lane.b32.xlu0 %v2718, 8
      %v2838 = vpop.permute.xlu0 %2837
      %2839 = vrot.lane.b32.xlu0 %v2720, 8
      %v2840 = vpop.permute.xlu0 %2839
      %2841 = vrot.lane.b32.xlu0 %v2722, 8
      %v2842 = vpop.permute.xlu0 %2841
      %2843 = vrot.lane.b32.xlu0 %v2724, 8
      %v2844 = vpop.permute.xlu0 %2843
      %2845 = vrot.lane.b32.xlu0 %v2726, 8
      %v2846 = vpop.permute.xlu0 %2845
      %2847 = vrot.lane.b32.xlu0 %v2728, 8
      %v2848 = vpop.permute.xlu0 %2847
      %2849 = vrot.lane.b32.xlu0 %v2730, 8
      %v2850 = vpop.permute.xlu0 %2849
      %2851 = vrot.lane.b32.xlu0 %v2732, 8
      %v2852 = vpop.permute.xlu0 %2851
      %2853 = vrot.lane.b32.xlu0 %v2734, 8
      %v2854 = vpop.permute.xlu0 %2853
      %2855 = vrot.lane.b32.xlu0 %v2736, 8
      %v2856 = vpop.permute.xlu0 %2855
      %2857 = vrot.lane.b32.xlu0 %v2738, 8
      %v2858 = vpop.permute.xlu0 %2857
      %2859 = vrot.lane.b32.xlu0 %v2740, 8
      %v2860 = vpop.permute.xlu0 %2859
      %2861 = vrot.lane.b32.xlu0 %v2742, 8
      %v2862 = vpop.permute.xlu0 %2861
      %2863 = vrot.lane.b32.xlu0 %v2744, 8
      %v2864 = vpop.permute.xlu0 %2863
      %2865 = vrot.lane.b32.xlu0 %v2746, 8
      %v2866 = vpop.permute.xlu0 %2865
      %2867 = vrot.lane.b32.xlu0 %v2748, 8
      %v2868 = vpop.permute.xlu0 %2867
      %2869 = vrot.lane.b32.xlu0 %v2750, 8
      %v2870 = vpop.permute.xlu0 %2869
      %2871 = vrot.lane.b32.xlu0 %v2752, 8
      %v2872 = vpop.permute.xlu0 %2871
      %2873 = vrot.lane.b32.xlu0 %v2754, 8
      %v2874 = vpop.permute.xlu0 %2873
      %2875 = vrot.lane.b32.xlu0 %v2756, 8
      %v2876 = vpop.permute.xlu0 %2875
      %2877 = vrot.lane.b32.xlu0 %v2758, 8
      %v2878 = vpop.permute.xlu0 %2877
      %2879 = vrot.lane.b32.xlu0 %v2760, 8
      %v2880 = vpop.permute.xlu0 %2879
      %2881 = vrot.lane.b32.xlu0 %v2762, 8
      %v2882 = vpop.permute.xlu0 %2881
      %2883 = vrot.lane.b32.xlu0 %v2764, 8
      %v2884 = vpop.permute.xlu0 %2883
      %2885 = vrot.lane.b32.xlu0 %v2766, 8
      %v2886 = vpop.permute.xlu0 %2885
      %2887 = vrot.lane.b32.xlu0 %v2765, 8
      %v2888 = vpop.permute.xlu0 %2887
      %vm2951 = vcmask 1045504
      %v2952 = vrot.slane %v2526, 2
      %v2953 = vrot.slane %v2527, 2
      %v2954 = vsel %vm2951, %v2952, %v2953
      %v2955 = vrot.slane %v2528, 2
      %v2956 = vsel %vm2951, %v2953, %v2955
      %v2957 = vrot.slane %v2529, 2
      %v2958 = vsel %vm2951, %v2955, %v2957
      %v2959 = vrot.slane %v2530, 2
      %v2960 = vsel %vm2951, %v2957, %v2959
      %v2961 = vrot.slane %v2531, 2
      %v2962 = vsel %vm2951, %v2959, %v2961
      %v2963 = vrot.slane %v2532, 2
      %v2964 = vsel %vm2951, %v2961, %v2963
      %v2965 = vrot.slane %v2533, 2
      %v2966 = vsel %vm2951, %v2963, %v2965
      %v2967 = vrot.slane %v2534, 2
      %v2968 = vsel %vm2951, %v2965, %v2967
      %v2969 = vrot.slane %v2535, 2
      %v2970 = vsel %vm2951, %v2967, %v2969
      %v2971 = vrot.slane %v2536, 2
      %v2972 = vsel %vm2951, %v2969, %v2971
      %v2973 = vrot.slane %v2537, 2
      %v2974 = vsel %vm2951, %v2971, %v2973
      %v2975 = vrot.slane %v2538, 2
      %v2976 = vsel %vm2951, %v2973, %v2975
      %v2977 = vrot.slane %v2539, 2
      %v2978 = vsel %vm2951, %v2975, %v2977
      %v2979 = vrot.slane %v2540, 2
      %v2980 = vsel %vm2951, %v2977, %v2979
      %v2981 = vrot.slane %v2541, 2
      %v2982 = vsel %vm2951, %v2979, %v2981
      %v2983 = vrot.slane %v2542, 2
      %v2984 = vsel %vm2951, %v2981, %v2983
      %v2985 = vrot.slane %v2543, 2
      %v2986 = vsel %vm2951, %v2983, %v2985
      %v2987 = vrot.slane %v2544, 2
      %v2988 = vsel %vm2951, %v2985, %v2987
      %v2989 = vrot.slane %v2545, 2
      %v2990 = vsel %vm2951, %v2987, %v2989
      %v2991 = vrot.slane %v2546, 2
      %v2992 = vsel %vm2951, %v2989, %v2991
      %v2993 = vrot.slane %v2547, 2
      %v2994 = vsel %vm2951, %v2991, %v2993
      %v2995 = vrot.slane %v2548, 2
      %v2996 = vsel %vm2951, %v2993, %v2995
      %v2997 = vrot.slane %v2549, 2
      %v2998 = vsel %vm2951, %v2995, %v2997
      %v2999 = vrot.slane %v2550, 2
      %v3000 = vsel %vm2951, %v2997, %v2999
      %v3001 = vrot.slane %v2551, 2
      %v3002 = vsel %vm2951, %v2999, %v3001
      %v3003 = vrot.slane %v2552, 2
      %v3004 = vsel %vm2951, %v3001, %v3003
      %v3005 = vrot.slane %v2553, 2
      %v3006 = vsel %vm2951, %v3003, %v3005
      %v3007 = vrot.slane %v2554, 2
      %v3008 = vsel %vm2951, %v3005, %v3007
      %v3009 = vrot.slane %v2555, 2
      %v3010 = vsel %vm2951, %v3007, %v3009
      %v3011 = vrot.slane %v2556, 2
      %v3012 = vsel %vm2951, %v3009, %v3011
      %v3013 = vrot.slane %v2557, 2
      %v3014 = vsel %vm2951, %v3011, %v3013
      %v3015 = vrot.slane %v2558, 2
      %v3016 = vsel %vm2951, %v3013, %v3015
      %v3017 = vrot.slane %v2559, 2
      %v3018 = vsel %vm2951, %v3015, %v3017
      %v3019 = vrot.slane %v2560, 2
      %v3020 = vsel %vm2951, %v3017, %v3019
      %v3021 = vrot.slane %v2561, 2
      %v3022 = vsel %vm2951, %v3019, %v3021
      %v3023 = vrot.slane %v2562, 2
      %v3024 = vsel %vm2951, %v3021, %v3023
      %v3025 = vrot.slane %v2563, 2
      %v3026 = vsel %vm2951, %v3023, %v3025
      %v3027 = vrot.slane %v2564, 2
      %v3028 = vsel %vm2951, %v3025, %v3027
      %v3029 = vrot.slane %v2565, 2
      %v3030 = vsel %vm2951, %v3027, %v3029
      %v3031 = vrot.slane %v2566, 2
      %v3032 = vsel %vm2951, %v3029, %v3031
      %v3033 = vrot.slane %v2567, 2
      %v3034 = vsel %vm2951, %v3031, %v3033
      %v3035 = vrot.slane %v2568, 2
      %v3036 = vsel %vm2951, %v3033, %v3035
      %v3037 = vrot.slane %v2569, 2
      %v3038 = vsel %vm2951, %v3035, %v3037
      %v3039 = vrot.slane %v2570, 2
      %v3040 = vsel %vm2951, %v3037, %v3039
      %v3041 = vrot.slane %v2571, 2
      %v3042 = vsel %vm2951, %v3039, %v3041
      %v3043 = vrot.slane %v2572, 2
      %v3044 = vsel %vm2951, %v3041, %v3043
      %v3045 = vrot.slane %v2573, 2
      %v3046 = vsel %vm2951, %v3043, %v3045
      %v3047 = vrot.slane %v2574, 2
      %v3048 = vsel %vm2951, %v3045, %v3047
      %v3049 = vrot.slane %v2575, 2
      %v3050 = vsel %vm2951, %v3047, %v3049
      %v3051 = vrot.slane %v2576, 2
      %v3052 = vsel %vm2951, %v3049, %v3051
      %v3053 = vrot.slane %v2577, 2
      %v3054 = vsel %vm2951, %v3051, %v3053
      %v3055 = vrot.slane %v2578, 2
      %v3056 = vsel %vm2951, %v3053, %v3055
      %v3057 = vrot.slane %v2579, 2
      %v3058 = vsel %vm2951, %v3055, %v3057
      %v3059 = vrot.slane %v2580, 2
      %v3060 = vsel %vm2951, %v3057, %v3059
      %v3061 = vrot.slane %v2581, 2
      %v3062 = vsel %vm2951, %v3059, %v3061
      %v3063 = vrot.slane %v2582, 2
      %v3064 = vsel %vm2951, %v3061, %v3063
      %v3065 = vrot.slane %v2583, 2
      %v3066 = vsel %vm2951, %v3063, %v3065
      %v3067 = vrot.slane %v2584, 2
      %v3068 = vsel %vm2951, %v3065, %v3067
      %v3069 = vrot.slane %v2585, 2
      %v3070 = vsel %vm2951, %v3067, %v3069
      %v3071 = vrot.slane %v2586, 2
      %v3072 = vsel %vm2951, %v3069, %v3071
      %3073 = vrot.lane.b32.xlu0 %v2952, 16
      %v3074 = vpop.permute.xlu0 %3073
      %3075 = vrot.lane.b32.xlu0 %v2954, 16
      %v3076 = vpop.permute.xlu0 %3075
      %3077 = vrot.lane.b32.xlu0 %v2956, 16
      %v3078 = vpop.permute.xlu0 %3077
      %3079 = vrot.lane.b32.xlu0 %v2958, 16
      %v3080 = vpop.permute.xlu0 %3079
      %3081 = vrot.lane.b32.xlu0 %v2960, 16
      %v3082 = vpop.permute.xlu0 %3081
      %3083 = vrot.lane.b32.xlu0 %v2962, 16
      %v3084 = vpop.permute.xlu0 %3083
      %3085 = vrot.lane.b32.xlu0 %v2964, 16
      %v3086 = vpop.permute.xlu0 %3085
      %3087 = vrot.lane.b32.xlu0 %v2966, 16
      %v3088 = vpop.permute.xlu0 %3087
      %3089 = vrot.lane.b32.xlu0 %v2968, 16
      %v3090 = vpop.permute.xlu0 %3089
      %3091 = vrot.lane.b32.xlu0 %v2970, 16
      %v3092 = vpop.permute.xlu0 %3091
      %3093 = vrot.lane.b32.xlu0 %v2972, 16
      %v3094 = vpop.permute.xlu0 %3093
      %3095 = vrot.lane.b32.xlu0 %v2974, 16
      %v3096 = vpop.permute.xlu0 %3095
      %3097 = vrot.lane.b32.xlu0 %v2976, 16
      %v3098 = vpop.permute.xlu0 %3097
      %3099 = vrot.lane.b32.xlu0 %v2978, 16
      %v3100 = vpop.permute.xlu0 %3099
      %3101 = vrot.lane.b32.xlu0 %v2980, 16
      %v3102 = vpop.permute.xlu0 %3101
      %3103 = vrot.lane.b32.xlu0 %v2982, 16
      %v3104 = vpop.permute.xlu0 %3103
      %3105 = vrot.lane.b32.xlu0 %v2984, 16
      %v3106 = vpop.permute.xlu0 %3105
      %3107 = vrot.lane.b32.xlu0 %v2986, 16
      %v3108 = vpop.permute.xlu0 %3107
      %3109 = vrot.lane.b32.xlu0 %v2988, 16
      %v3110 = vpop.permute.xlu0 %3109
      %3111 = vrot.lane.b32.xlu0 %v2990, 16
      %v3112 = vpop.permute.xlu0 %3111
      %3113 = vrot.lane.b32.xlu0 %v2992, 16
      %v3114 = vpop.permute.xlu0 %3113
      %3115 = vrot.lane.b32.xlu0 %v2994, 16
      %v3116 = vpop.permute.xlu0 %3115
      %3117 = vrot.lane.b32.xlu0 %v2996, 16
      %v3118 = vpop.permute.xlu0 %3117
      %3119 = vrot.lane.b32.xlu0 %v2998, 16
      %v3120 = vpop.permute.xlu0 %3119
      %3121 = vrot.lane.b32.xlu0 %v3000, 16
      %v3122 = vpop.permute.xlu0 %3121
      %3123 = vrot.lane.b32.xlu0 %v3002, 16
      %v3124 = vpop.permute.xlu0 %3123
      %3125 = vrot.lane.b32.xlu0 %v3004, 16
      %v3126 = vpop.permute.xlu0 %3125
      %3127 = vrot.lane.b32.xlu0 %v3006, 16
      %v3128 = vpop.permute.xlu0 %3127
      %3129 = vrot.lane.b32.xlu0 %v3008, 16
      %v3130 = vpop.permute.xlu0 %3129
      %3131 = vrot.lane.b32.xlu0 %v3010, 16
      %v3132 = vpop.permute.xlu0 %3131
      %3133 = vrot.lane.b32.xlu0 %v3012, 16
      %v3134 = vpop.permute.xlu0 %3133
      %3135 = vrot.lane.b32.xlu0 %v3014, 16
      %v3136 = vpop.permute.xlu0 %3135
      %3137 = vrot.lane.b32.xlu0 %v3016, 16
      %v3138 = vpop.permute.xlu0 %3137
      %3139 = vrot.lane.b32.xlu0 %v3018, 16
      %v3140 = vpop.permute.xlu0 %3139
      %3141 = vrot.lane.b32.xlu0 %v3020, 16
      %v3142 = vpop.permute.xlu0 %3141
      %3143 = vrot.lane.b32.xlu0 %v3022, 16
      %v3144 = vpop.permute.xlu0 %3143
      %3145 = vrot.lane.b32.xlu0 %v3024, 16
      %v3146 = vpop.permute.xlu0 %3145
      %3147 = vrot.lane.b32.xlu0 %v3026, 16
      %v3148 = vpop.permute.xlu0 %3147
      %3149 = vrot.lane.b32.xlu0 %v3028, 16
      %v3150 = vpop.permute.xlu0 %3149
      %3151 = vrot.lane.b32.xlu0 %v3030, 16
      %v3152 = vpop.permute.xlu0 %3151
      %3153 = vrot.lane.b32.xlu0 %v3032, 16
      %v3154 = vpop.permute.xlu0 %3153
      %3155 = vrot.lane.b32.xlu0 %v3034, 16
      %v3156 = vpop.permute.xlu0 %3155
      %3157 = vrot.lane.b32.xlu0 %v3036, 16
      %v3158 = vpop.permute.xlu0 %3157
      %3159 = vrot.lane.b32.xlu0 %v3038, 16
      %v3160 = vpop.permute.xlu0 %3159
      %3161 = vrot.lane.b32.xlu0 %v3040, 16
      %v3162 = vpop.permute.xlu0 %3161
      %3163 = vrot.lane.b32.xlu0 %v3042, 16
      %v3164 = vpop.permute.xlu0 %3163
      %3165 = vrot.lane.b32.xlu0 %v3044, 16
      %v3166 = vpop.permute.xlu0 %3165
      %3167 = vrot.lane.b32.xlu0 %v3046, 16
      %v3168 = vpop.permute.xlu0 %3167
      %3169 = vrot.lane.b32.xlu0 %v3048, 16
      %v3170 = vpop.permute.xlu0 %3169
      %3171 = vrot.lane.b32.xlu0 %v3050, 16
      %v3172 = vpop.permute.xlu0 %3171
      %3173 = vrot.lane.b32.xlu0 %v3052, 16
      %v3174 = vpop.permute.xlu0 %3173
      %3175 = vrot.lane.b32.xlu0 %v3054, 16
      %v3176 = vpop.permute.xlu0 %3175
      %3177 = vrot.lane.b32.xlu0 %v3056, 16
      %v3178 = vpop.permute.xlu0 %3177
      %3179 = vrot.lane.b32.xlu0 %v3058, 16
      %v3180 = vpop.permute.xlu0 %3179
      %3181 = vrot.lane.b32.xlu0 %v3060, 16
      %v3182 = vpop.permute.xlu0 %3181
      %3183 = vrot.lane.b32.xlu0 %v3062, 16
      %v3184 = vpop.permute.xlu0 %3183
      %3185 = vrot.lane.b32.xlu0 %v3064, 16
      %v3186 = vpop.permute.xlu0 %3185
      %3187 = vrot.lane.b32.xlu0 %v3066, 16
      %v3188 = vpop.permute.xlu0 %3187
      %3189 = vrot.lane.b32.xlu0 %v3068, 16
      %v3190 = vpop.permute.xlu0 %3189
      %3191 = vrot.lane.b32.xlu0 %v3070, 16
      %v3192 = vpop.permute.xlu0 %3191
      %3193 = vrot.lane.b32.xlu0 %v3072, 16
      %v3194 = vpop.permute.xlu0 %3193
      %v3256 = vsel %vm1000, %v2525, %v2768
      %v3257 = vsel %vm1000, %v2526, %v2770
      %v3258 = vsel %vm1000, %v2527, %v2772
      %v3259 = vsel %vm1000, %v2528, %v2774
      %v3260 = vsel %vm1000, %v2529, %v2776
      %v3261 = vsel %vm1000, %v2530, %v2778
      %v3262 = vsel %vm1000, %v2531, %v2780
      %v3263 = vsel %vm1000, %v2532, %v2782
      %v3264 = vsel %vm1000, %v2533, %v2784
      %v3265 = vsel %vm1000, %v2534, %v2786
      %v3266 = vsel %vm1000, %v2535, %v2788
      %v3267 = vsel %vm1000, %v2536, %v2790
      %v3268 = vsel %vm1000, %v2537, %v2792
      %v3269 = vsel %vm1000, %v2538, %v2794
      %v3270 = vsel %vm1000, %v2539, %v2796
      %v3271 = vsel %vm1000, %v2540, %v2798
      %v3272 = vsel %vm1000, %v2541, %v2800
      %v3273 = vsel %vm1000, %v2542, %v2802
      %v3274 = vsel %vm1000, %v2543, %v2804
      %v3275 = vsel %vm1000, %v2544, %v2806
      %v3276 = vsel %vm1000, %v2545, %v2808
      %v3277 = vsel %vm1000, %v2546, %v2810
      %v3278 = vsel %vm1000, %v2547, %v2812
      %v3279 = vsel %vm1000, %v2548, %v2814
      %v3280 = vsel %vm1000, %v2549, %v2816
      %v3281 = vsel %vm1000, %v2550, %v2818
      %v3282 = vsel %vm1000, %v2551, %v2820
      %v3283 = vsel %vm1000, %v2552, %v2822
      %v3284 = vsel %vm1000, %v2553, %v2824
      %v3285 = vsel %vm1000, %v2554, %v2826
      %v3286 = vsel %vm1000, %v2555, %v2828
      %v3287 = vsel %vm1000, %v2556, %v2830
      %v3288 = vsel %vm1000, %v2557, %v2832
      %v3289 = vsel %vm1000, %v2558, %v2834
      %v3290 = vsel %vm1000, %v2559, %v2836
      %v3291 = vsel %vm1000, %v2560, %v2838
      %v3292 = vsel %vm1000, %v2561, %v2840
      %v3293 = vsel %vm1000, %v2562, %v2842
      %v3294 = vsel %vm1000, %v2563, %v2844
      %v3295 = vsel %vm1000, %v2564, %v2846
      %v3296 = vsel %vm1000, %v2565, %v2848
      %v3297 = vsel %vm1000, %v2566, %v2850
      %v3298 = vsel %vm1000, %v2567, %v2852
      %v3299 = vsel %vm1000, %v2568, %v2854
      %v3300 = vsel %vm1000, %v2569, %v2856
      %v3301 = vsel %vm1000, %v2570, %v2858
      %v3302 = vsel %vm1000, %v2571, %v2860
      %v3303 = vsel %vm1000, %v2572, %v2862
      %v3304 = vsel %vm1000, %v2573, %v2864
      %v3305 = vsel %vm1000, %v2574, %v2866
      %v3306 = vsel %vm1000, %v2575, %v2868
      %v3307 = vsel %vm1000, %v2576, %v2870
      %v3308 = vsel %vm1000, %v2577, %v2872
      %v3309 = vsel %vm1000, %v2578, %v2874
      %v3310 = vsel %vm1000, %v2579, %v2876
      %v3311 = vsel %vm1000, %v2580, %v2878
      %v3312 = vsel %vm1000, %v2581, %v2880
      %v3313 = vsel %vm1000, %v2582, %v2882
      %v3314 = vsel %vm1000, %v2583, %v2884
      %v3315 = vsel %vm1000, %v2584, %v2886
      %v3316 = vsel %vm1000, %v2585, %v2888
      %v3317 = vsel %vm1069, %v3256, %v3074
      %v3318 = vsel %vm1069, %v3257, %v3076
      %v3319 = vsel %vm1069, %v3258, %v3078
      %v3320 = vsel %vm1069, %v3259, %v3080
      %v3321 = vsel %vm1069, %v3260, %v3082
      %v3322 = vsel %vm1069, %v3261, %v3084
      %v3323 = vsel %vm1069, %v3262, %v3086
      %v3324 = vsel %vm1069, %v3263, %v3088
      %v3325 = vsel %vm1069, %v3264, %v3090
      %v3326 = vsel %vm1069, %v3265, %v3092
      %v3327 = vsel %vm1069, %v3266, %v3094
      %v3328 = vsel %vm1069, %v3267, %v3096
      %v3329 = vsel %vm1069, %v3268, %v3098
      %v3330 = vsel %vm1069, %v3269, %v3100
      %v3331 = vsel %vm1069, %v3270, %v3102
      %v3332 = vsel %vm1069, %v3271, %v3104
      %v3333 = vsel %vm1069, %v3272, %v3106
      %v3334 = vsel %vm1069, %v3273, %v3108
      %v3335 = vsel %vm1069, %v3274, %v3110
      %v3336 = vsel %vm1069, %v3275, %v3112
      %v3337 = vsel %vm1069, %v3276, %v3114
      %v3338 = vsel %vm1069, %v3277, %v3116
      %v3339 = vsel %vm1069, %v3278, %v3118
      %v3340 = vsel %vm1069, %v3279, %v3120
      %v3341 = vsel %vm1069, %v3280, %v3122
      %v3342 = vsel %vm1069, %v3281, %v3124
      %v3343 = vsel %vm1069, %v3282, %v3126
      %v3344 = vsel %vm1069, %v3283, %v3128
      %v3345 = vsel %vm1069, %v3284, %v3130
      %v3346 = vsel %vm1069, %v3285, %v3132
      %v3347 = vsel %vm1069, %v3286, %v3134
      %v3348 = vsel %vm1069, %v3287, %v3136
      %v3349 = vsel %vm1069, %v3288, %v3138
      %v3350 = vsel %vm1069, %v3289, %v3140
      %v3351 = vsel %vm1069, %v3290, %v3142
      %v3352 = vsel %vm1069, %v3291, %v3144
      %v3353 = vsel %vm1069, %v3292, %v3146
      %v3354 = vsel %vm1069, %v3293, %v3148
      %v3355 = vsel %vm1069, %v3294, %v3150
      %v3356 = vsel %vm1069, %v3295, %v3152
      %v3357 = vsel %vm1069, %v3296, %v3154
      %v3358 = vsel %vm1069, %v3297, %v3156
      %v3359 = vsel %vm1069, %v3298, %v3158
      %v3360 = vsel %vm1069, %v3299, %v3160
      %v3361 = vsel %vm1069, %v3300, %v3162
      %v3362 = vsel %vm1069, %v3301, %v3164
      %v3363 = vsel %vm1069, %v3302, %v3166
      %v3364 = vsel %vm1069, %v3303, %v3168
      %v3365 = vsel %vm1069, %v3304, %v3170
      %v3366 = vsel %vm1069, %v3305, %v3172
      %v3367 = vsel %vm1069, %v3306, %v3174
      %v3368 = vsel %vm1069, %v3307, %v3176
      %v3369 = vsel %vm1069, %v3308, %v3178
      %v3370 = vsel %vm1069, %v3309, %v3180
      %v3371 = vsel %vm1069, %v3310, %v3182
      %v3372 = vsel %vm1069, %v3311, %v3184
      %v3373 = vsel %vm1069, %v3312, %v3186
      %v3374 = vsel %vm1069, %v3313, %v3188
      %v3375 = vsel %vm1069, %v3314, %v3190
      %v3376 = vsel %vm1069, %v3315, %v3192
      %v3377 = vsel %vm1069, %v3316, %v3194
      %v3378 = vld [vmem:[%s4] sm:$0xff]
      %v3379 = vld [vmem:[%s4 + $0x8] sm:$0xff]
      %v3380 = vld [vmem:[%s4 + $0x10] sm:$0xff]
      %s3381 = scalar_lea.vmem %s4, 24
      %v3382 = vld [vmem:[%s3381] sm:$0xff]
      %v3383 = vld [vmem:[%s3381 + $0x8] sm:$0xff]
      %v3384 = vld [vmem:[%s3381 + $0x10] sm:$0xff]
      %vm3440 = vcmask 1040384
      %v3441 = vrot.slane %v3320, 7
      %v3442 = vrot.slane %v3321, 7
      %v3443 = vsel %vm3440, %v3441, %v3442
      %v3444 = vrot.slane %v3322, 7
      %v3445 = vsel %vm3440, %v3442, %v3444
      %v3446 = vrot.slane %v3323, 7
      %v3447 = vsel %vm3440, %v3444, %v3446
      %v3448 = vrot.slane %v3324, 7
      %v3449 = vsel %vm3440, %v3446, %v3448
      %v3450 = vrot.slane %v3325, 7
      %v3451 = vsel %vm3440, %v3448, %v3450
      %v3452 = vrot.slane %v3326, 7
      %v3453 = vsel %vm3440, %v3450, %v3452
      %v3454 = vrot.slane %v3327, 7
      %v3455 = vsel %vm3440, %v3452, %v3454
      %v3456 = vrot.slane %v3328, 7
      %v3457 = vsel %vm3440, %v3454, %v3456
      %v3458 = vrot.slane %v3329, 7
      %v3459 = vsel %vm3440, %v3456, %v3458
      %v3460 = vrot.slane %v3330, 7
      %v3461 = vsel %vm3440, %v3458, %v3460
      %v3462 = vrot.slane %v3331, 7
      %v3463 = vsel %vm3440, %v3460, %v3462
      %v3464 = vrot.slane %v3332, 7
      %v3465 = vsel %vm3440, %v3462, %v3464
      %v3466 = vrot.slane %v3333, 7
      %v3467 = vsel %vm3440, %v3464, %v3466
      %v3468 = vrot.slane %v3334, 7
      %v3469 = vsel %vm3440, %v3466, %v3468
      %v3470 = vrot.slane %v3335, 7
      %v3471 = vsel %vm3440, %v3468, %v3470
      %v3472 = vrot.slane %v3336, 7
      %v3473 = vsel %vm3440, %v3470, %v3472
      %v3474 = vrot.slane %v3337, 7
      %v3475 = vsel %vm3440, %v3472, %v3474
      %v3476 = vrot.slane %v3338, 7
      %v3477 = vsel %vm3440, %v3474, %v3476
      %v3478 = vrot.slane %v3339, 7
      %v3479 = vsel %vm3440, %v3476, %v3478
      %v3480 = vrot.slane %v3340, 7
      %v3481 = vsel %vm3440, %v3478, %v3480
      %v3482 = vrot.slane %v3341, 7
      %v3483 = vsel %vm3440, %v3480, %v3482
      %v3484 = vrot.slane %v3342, 7
      %v3485 = vsel %vm3440, %v3482, %v3484
      %v3486 = vrot.slane %v3343, 7
      %v3487 = vsel %vm3440, %v3484, %v3486
      %v3488 = vrot.slane %v3344, 7
      %v3489 = vsel %vm3440, %v3486, %v3488
      %v3490 = vrot.slane %v3345, 7
      %v3491 = vsel %vm3440, %v3488, %v3490
      %v3492 = vrot.slane %v3346, 7
      %v3493 = vsel %vm3440, %v3490, %v3492
      %v3494 = vrot.slane %v3347, 7
      %v3495 = vsel %vm3440, %v3492, %v3494
      %v3496 = vrot.slane %v3348, 7
      %v3497 = vsel %vm3440, %v3494, %v3496
      %v3498 = vrot.slane %v3349, 7
      %v3499 = vsel %vm3440, %v3496, %v3498
      %v3500 = vrot.slane %v3350, 7
      %v3501 = vsel %vm3440, %v3498, %v3500
      %v3502 = vrot.slane %v3351, 7
      %v3503 = vsel %vm3440, %v3500, %v3502
      %v3504 = vrot.slane %v3352, 7
      %v3505 = vsel %vm3440, %v3502, %v3504
      %v3506 = vrot.slane %v3353, 7
      %v3507 = vsel %vm3440, %v3504, %v3506
      %v3508 = vrot.slane %v3354, 7
      %v3509 = vsel %vm3440, %v3506, %v3508
      %v3510 = vrot.slane %v3355, 7
      %v3511 = vsel %vm3440, %v3508, %v3510
      %v3512 = vrot.slane %v3356, 7
      %v3513 = vsel %vm3440, %v3510, %v3512
      %v3514 = vrot.slane %v3357, 7
      %v3515 = vsel %vm3440, %v3512, %v3514
      %v3516 = vrot.slane %v3358, 7
      %v3517 = vsel %vm3440, %v3514, %v3516
      %v3518 = vrot.slane %v3359, 7
      %v3519 = vsel %vm3440, %v3516, %v3518
      %v3520 = vrot.slane %v3360, 7
      %v3521 = vsel %vm3440, %v3518, %v3520
      %v3522 = vrot.slane %v3361, 7
      %v3523 = vsel %vm3440, %v3520, %v3522
      %v3524 = vrot.slane %v3362, 7
      %v3525 = vsel %vm3440, %v3522, %v3524
      %v3526 = vrot.slane %v3363, 7
      %v3527 = vsel %vm3440, %v3524, %v3526
      %v3528 = vrot.slane %v3364, 7
      %v3529 = vsel %vm3440, %v3526, %v3528
      %v3530 = vrot.slane %v3365, 7
      %v3531 = vsel %vm3440, %v3528, %v3530
      %v3532 = vrot.slane %v3366, 7
      %v3533 = vsel %vm3440, %v3530, %v3532
      %v3534 = vrot.slane %v3367, 7
      %v3535 = vsel %vm3440, %v3532, %v3534
      %v3536 = vrot.slane %v3368, 7
      %v3537 = vsel %vm3440, %v3534, %v3536
      %v3538 = vrot.slane %v3369, 7
      %v3539 = vsel %vm3440, %v3536, %v3538
      %v3540 = vrot.slane %v3370, 7
      %v3541 = vsel %vm3440, %v3538, %v3540
      %v3542 = vrot.slane %v3371, 7
      %v3543 = vsel %vm3440, %v3540, %v3542
      %v3544 = vrot.slane %v3372, 7
      %v3545 = vsel %vm3440, %v3542, %v3544
      %v3546 = vrot.slane %v3373, 7
      %v3547 = vsel %vm3440, %v3544, %v3546
      %v3548 = vrot.slane %v3374, 7
      %v3549 = vsel %vm3440, %v3546, %v3548
      %v3550 = vsel %vm1145, %v3443, 0
      %v3552 = vsel %vm1145, %v3445, 0
      %v3554 = vsel %vm1145, %v3447, 0
      %v3556 = vsel %vm1145, %v3449, 0
      %v3558 = vsel %vm1145, %v3451, 0
      %v3560 = vsel %vm1145, %v3453, 0
      %v3562 = vsel %vm1145, %v3455, 0
      %v3564 = vsel %vm1145, %v3457, 0
      %v3566 = vsel %vm1145, %v3459, 0
      %v3568 = vsel %vm1145, %v3461, 0
      %v3570 = vsel %vm1145, %v3463, 0
      %v3572 = vsel %vm1145, %v3465, 0
      %v3574 = vsel %vm1145, %v3467, 0
      %v3576 = vsel %vm1145, %v3469, 0
      %v3578 = vsel %vm1145, %v3471, 0
      %v3580 = vsel %vm1145, %v3473, 0
      %v3582 = vsel %vm1145, %v3475, 0
      %v3584 = vsel %vm1145, %v3477, 0
      %v3586 = vsel %vm1145, %v3479, 0
      %v3588 = vsel %vm1145, %v3481, 0
      %v3590 = vsel %vm1145, %v3483, 0
      %v3592 = vsel %vm1145, %v3485, 0
      %v3594 = vsel %vm1145, %v3487, 0
      %v3596 = vsel %vm1145, %v3489, 0
      %v3598 = vsel %vm1145, %v3491, 0
      %v3600 = vsel %vm1145, %v3493, 0
      %v3602 = vsel %vm1145, %v3495, 0
      %v3604 = vsel %vm1145, %v3497, 0
      %v3606 = vsel %vm1145, %v3499, 0
      %v3608 = vsel %vm1145, %v3501, 0
      %v3610 = vsel %vm1145, %v3503, 0
      %v3612 = vsel %vm1145, %v3505, 0
      %v3614 = vsel %vm1145, %v3507, 0
      %v3616 = vsel %vm1145, %v3509, 0
      %v3618 = vsel %vm1145, %v3511, 0
      %v3620 = vsel %vm1145, %v3513, 0
      %v3622 = vsel %vm1145, %v3515, 0
      %v3624 = vsel %vm1145, %v3517, 0
      %v3626 = vsel %vm1145, %v3519, 0
      %v3628 = vsel %vm1145, %v3521, 0
      %v3630 = vsel %vm1145, %v3523, 0
      %v3632 = vsel %vm1145, %v3525, 0
      %v3634 = vsel %vm1145, %v3527, 0
      %v3636 = vsel %vm1145, %v3529, 0
      %v3638 = vsel %vm1145, %v3531, 0
      %v3640 = vsel %vm1145, %v3533, 0
      %v3642 = vsel %vm1145, %v3535, 0
      %v3644 = vsel %vm1145, %v3537, 0
      %v3646 = vsel %vm1145, %v3539, 0
      %v3648 = vsel %vm1145, %v3541, 0
      %v3650 = vsel %vm1145, %v3543, 0
      %v3652 = vsel %vm1145, %v3545, 0
      %v3654 = vsel %vm1145, %v3547, 0
      %v3656 = vsel %vm1145, %v3549, 0
      %3658 = vmatpush.msra.mxu0 0.0
      %3659 = vmatpush.msra.mxu0 0.0
      %3660 = vmatpush.msra.mxu0 0.0
      %3661 = vmatpush.msra.mxu0 0.0
      %3662 = vmatpush.msra.mxu0 0.0
      %3663 = vmatpush.msra.mxu0 0.0
      %3664 = vmatpush.msra.mxu0 0.0
      %3665 = vmatpush.msra.mxu0 0.0
      %3666 = vmatpush.msra.mxu0 0.0
      %3667 = vmatpush.msra.mxu0 0.0
      %3668 = vmatpush.msra.mxu0 0.0
      %3669 = vmatpush.msra.mxu0 0.0
      %3670 = vmatpush.msra.mxu0 0.0
      %3671 = vmatpush.msra.mxu0 %v3384
      %3672 = vmatpush.msra.mxu0 %v3383
      %3673 = vmatpush.msra.mxu0 %v3382
      %3674 = vmatmul.f32.gmra.mxu0 %v3550
      %v3675 = vpop.f32.mrf.mxu0
      %v3676 = vadd.f32 0.0, %v3675
      %3677 = vmatmul.f32.gmra.mxu0 %v3552
      %v3678 = vpop.f32.mrf.mxu0
      %v3679 = vadd.f32 0.0, %v3678
      %3680 = vmatmul.f32.gmra.mxu0 %v3554
      %v3681 = vpop.f32.mrf.mxu0
      %v3682 = vadd.f32 0.0, %v3681
      %3683 = vmatmul.f32.gmra.mxu0 %v3556
      %v3684 = vpop.f32.mrf.mxu0
      %v3685 = vadd.f32 0.0, %v3684
      %3686 = vmatmul.f32.gmra.mxu0 %v3558
      %v3687 = vpop.f32.mrf.mxu0
      %v3688 = vadd.f32 0.0, %v3687
      %3689 = vmatmul.f32.gmra.mxu0 %v3560
      %v3690 = vpop.f32.mrf.mxu0
      %v3691 = vadd.f32 0.0, %v3690
      %3692 = vmatmul.f32.gmra.mxu0 %v3562
      %v3693 = vpop.f32.mrf.mxu0
      %v3694 = vadd.f32 0.0, %v3693
      %3695 = vmatmul.f32.gmra.mxu0 %v3564
      %v3696 = vpop.f32.mrf.mxu0
      %v3697 = vadd.f32 0.0, %v3696
      %3698 = vmatmul.f32.gmra.mxu0 %v3566
      %v3699 = vpop.f32.mrf.mxu0
      %v3700 = vadd.f32 0.0, %v3699
      %3701 = vmatmul.f32.gmra.mxu0 %v3568
      %v3702 = vpop.f32.mrf.mxu0
      %v3703 = vadd.f32 0.0, %v3702
      %3704 = vmatmul.f32.gmra.mxu0 %v3570
      %v3705 = vpop.f32.mrf.mxu0
      %v3706 = vadd.f32 0.0, %v3705
      %3707 = vmatmul.f32.gmra.mxu0 %v3572
      %v3708 = vpop.f32.mrf.mxu0
      %v3709 = vadd.f32 0.0, %v3708
      %3710 = vmatmul.f32.gmra.mxu0 %v3574
      %v3711 = vpop.f32.mrf.mxu0
      %v3712 = vadd.f32 0.0, %v3711
      %3713 = vmatmul.f32.gmra.mxu0 %v3576
      %v3714 = vpop.f32.mrf.mxu0
      %v3715 = vadd.f32 0.0, %v3714
      %3716 = vmatmul.f32.gmra.mxu0 %v3578
      %v3717 = vpop.f32.mrf.mxu0
      %v3718 = vadd.f32 0.0, %v3717
      %3719 = vmatmul.f32.gmra.mxu0 %v3580
      %v3720 = vpop.f32.mrf.mxu0
      %v3721 = vadd.f32 0.0, %v3720
      %3722 = vmatmul.f32.gmra.mxu0 %v3582
      %v3723 = vpop.f32.mrf.mxu0
      %v3724 = vadd.f32 0.0, %v3723
      %3725 = vmatmul.f32.gmra.mxu0 %v3584
      %v3726 = vpop.f32.mrf.mxu0
      %v3727 = vadd.f32 0.0, %v3726
      %3728 = vmatmul.f32.gmra.mxu0 %v3586
      %v3729 = vpop.f32.mrf.mxu0
      %v3730 = vadd.f32 0.0, %v3729
      %3731 = vmatmul.f32.gmra.mxu0 %v3588
      %v3732 = vpop.f32.mrf.mxu0
      %v3733 = vadd.f32 0.0, %v3732
      %3734 = vmatmul.f32.gmra.mxu0 %v3590
      %v3735 = vpop.f32.mrf.mxu0
      %v3736 = vadd.f32 0.0, %v3735
      %3737 = vmatmul.f32.gmra.mxu0 %v3592
      %v3738 = vpop.f32.mrf.mxu0
      %v3739 = vadd.f32 0.0, %v3738
      %3740 = vmatmul.f32.gmra.mxu0 %v3594
      %v3741 = vpop.f32.mrf.mxu0
      %v3742 = vadd.f32 0.0, %v3741
      %3743 = vmatmul.f32.gmra.mxu0 %v3596
      %v3744 = vpop.f32.mrf.mxu0
      %v3745 = vadd.f32 0.0, %v3744
      %3746 = vmatmul.f32.gmra.mxu0 %v3598
      %v3747 = vpop.f32.mrf.mxu0
      %v3748 = vadd.f32 0.0, %v3747
      %3749 = vmatmul.f32.gmra.mxu0 %v3600
      %v3750 = vpop.f32.mrf.mxu0
      %v3751 = vadd.f32 0.0, %v3750
      %3752 = vmatmul.f32.gmra.mxu0 %v3602
      %v3753 = vpop.f32.mrf.mxu0
      %v3754 = vadd.f32 0.0, %v3753
      %3755 = vmatmul.f32.gmra.mxu0 %v3604
      %v3756 = vpop.f32.mrf.mxu0
      %v3757 = vadd.f32 0.0, %v3756
      %3758 = vmatmul.f32.gmra.mxu0 %v3606
      %v3759 = vpop.f32.mrf.mxu0
      %v3760 = vadd.f32 0.0, %v3759
      %3761 = vmatmul.f32.gmra.mxu0 %v3608
      %v3762 = vpop.f32.mrf.mxu0
      %v3763 = vadd.f32 0.0, %v3762
      %3764 = vmatmul.f32.gmra.mxu0 %v3610
      %v3765 = vpop.f32.mrf.mxu0
      %v3766 = vadd.f32 0.0, %v3765
      %3767 = vmatmul.f32.gmra.mxu0 %v3612
      %v3768 = vpop.f32.mrf.mxu0
      %v3769 = vadd.f32 0.0, %v3768
      %3770 = vmatmul.f32.gmra.mxu0 %v3614
      %v3771 = vpop.f32.mrf.mxu0
      %v3772 = vadd.f32 0.0, %v3771
      %3773 = vmatmul.f32.gmra.mxu0 %v3616
      %v3774 = vpop.f32.mrf.mxu0
      %v3775 = vadd.f32 0.0, %v3774
      %3776 = vmatmul.f32.gmra.mxu0 %v3618
      %v3777 = vpop.f32.mrf.mxu0
      %v3778 = vadd.f32 0.0, %v3777
      %3779 = vmatmul.f32.gmra.mxu0 %v3620
      %v3780 = vpop.f32.mrf.mxu0
      %v3781 = vadd.f32 0.0, %v3780
      %3782 = vmatmul.f32.gmra.mxu0 %v3622
      %v3783 = vpop.f32.mrf.mxu0
      %v3784 = vadd.f32 0.0, %v3783
      %3785 = vmatmul.f32.gmra.mxu0 %v3624
      %v3786 = vpop.f32.mrf.mxu0
      %v3787 = vadd.f32 0.0, %v3786
      %3788 = vmatmul.f32.gmra.mxu0 %v3626
      %v3789 = vpop.f32.mrf.mxu0
      %v3790 = vadd.f32 0.0, %v3789
      %3791 = vmatmul.f32.gmra.mxu0 %v3628
      %v3792 = vpop.f32.mrf.mxu0
      %v3793 = vadd.f32 0.0, %v3792
      %3794 = vmatmul.f32.gmra.mxu0 %v3630
      %v3795 = vpop.f32.mrf.mxu0
      %v3796 = vadd.f32 0.0, %v3795
      %3797 = vmatmul.f32.gmra.mxu0 %v3632
      %v3798 = vpop.f32.mrf.mxu0
      %v3799 = vadd.f32 0.0, %v3798
      %3800 = vmatmul.f32.gmra.mxu0 %v3634
      %v3801 = vpop.f32.mrf.mxu0
      %v3802 = vadd.f32 0.0, %v3801
      %3803 = vmatmul.f32.gmra.mxu0 %v3636
      %v3804 = vpop.f32.mrf.mxu0
      %v3805 = vadd.f32 0.0, %v3804
      %3806 = vmatmul.f32.gmra.mxu0 %v3638
      %v3807 = vpop.f32.mrf.mxu0
      %v3808 = vadd.f32 0.0, %v3807
      %3809 = vmatmul.f32.gmra.mxu0 %v3640
      %v3810 = vpop.f32.mrf.mxu0
      %v3811 = vadd.f32 0.0, %v3810
      %3812 = vmatmul.f32.gmra.mxu0 %v3642
      %v3813 = vpop.f32.mrf.mxu0
      %v3814 = vadd.f32 0.0, %v3813
      %3815 = vmatmul.f32.gmra.mxu0 %v3644
      %v3816 = vpop.f32.mrf.mxu0
      %v3817 = vadd.f32 0.0, %v3816
      %3818 = vmatmul.f32.gmra.mxu0 %v3646
      %v3819 = vpop.f32.mrf.mxu0
      %v3820 = vadd.f32 0.0, %v3819
      %3821 = vmatmul.f32.gmra.mxu0 %v3648
      %v3822 = vpop.f32.mrf.mxu0
      %v3823 = vadd.f32 0.0, %v3822
      %3824 = vmatmul.f32.gmra.mxu0 %v3650
      %v3825 = vpop.f32.mrf.mxu0
      %v3826 = vadd.f32 0.0, %v3825
      %3827 = vmatmul.f32.gmra.mxu0 %v3652
      %v3828 = vpop.f32.mrf.mxu0
      %v3829 = vadd.f32 0.0, %v3828
      %3830 = vmatmul.f32.gmra.mxu0 %v3654
      %v3831 = vpop.f32.mrf.mxu0
      %v3832 = vadd.f32 0.0, %v3831
      %3833 = vmatmul.f32.gmra.mxu0 %v3656
      %v3834 = vpop.f32.mrf.mxu0
      %v3835 = vadd.f32 0.0, %v3834
      %3836 = vdwg.mxu0
      %v3840 = vrot.slane %v3317, 7
      %v3841 = vrot.slane %v3318, 7
      %v3842 = vsel %vm3440, %v3840, %v3841
      %v3843 = vrot.slane %v3319, 7
      %v3844 = vsel %vm3440, %v3841, %v3843
      %v3845 = vsel %vm3440, %v3843, %v3441
      %v3846 = vsel %vm1145, %v3842, 0
      %v3848 = vsel %vm1145, %v3844, 0
      %v3850 = vsel %vm1145, %v3845, 0
      %3852 = vmatpush.msra.mxu0 0.0
      %3853 = vmatpush.msra.mxu0 0.0
      %3854 = vmatpush.msra.mxu0 0.0
      %3855 = vmatpush.msra.mxu0 0.0
      %3856 = vmatpush.msra.mxu0 0.0
      %3857 = vmatpush.msra.mxu0 0.0
      %3858 = vmatpush.msra.mxu0 0.0
      %3859 = vmatpush.msra.mxu0 0.0
      %3860 = vmatpush.msra.mxu0 0.0
      %3861 = vmatpush.msra.mxu0 0.0
      %3862 = vmatpush.msra.mxu0 0.0
      %3863 = vmatpush.msra.mxu0 0.0
      %3864 = vmatpush.msra.mxu0 0.0
      %3865 = vmatpush.msra.mxu0 %v3380
      %3866 = vmatpush.msra.mxu0 %v3379
      %3867 = vmatpush.msra.mxu0 %v3378
      %3868 = vmatmul.f32.gmra.mxu0 %v3846
      %v3869 = vpop.f32.mrf.mxu0
      %v3870 = vadd.f32 %v3676, %v3869
      %3871 = vmatmul.f32.gmra.mxu0 %v3848
      %v3872 = vpop.f32.mrf.mxu0
      %v3873 = vadd.f32 %v3679, %v3872
      %3874 = vmatmul.f32.gmra.mxu0 %v3850
      %v3875 = vpop.f32.mrf.mxu0
      %v3876 = vadd.f32 %v3682, %v3875
      %3877 = vmatmul.f32.gmra.mxu0 %v3550
      %v3878 = vpop.f32.mrf.mxu0
      %v3879 = vadd.f32 %v3685, %v3878
      %3880 = vmatmul.f32.gmra.mxu0 %v3552
      %v3881 = vpop.f32.mrf.mxu0
      %v3882 = vadd.f32 %v3688, %v3881
      %3883 = vmatmul.f32.gmra.mxu0 %v3554
      %v3884 = vpop.f32.mrf.mxu0
      %v3885 = vadd.f32 %v3691, %v3884
      %3886 = vmatmul.f32.gmra.mxu0 %v3556
      %v3887 = vpop.f32.mrf.mxu0
      %v3888 = vadd.f32 %v3694, %v3887
      %3889 = vmatmul.f32.gmra.mxu0 %v3558
      %v3890 = vpop.f32.mrf.mxu0
      %v3891 = vadd.f32 %v3697, %v3890
      %3892 = vmatmul.f32.gmra.mxu0 %v3560
      %v3893 = vpop.f32.mrf.mxu0
      %v3894 = vadd.f32 %v3700, %v3893
      %3895 = vmatmul.f32.gmra.mxu0 %v3562
      %v3896 = vpop.f32.mrf.mxu0
      %v3897 = vadd.f32 %v3703, %v3896
      %3898 = vmatmul.f32.gmra.mxu0 %v3564
      %v3899 = vpop.f32.mrf.mxu0
      %v3900 = vadd.f32 %v3706, %v3899
      %3901 = vmatmul.f32.gmra.mxu0 %v3566
      %v3902 = vpop.f32.mrf.mxu0
      %v3903 = vadd.f32 %v3709, %v3902
      %3904 = vmatmul.f32.gmra.mxu0 %v3568
      %v3905 = vpop.f32.mrf.mxu0
      %v3906 = vadd.f32 %v3712, %v3905
      %3907 = vmatmul.f32.gmra.mxu0 %v3570
      %v3908 = vpop.f32.mrf.mxu0
      %v3909 = vadd.f32 %v3715, %v3908
      %3910 = vmatmul.f32.gmra.mxu0 %v3572
      %v3911 = vpop.f32.mrf.mxu0
      %v3912 = vadd.f32 %v3718, %v3911
      %3913 = vmatmul.f32.gmra.mxu0 %v3574
      %v3914 = vpop.f32.mrf.mxu0
      %v3915 = vadd.f32 %v3721, %v3914
      %3916 = vmatmul.f32.gmra.mxu0 %v3576
      %v3917 = vpop.f32.mrf.mxu0
      %v3918 = vadd.f32 %v3724, %v3917
      %3919 = vmatmul.f32.gmra.mxu0 %v3578
      %v3920 = vpop.f32.mrf.mxu0
      %v3921 = vadd.f32 %v3727, %v3920
      %3922 = vmatmul.f32.gmra.mxu0 %v3580
      %v3923 = vpop.f32.mrf.mxu0
      %v3924 = vadd.f32 %v3730, %v3923
      %3925 = vmatmul.f32.gmra.mxu0 %v3582
      %v3926 = vpop.f32.mrf.mxu0
      %v3927 = vadd.f32 %v3733, %v3926
      %3928 = vmatmul.f32.gmra.mxu0 %v3584
      %v3929 = vpop.f32.mrf.mxu0
      %v3930 = vadd.f32 %v3736, %v3929
      %3931 = vmatmul.f32.gmra.mxu0 %v3586
      %v3932 = vpop.f32.mrf.mxu0
      %v3933 = vadd.f32 %v3739, %v3932
      %3934 = vmatmul.f32.gmra.mxu0 %v3588
      %v3935 = vpop.f32.mrf.mxu0
      %v3936 = vadd.f32 %v3742, %v3935
      %3937 = vmatmul.f32.gmra.mxu0 %v3590
      %v3938 = vpop.f32.mrf.mxu0
      %v3939 = vadd.f32 %v3745, %v3938
      %3940 = vmatmul.f32.gmra.mxu0 %v3592
      %v3941 = vpop.f32.mrf.mxu0
      %v3942 = vadd.f32 %v3748, %v3941
      %3943 = vmatmul.f32.gmra.mxu0 %v3594
      %v3944 = vpop.f32.mrf.mxu0
      %v3945 = vadd.f32 %v3751, %v3944
      %3946 = vmatmul.f32.gmra.mxu0 %v3596
      %v3947 = vpop.f32.mrf.mxu0
      %v3948 = vadd.f32 %v3754, %v3947
      %3949 = vmatmul.f32.gmra.mxu0 %v3598
      %v3950 = vpop.f32.mrf.mxu0
      %v3951 = vadd.f32 %v3757, %v3950
      %3952 = vmatmul.f32.gmra.mxu0 %v3600
      %v3953 = vpop.f32.mrf.mxu0
      %v3954 = vadd.f32 %v3760, %v3953
      %3955 = vmatmul.f32.gmra.mxu0 %v3602
      %v3956 = vpop.f32.mrf.mxu0
      %v3957 = vadd.f32 %v3763, %v3956
      %3958 = vmatmul.f32.gmra.mxu0 %v3604
      %v3959 = vpop.f32.mrf.mxu0
      %v3960 = vadd.f32 %v3766, %v3959
      %3961 = vmatmul.f32.gmra.mxu0 %v3606
      %v3962 = vpop.f32.mrf.mxu0
      %v3963 = vadd.f32 %v3769, %v3962
      %3964 = vmatmul.f32.gmra.mxu0 %v3608
      %v3965 = vpop.f32.mrf.mxu0
      %v3966 = vadd.f32 %v3772, %v3965
      %3967 = vmatmul.f32.gmra.mxu0 %v3610
      %v3968 = vpop.f32.mrf.mxu0
      %v3969 = vadd.f32 %v3775, %v3968
      %3970 = vmatmul.f32.gmra.mxu0 %v3612
      %v3971 = vpop.f32.mrf.mxu0
      %v3972 = vadd.f32 %v3778, %v3971
      %3973 = vmatmul.f32.gmra.mxu0 %v3614
      %v3974 = vpop.f32.mrf.mxu0
      %v3975 = vadd.f32 %v3781, %v3974
      %3976 = vmatmul.f32.gmra.mxu0 %v3616
      %v3977 = vpop.f32.mrf.mxu0
      %v3978 = vadd.f32 %v3784, %v3977
      %3979 = vmatmul.f32.gmra.mxu0 %v3618
      %v3980 = vpop.f32.mrf.mxu0
      %v3981 = vadd.f32 %v3787, %v3980
      %3982 = vmatmul.f32.gmra.mxu0 %v3620
      %v3983 = vpop.f32.mrf.mxu0
      %v3984 = vadd.f32 %v3790, %v3983
      %3985 = vmatmul.f32.gmra.mxu0 %v3622
      %v3986 = vpop.f32.mrf.mxu0
      %v3987 = vadd.f32 %v3793, %v3986
      %3988 = vmatmul.f32.gmra.mxu0 %v3624
      %v3989 = vpop.f32.mrf.mxu0
      %v3990 = vadd.f32 %v3796, %v3989
      %3991 = vmatmul.f32.gmra.mxu0 %v3626
      %v3992 = vpop.f32.mrf.mxu0
      %v3993 = vadd.f32 %v3799, %v3992
      %3994 = vmatmul.f32.gmra.mxu0 %v3628
      %v3995 = vpop.f32.mrf.mxu0
      %v3996 = vadd.f32 %v3802, %v3995
      %3997 = vmatmul.f32.gmra.mxu0 %v3630
      %v3998 = vpop.f32.mrf.mxu0
      %v3999 = vadd.f32 %v3805, %v3998
      %4000 = vmatmul.f32.gmra.mxu0 %v3632
      %v4001 = vpop.f32.mrf.mxu0
      %v4002 = vadd.f32 %v3808, %v4001
      %4003 = vmatmul.f32.gmra.mxu0 %v3634
      %v4004 = vpop.f32.mrf.mxu0
      %v4005 = vadd.f32 %v3811, %v4004
      %4006 = vmatmul.f32.gmra.mxu0 %v3636
      %v4007 = vpop.f32.mrf.mxu0
      %v4008 = vadd.f32 %v3814, %v4007
      %4009 = vmatmul.f32.gmra.mxu0 %v3638
      %v4010 = vpop.f32.mrf.mxu0
      %v4011 = vadd.f32 %v3817, %v4010
      %4012 = vmatmul.f32.gmra.mxu0 %v3640
      %v4013 = vpop.f32.mrf.mxu0
      %v4014 = vadd.f32 %v3820, %v4013
      %4015 = vmatmul.f32.gmra.mxu0 %v3642
      %v4016 = vpop.f32.mrf.mxu0
      %v4017 = vadd.f32 %v3823, %v4016
      %4018 = vmatmul.f32.gmra.mxu0 %v3644
      %v4019 = vpop.f32.mrf.mxu0
      %v4020 = vadd.f32 %v3826, %v4019
      %4021 = vmatmul.f32.gmra.mxu0 %v3646
      %v4022 = vpop.f32.mrf.mxu0
      %v4023 = vadd.f32 %v3829, %v4022
      %4024 = vmatmul.f32.gmra.mxu0 %v3648
      %v4025 = vpop.f32.mrf.mxu0
      %v4026 = vadd.f32 %v3832, %v4025
      %4027 = vmatmul.f32.gmra.mxu0 %v3650
      %v4028 = vpop.f32.mrf.mxu0
      %v4029 = vadd.f32 %v3835, %v4028
      %4030 = vdwg.mxu0
      %s4031 = scalar_lea.vmem %s4, 48
      %v4032 = vld [vmem:[%s4031] sm:$0xff]
      %v4033 = vld [vmem:[%s4031 + $0x8] sm:$0xff]
      %v4034 = vld [vmem:[%s4031 + $0x10] sm:$0xff]
      %v4038 = vrot.slane %v3375, 7
      %v4039 = vsel %vm3440, %v3548, %v4038
      %v4040 = vrot.slane %v3376, 7
      %v4041 = vsel %vm3440, %v4038, %v4040
      %v4042 = vrot.slane %v3377, 7
      %v4043 = vsel %vm3440, %v4040, %v4042
      %v4044 = vsel %vm1145, %v4039, 0
      %v4046 = vsel %vm1145, %v4041, 0
      %v4048 = vsel %vm1145, %v4043, 0
      %4050 = vmatpush.msra.mxu0 0.0
      %4051 = vmatpush.msra.mxu0 0.0
      %4052 = vmatpush.msra.mxu0 0.0
      %4053 = vmatpush.msra.mxu0 0.0
      %4054 = vmatpush.msra.mxu0 0.0
      %4055 = vmatpush.msra.mxu0 0.0
      %4056 = vmatpush.msra.mxu0 0.0
      %4057 = vmatpush.msra.mxu0 0.0
      %4058 = vmatpush.msra.mxu0 0.0
      %4059 = vmatpush.msra.mxu0 0.0
      %4060 = vmatpush.msra.mxu0 0.0
      %4061 = vmatpush.msra.mxu0 0.0
      %4062 = vmatpush.msra.mxu0 0.0
      %4063 = vmatpush.msra.mxu0 %v4034
      %4064 = vmatpush.msra.mxu0 %v4033
      %4065 = vmatpush.msra.mxu0 %v4032
      %4066 = vmatmul.f32.gmra.mxu0 %v3556
      %v4067 = vpop.f32.mrf.mxu0
      %v4068 = vadd.f32 0.0, %v4067
      %4069 = vmatmul.f32.gmra.mxu0 %v3558
      %v4070 = vpop.f32.mrf.mxu0
      %v4071 = vadd.f32 0.0, %v4070
      %4072 = vmatmul.f32.gmra.mxu0 %v3560
      %v4073 = vpop.f32.mrf.mxu0
      %v4074 = vadd.f32 0.0, %v4073
      %4075 = vmatmul.f32.gmra.mxu0 %v3562
      %v4076 = vpop.f32.mrf.mxu0
      %v4077 = vadd.f32 0.0, %v4076
      %4078 = vmatmul.f32.gmra.mxu0 %v3564
      %v4079 = vpop.f32.mrf.mxu0
      %v4080 = vadd.f32 0.0, %v4079
      %4081 = vmatmul.f32.gmra.mxu0 %v3566
      %v4082 = vpop.f32.mrf.mxu0
      %v4083 = vadd.f32 0.0, %v4082
      %4084 = vmatmul.f32.gmra.mxu0 %v3568
      %v4085 = vpop.f32.mrf.mxu0
      %v4086 = vadd.f32 0.0, %v4085
      %4087 = vmatmul.f32.gmra.mxu0 %v3570
      %v4088 = vpop.f32.mrf.mxu0
      %v4089 = vadd.f32 0.0, %v4088
      %4090 = vmatmul.f32.gmra.mxu0 %v3572
      %v4091 = vpop.f32.mrf.mxu0
      %v4092 = vadd.f32 0.0, %v4091
      %4093 = vmatmul.f32.gmra.mxu0 %v3574
      %v4094 = vpop.f32.mrf.mxu0
      %v4095 = vadd.f32 0.0, %v4094
      %4096 = vmatmul.f32.gmra.mxu0 %v3576
      %v4097 = vpop.f32.mrf.mxu0
      %v4098 = vadd.f32 0.0, %v4097
      %4099 = vmatmul.f32.gmra.mxu0 %v3578
      %v4100 = vpop.f32.mrf.mxu0
      %v4101 = vadd.f32 0.0, %v4100
      %4102 = vmatmul.f32.gmra.mxu0 %v3580
      %v4103 = vpop.f32.mrf.mxu0
      %v4104 = vadd.f32 0.0, %v4103
      %4105 = vmatmul.f32.gmra.mxu0 %v3582
      %v4106 = vpop.f32.mrf.mxu0
      %v4107 = vadd.f32 0.0, %v4106
      %4108 = vmatmul.f32.gmra.mxu0 %v3584
      %v4109 = vpop.f32.mrf.mxu0
      %v4110 = vadd.f32 0.0, %v4109
      %4111 = vmatmul.f32.gmra.mxu0 %v3586
      %v4112 = vpop.f32.mrf.mxu0
      %v4113 = vadd.f32 0.0, %v4112
      %4114 = vmatmul.f32.gmra.mxu0 %v3588
      %v4115 = vpop.f32.mrf.mxu0
      %v4116 = vadd.f32 0.0, %v4115
      %4117 = vmatmul.f32.gmra.mxu0 %v3590
      %v4118 = vpop.f32.mrf.mxu0
      %v4119 = vadd.f32 0.0, %v4118
      %4120 = vmatmul.f32.gmra.mxu0 %v3592
      %v4121 = vpop.f32.mrf.mxu0
      %v4122 = vadd.f32 0.0, %v4121
      %4123 = vmatmul.f32.gmra.mxu0 %v3594
      %v4124 = vpop.f32.mrf.mxu0
      %v4125 = vadd.f32 0.0, %v4124
      %4126 = vmatmul.f32.gmra.mxu0 %v3596
      %v4127 = vpop.f32.mrf.mxu0
      %v4128 = vadd.f32 0.0, %v4127
      %4129 = vmatmul.f32.gmra.mxu0 %v3598
      %v4130 = vpop.f32.mrf.mxu0
      %v4131 = vadd.f32 0.0, %v4130
      %4132 = vmatmul.f32.gmra.mxu0 %v3600
      %v4133 = vpop.f32.mrf.mxu0
      %v4134 = vadd.f32 0.0, %v4133
      %4135 = vmatmul.f32.gmra.mxu0 %v3602
      %v4136 = vpop.f32.mrf.mxu0
      %v4137 = vadd.f32 0.0, %v4136
      %4138 = vmatmul.f32.gmra.mxu0 %v3604
      %v4139 = vpop.f32.mrf.mxu0
      %v4140 = vadd.f32 0.0, %v4139
      %4141 = vmatmul.f32.gmra.mxu0 %v3606
      %v4142 = vpop.f32.mrf.mxu0
      %v4143 = vadd.f32 0.0, %v4142
      %4144 = vmatmul.f32.gmra.mxu0 %v3608
      %v4145 = vpop.f32.mrf.mxu0
      %v4146 = vadd.f32 0.0, %v4145
      %4147 = vmatmul.f32.gmra.mxu0 %v3610
      %v4148 = vpop.f32.mrf.mxu0
      %v4149 = vadd.f32 0.0, %v4148
      %4150 = vmatmul.f32.gmra.mxu0 %v3612
      %v4151 = vpop.f32.mrf.mxu0
      %v4152 = vadd.f32 0.0, %v4151
      %4153 = vmatmul.f32.gmra.mxu0 %v3614
      %v4154 = vpop.f32.mrf.mxu0
      %v4155 = vadd.f32 0.0, %v4154
      %4156 = vmatmul.f32.gmra.mxu0 %v3616
      %v4157 = vpop.f32.mrf.mxu0
      %v4158 = vadd.f32 0.0, %v4157
      %4159 = vmatmul.f32.gmra.mxu0 %v3618
      %v4160 = vpop.f32.mrf.mxu0
      %v4161 = vadd.f32 0.0, %v4160
      %4162 = vmatmul.f32.gmra.mxu0 %v3620
      %v4163 = vpop.f32.mrf.mxu0
      %v4164 = vadd.f32 0.0, %v4163
      %4165 = vmatmul.f32.gmra.mxu0 %v3622
      %v4166 = vpop.f32.mrf.mxu0
      %v4167 = vadd.f32 0.0, %v4166
      %4168 = vmatmul.f32.gmra.mxu0 %v3624
      %v4169 = vpop.f32.mrf.mxu0
      %v4170 = vadd.f32 0.0, %v4169
      %4171 = vmatmul.f32.gmra.mxu0 %v3626
      %v4172 = vpop.f32.mrf.mxu0
      %v4173 = vadd.f32 0.0, %v4172
      %4174 = vmatmul.f32.gmra.mxu0 %v3628
      %v4175 = vpop.f32.mrf.mxu0
      %v4176 = vadd.f32 0.0, %v4175
      %4177 = vmatmul.f32.gmra.mxu0 %v3630
      %v4178 = vpop.f32.mrf.mxu0
      %v4179 = vadd.f32 0.0, %v4178
      %4180 = vmatmul.f32.gmra.mxu0 %v3632
      %v4181 = vpop.f32.mrf.mxu0
      %v4182 = vadd.f32 0.0, %v4181
      %4183 = vmatmul.f32.gmra.mxu0 %v3634
      %v4184 = vpop.f32.mrf.mxu0
      %v4185 = vadd.f32 0.0, %v4184
      %4186 = vmatmul.f32.gmra.mxu0 %v3636
      %v4187 = vpop.f32.mrf.mxu0
      %v4188 = vadd.f32 0.0, %v4187
      %4189 = vmatmul.f32.gmra.mxu0 %v3638
      %v4190 = vpop.f32.mrf.mxu0
      %v4191 = vadd.f32 0.0, %v4190
      %4192 = vmatmul.f32.gmra.mxu0 %v3640
      %v4193 = vpop.f32.mrf.mxu0
      %v4194 = vadd.f32 0.0, %v4193
      %4195 = vmatmul.f32.gmra.mxu0 %v3642
      %v4196 = vpop.f32.mrf.mxu0
      %v4197 = vadd.f32 0.0, %v4196
      %4198 = vmatmul.f32.gmra.mxu0 %v3644
      %v4199 = vpop.f32.mrf.mxu0
      %v4200 = vadd.f32 0.0, %v4199
      %4201 = vmatmul.f32.gmra.mxu0 %v3646
      %v4202 = vpop.f32.mrf.mxu0
      %v4203 = vadd.f32 0.0, %v4202
      %4204 = vmatmul.f32.gmra.mxu0 %v3648
      %v4205 = vpop.f32.mrf.mxu0
      %v4206 = vadd.f32 0.0, %v4205
      %4207 = vmatmul.f32.gmra.mxu0 %v3650
      %v4208 = vpop.f32.mrf.mxu0
      %v4209 = vadd.f32 0.0, %v4208
      %4210 = vmatmul.f32.gmra.mxu0 %v3652
      %v4211 = vpop.f32.mrf.mxu0
      %v4212 = vadd.f32 0.0, %v4211
      %4213 = vmatmul.f32.gmra.mxu0 %v3654
      %v4214 = vpop.f32.mrf.mxu0
      %v4215 = vadd.f32 0.0, %v4214
      %4216 = vmatmul.f32.gmra.mxu0 %v3656
      %v4217 = vpop.f32.mrf.mxu0
      %v4218 = vadd.f32 0.0, %v4217
      %4219 = vmatmul.f32.gmra.mxu0 %v4044
      %v4220 = vpop.f32.mrf.mxu0
      %v4221 = vadd.f32 0.0, %v4220
      %4222 = vmatmul.f32.gmra.mxu0 %v4046
      %v4223 = vpop.f32.mrf.mxu0
      %v4224 = vadd.f32 0.0, %v4223
      %4225 = vmatmul.f32.gmra.mxu0 %v4048
      %v4226 = vpop.f32.mrf.mxu0
      %v4227 = vadd.f32 0.0, %v4226
      %4228 = vdwg.mxu0
      %v4229 = vadd.f32 %v3870, %v4068
      %v4230 = vadd.f32 %v3873, %v4071
      %v4231 = vadd.f32 %v3876, %v4074
      %v4232 = vadd.f32 %v3879, %v4077
      %v4233 = vadd.f32 %v3882, %v4080
      %v4234 = vadd.f32 %v3885, %v4083
      %v4235 = vadd.f32 %v3888, %v4086
      %v4236 = vadd.f32 %v3891, %v4089
      %v4237 = vadd.f32 %v3894, %v4092
      %v4238 = vadd.f32 %v3897, %v4095
      %v4239 = vadd.f32 %v3900, %v4098
      %v4240 = vadd.f32 %v3903, %v4101
      %v4241 = vadd.f32 %v3906, %v4104
      %v4242 = vadd.f32 %v3909, %v4107
      %v4243 = vadd.f32 %v3912, %v4110
      %v4244 = vadd.f32 %v3915, %v4113
      %v4245 = vadd.f32 %v3918, %v4116
      %v4246 = vadd.f32 %v3921, %v4119
      %v4247 = vadd.f32 %v3924, %v4122
      %v4248 = vadd.f32 %v3927, %v4125
      %v4249 = vadd.f32 %v3930, %v4128
      %v4250 = vadd.f32 %v3933, %v4131
      %v4251 = vadd.f32 %v3936, %v4134
      %v4252 = vadd.f32 %v3939, %v4137
      %v4253 = vadd.f32 %v3942, %v4140
      %v4254 = vadd.f32 %v3945, %v4143
      %v4255 = vadd.f32 %v3948, %v4146
      %v4256 = vadd.f32 %v3951, %v4149
      %v4257 = vadd.f32 %v3954, %v4152
      %v4258 = vadd.f32 %v3957, %v4155
      %v4259 = vadd.f32 %v3960, %v4158
      %v4260 = vadd.f32 %v3963, %v4161
      %v4261 = vadd.f32 %v3966, %v4164
      %v4262 = vadd.f32 %v3969, %v4167
      %v4263 = vadd.f32 %v3972, %v4170
      %v4264 = vadd.f32 %v3975, %v4173
      %v4265 = vadd.f32 %v3978, %v4176
      %v4266 = vadd.f32 %v3981, %v4179
      %v4267 = vadd.f32 %v3984, %v4182
      %v4268 = vadd.f32 %v3987, %v4185
      %v4269 = vadd.f32 %v3990, %v4188
      %v4270 = vadd.f32 %v3993, %v4191
      %v4271 = vadd.f32 %v3996, %v4194
      %v4272 = vadd.f32 %v3999, %v4197
      %v4273 = vadd.f32 %v4002, %v4200
      %v4274 = vadd.f32 %v4005, %v4203
      %v4275 = vadd.f32 %v4008, %v4206
      %v4276 = vadd.f32 %v4011, %v4209
      %v4277 = vadd.f32 %v4014, %v4212
      %v4278 = vadd.f32 %v4017, %v4215
      %v4279 = vadd.f32 %v4020, %v4218
      %v4280 = vadd.f32 %v4023, %v4221
      %v4281 = vadd.f32 %v4026, %v4224
      %v4282 = vadd.f32 %v4029, %v4227
      %v4283 = vld [vmem:[%s246 + $0x60] sm:$0xff]
      %v4284 = vld [vmem:[%s246 + $0x68] sm:$0xff]
      %v4285 = vld [vmem:[%s246 + $0x70] sm:$0xff]
      %v4286 = vld [vmem:[%s246 + $0x78] sm:$0xff]
      %v4287 = vld [vmem:[%s246 + $0x80] sm:$0xff]
      %v4288 = vld [vmem:[%s246 + $0x88] sm:$0xff]
      %v4289 = vld [vmem:[%s246 + $0x90] sm:$0xff]
      %v4290 = vld [vmem:[%s246 + $0x98] sm:$0xff]
      %v4291 = vld [vmem:[%s246 + $0xa0] sm:$0xff]
      %v4292 = vld [vmem:[%s246 + $0xa8] sm:$0xff]
      %v4293 = vld [vmem:[%s246 + $0xb0] sm:$0xff]
      %v4294 = vld [vmem:[%s246 + $0xb8] sm:$0xff]
      %v4295 = vld [vmem:[%s246 + $0xc0] sm:$0xff]
      %v4296 = vld [vmem:[%s246 + $0xc8] sm:$0xff]
      %v4297 = vld [vmem:[%s246 + $0xd0] sm:$0xff]
      %v4298 = vld [vmem:[%s246 + $0xd8] sm:$0xff]
      %v4299 = vld [vmem:[%s246 + $0xe0] sm:$0xff]
      %v4300 = vld [vmem:[%s246 + $0xe8] sm:$0xff]
      %v4301 = vld [vmem:[%s246 + $0xf0] sm:$0xff]
      %v4302 = vld [vmem:[%s246 + $0xf8] sm:$0xff]
      %v4303 = vld [vmem:[%s246 + $0x100] sm:$0xff]
      %v4304 = vld [vmem:[%s246 + $0x108] sm:$0xff]
      %v4305 = vld [vmem:[%s246 + $0x110] sm:$0xff]
      %v4306 = vld [vmem:[%s246 + $0x118] sm:$0xff]
      %v4307 = vld [vmem:[%s246 + $0x120] sm:$0xff]
      %v4308 = vld [vmem:[%s246 + $0x128] sm:$0xff]
      %v4309 = vld [vmem:[%s246 + $0x130] sm:$0xff]
      %v4310 = vld [vmem:[%s246 + $0x138] sm:$0xff]
      %v4311 = vld [vmem:[%s246 + $0x140] sm:$0xff]
      %v4312 = vld [vmem:[%s246 + $0x148] sm:$0xff]
      %v4313 = vld [vmem:[%s246 + $0x150] sm:$0xff]
      %v4314 = vld [vmem:[%s246 + $0x158] sm:$0xff]
      %v4315 = vld [vmem:[%s246 + $0x160] sm:$0xff]
      %v4316 = vld [vmem:[%s246 + $0x168] sm:$0xff]
      %v4317 = vld [vmem:[%s246 + $0x170] sm:$0xff]
      %v4318 = vld [vmem:[%s246 + $0x178] sm:$0xff]
      %v4319 = vld [vmem:[%s246 + $0x180] sm:$0xff]
      %v4320 = vld [vmem:[%s246 + $0x188] sm:$0xff]
      %v4321 = vld [vmem:[%s246 + $0x190] sm:$0xff]
      %v4322 = vld [vmem:[%s246 + $0x198] sm:$0xff]
      %v4323 = vld [vmem:[%s246 + $0x1a0] sm:$0xff]
      %v4324 = vld [vmem:[%s246 + $0x1a8] sm:$0xff]
      %v4325 = vld [vmem:[%s246 + $0x1b0] sm:$0xff]
      %v4326 = vld [vmem:[%s246 + $0x1b8] sm:$0xff]
      %v4327 = vld [vmem:[%s246 + $0x1c0] sm:$0xff]
      %v4328 = vld [vmem:[%s246 + $0x1c8] sm:$0xff]
      %v4329 = vld [vmem:[%s246 + $0x1d0] sm:$0xff]
      %v4330 = vld [vmem:[%s246 + $0x1d8] sm:$0xff]
      %v4331 = vld [vmem:[%s246 + $0x1e0] sm:$0xff]
      %v4332 = vld [vmem:[%s246 + $0x1e8] sm:$0xff]
      %v4333 = vld [vmem:[%s246 + $0x1f0] sm:$0xff]
      %v4334 = vld [vmem:[%s246 + $0x1f8] sm:$0xff]
      %v4335 = vld [vmem:[%s246 + $0x200] sm:$0xff]
      %v4336 = vld [vmem:[%s246 + $0x208] sm:$0xff]
      %v4337 = vld [vmem:[%s5] sm:$0x1]
      %v4339 = vperm.slane %v4337, 0
      %v4341 = vadd.f32 %v4229, %v4339
      %v4342 = vadd.f32 %v4230, %v4339
      %v4343 = vadd.f32 %v4231, %v4339
      %v4344 = vadd.f32 %v4232, %v4339
      %v4345 = vadd.f32 %v4233, %v4339
      %v4346 = vadd.f32 %v4234, %v4339
      %v4347 = vadd.f32 %v4235, %v4339
      %v4348 = vadd.f32 %v4236, %v4339
      %v4349 = vadd.f32 %v4237, %v4339
      %v4350 = vadd.f32 %v4238, %v4339
      %v4351 = vadd.f32 %v4239, %v4339
      %v4352 = vadd.f32 %v4240, %v4339
      %v4353 = vadd.f32 %v4241, %v4339
      %v4354 = vadd.f32 %v4242, %v4339
      %v4355 = vadd.f32 %v4243, %v4339
      %v4356 = vadd.f32 %v4244, %v4339
      %v4357 = vadd.f32 %v4245, %v4339
      %v4358 = vadd.f32 %v4246, %v4339
      %v4359 = vadd.f32 %v4247, %v4339
      %v4360 = vadd.f32 %v4248, %v4339
      %v4361 = vadd.f32 %v4249, %v4339
      %v4362 = vadd.f32 %v4250, %v4339
      %v4363 = vadd.f32 %v4251, %v4339
      %v4364 = vadd.f32 %v4252, %v4339
      %v4365 = vadd.f32 %v4253, %v4339
      %v4366 = vadd.f32 %v4254, %v4339
      %v4367 = vadd.f32 %v4255, %v4339
      %v4368 = vadd.f32 %v4256, %v4339
      %v4369 = vadd.f32 %v4257, %v4339
      %v4370 = vadd.f32 %v4258, %v4339
      %v4371 = vadd.f32 %v4259, %v4339
      %v4372 = vadd.f32 %v4260, %v4339
      %v4373 = vadd.f32 %v4261, %v4339
      %v4374 = vadd.f32 %v4262, %v4339
      %v4375 = vadd.f32 %v4263, %v4339
      %v4376 = vadd.f32 %v4264, %v4339
      %v4377 = vadd.f32 %v4265, %v4339
      %v4378 = vadd.f32 %v4266, %v4339
      %v4379 = vadd.f32 %v4267, %v4339
      %v4380 = vadd.f32 %v4268, %v4339
      %v4381 = vadd.f32 %v4269, %v4339
      %v4382 = vadd.f32 %v4270, %v4339
      %v4383 = vadd.f32 %v4271, %v4339
      %v4384 = vadd.f32 %v4272, %v4339
      %v4385 = vadd.f32 %v4273, %v4339
      %v4386 = vadd.f32 %v4274, %v4339
      %v4387 = vadd.f32 %v4275, %v4339
      %v4388 = vadd.f32 %v4276, %v4339
      %v4389 = vadd.f32 %v4277, %v4339
      %v4390 = vadd.f32 %v4278, %v4339
      %v4391 = vadd.f32 %v4279, %v4339
      %v4392 = vadd.f32 %v4280, %v4339
      %v4393 = vadd.f32 %v4281, %v4339
      %v4394 = vadd.f32 %v4282, %v4339
      %v4395 = vadd.f32 %v4341, %v4283
      %v4396 = vadd.f32 %v4342, %v4284
      %v4397 = vadd.f32 %v4343, %v4285
      %v4398 = vadd.f32 %v4344, %v4286
      %v4399 = vadd.f32 %v4345, %v4287
      %v4400 = vadd.f32 %v4346, %v4288
      %v4401 = vadd.f32 %v4347, %v4289
      %v4402 = vadd.f32 %v4348, %v4290
      %v4403 = vadd.f32 %v4349, %v4291
      %v4404 = vadd.f32 %v4350, %v4292
      %v4405 = vadd.f32 %v4351, %v4293
      %v4406 = vadd.f32 %v4352, %v4294
      %v4407 = vadd.f32 %v4353, %v4295
      %v4408 = vadd.f32 %v4354, %v4296
      %v4409 = vadd.f32 %v4355, %v4297
      %v4410 = vadd.f32 %v4356, %v4298
      %v4411 = vadd.f32 %v4357, %v4299
      %v4412 = vadd.f32 %v4358, %v4300
      %v4413 = vadd.f32 %v4359, %v4301
      %v4414 = vadd.f32 %v4360, %v4302
      %v4415 = vadd.f32 %v4361, %v4303
      %v4416 = vadd.f32 %v4362, %v4304
      %v4417 = vadd.f32 %v4363, %v4305
      %v4418 = vadd.f32 %v4364, %v4306
      %v4419 = vadd.f32 %v4365, %v4307
      %v4420 = vadd.f32 %v4366, %v4308
      %v4421 = vadd.f32 %v4367, %v4309
      %v4422 = vadd.f32 %v4368, %v4310
      %v4423 = vadd.f32 %v4369, %v4311
      %v4424 = vadd.f32 %v4370, %v4312
      %v4425 = vadd.f32 %v4371, %v4313
      %v4426 = vadd.f32 %v4372, %v4314
      %v4427 = vadd.f32 %v4373, %v4315
      %v4428 = vadd.f32 %v4374, %v4316
      %v4429 = vadd.f32 %v4375, %v4317
      %v4430 = vadd.f32 %v4376, %v4318
      %v4431 = vadd.f32 %v4377, %v4319
      %v4432 = vadd.f32 %v4378, %v4320
      %v4433 = vadd.f32 %v4379, %v4321
      %v4434 = vadd.f32 %v4380, %v4322
      %v4435 = vadd.f32 %v4381, %v4323
      %v4436 = vadd.f32 %v4382, %v4324
      %v4437 = vadd.f32 %v4383, %v4325
      %v4438 = vadd.f32 %v4384, %v4326
      %v4439 = vadd.f32 %v4385, %v4327
      %v4440 = vadd.f32 %v4386, %v4328
      %v4441 = vadd.f32 %v4387, %v4329
      %v4442 = vadd.f32 %v4388, %v4330
      %v4443 = vadd.f32 %v4389, %v4331
      %v4444 = vadd.f32 %v4390, %v4332
      %v4445 = vadd.f32 %v4391, %v4333
      %v4446 = vadd.f32 %v4392, %v4334
      %v4447 = vadd.f32 %v4393, %v4335
      %v4448 = vadd.f32 %v4394, %v4336
      %v4449 = vmax.f32 %v4395, 0.0
      %v4450 = vmax.f32 %v4396, 0.0
      %v4451 = vmax.f32 %v4397, 0.0
      %v4452 = vmax.f32 %v4398, 0.0
      %v4453 = vmax.f32 %v4399, 0.0
      %v4454 = vmax.f32 %v4400, 0.0
      %v4455 = vmax.f32 %v4401, 0.0
      %v4456 = vmax.f32 %v4402, 0.0
      %v4457 = vmax.f32 %v4403, 0.0
      %v4458 = vmax.f32 %v4404, 0.0
      %v4459 = vmax.f32 %v4405, 0.0
      %v4460 = vmax.f32 %v4406, 0.0
      %v4461 = vmax.f32 %v4407, 0.0
      %v4462 = vmax.f32 %v4408, 0.0
      %v4463 = vmax.f32 %v4409, 0.0
      %v4464 = vmax.f32 %v4410, 0.0
      %v4465 = vmax.f32 %v4411, 0.0
      %v4466 = vmax.f32 %v4412, 0.0
      %v4467 = vmax.f32 %v4413, 0.0
      %v4468 = vmax.f32 %v4414, 0.0
      %v4469 = vmax.f32 %v4415, 0.0
      %v4470 = vmax.f32 %v4416, 0.0
      %v4471 = vmax.f32 %v4417, 0.0
      %v4472 = vmax.f32 %v4418, 0.0
      %v4473 = vmax.f32 %v4419, 0.0
      %v4474 = vmax.f32 %v4420, 0.0
      %v4475 = vmax.f32 %v4421, 0.0
      %v4476 = vmax.f32 %v4422, 0.0
      %v4477 = vmax.f32 %v4423, 0.0
      %v4478 = vmax.f32 %v4424, 0.0
      %v4479 = vmax.f32 %v4425, 0.0
      %v4480 = vmax.f32 %v4426, 0.0
      %v4481 = vmax.f32 %v4427, 0.0
      %v4482 = vmax.f32 %v4428, 0.0
      %v4483 = vmax.f32 %v4429, 0.0
      %v4484 = vmax.f32 %v4430, 0.0
      %v4485 = vmax.f32 %v4431, 0.0
      %v4486 = vmax.f32 %v4432, 0.0
      %v4487 = vmax.f32 %v4433, 0.0
      %v4488 = vmax.f32 %v4434, 0.0
      %v4489 = vmax.f32 %v4435, 0.0
      %v4490 = vmax.f32 %v4436, 0.0
      %v4491 = vmax.f32 %v4437, 0.0
      %v4492 = vmax.f32 %v4438, 0.0
      %v4493 = vmax.f32 %v4439, 0.0
      %v4494 = vmax.f32 %v4440, 0.0
      %v4495 = vmax.f32 %v4441, 0.0
      %v4496 = vmax.f32 %v4442, 0.0
      %v4497 = vmax.f32 %v4443, 0.0
      %v4498 = vmax.f32 %v4444, 0.0
      %v4499 = vmax.f32 %v4445, 0.0
      %v4500 = vmax.f32 %v4446, 0.0
      %v4501 = vmax.f32 %v4447, 0.0
      %v4502 = vmax.f32 %v4448, 0.0
      %4503 = vst.msk [vmem:[%s251] sm:$0xff] %vm1000, %v4449
      %4504 = vst.msk [vmem:[%s251 + $0x8] sm:$0xff] %vm1000, %v4450
      %4505 = vst.msk [vmem:[%s251 + $0x10] sm:$0xff] %vm1000, %v4451
      %4506 = vst.msk [vmem:[%s251 + $0x18] sm:$0xff] %vm1000, %v4452
      %4507 = vst.msk [vmem:[%s251 + $0x20] sm:$0xff] %vm1000, %v4453
      %4508 = vst.msk [vmem:[%s251 + $0x28] sm:$0xff] %vm1000, %v4454
      %4509 = vst.msk [vmem:[%s251 + $0x30] sm:$0xff] %vm1000, %v4455
      %4510 = vst.msk [vmem:[%s251 + $0x38] sm:$0xff] %vm1000, %v4456
      %4511 = vst.msk [vmem:[%s251 + $0x40] sm:$0xff] %vm1000, %v4457
      %4512 = vst.msk [vmem:[%s251 + $0x48] sm:$0xff] %vm1000, %v4458
      %4513 = vst.msk [vmem:[%s251 + $0x50] sm:$0xff] %vm1000, %v4459
      %4514 = vst.msk [vmem:[%s251 + $0x58] sm:$0xff] %vm1000, %v4460
      %4515 = vst.msk [vmem:[%s251 + $0x60] sm:$0xff] %vm1000, %v4461
      %4516 = vst.msk [vmem:[%s251 + $0x68] sm:$0xff] %vm1000, %v4462
      %4517 = vst.msk [vmem:[%s251 + $0x70] sm:$0xff] %vm1000, %v4463
      %4518 = vst.msk [vmem:[%s251 + $0x78] sm:$0xff] %vm1000, %v4464
      %4519 = vst.msk [vmem:[%s251 + $0x80] sm:$0xff] %vm1000, %v4465
      %4520 = vst.msk [vmem:[%s251 + $0x88] sm:$0xff] %vm1000, %v4466
      %4521 = vst.msk [vmem:[%s251 + $0x90] sm:$0xff] %vm1000, %v4467
      %4522 = vst.msk [vmem:[%s251 + $0x98] sm:$0xff] %vm1000, %v4468
      %4523 = vst.msk [vmem:[%s251 + $0xa0] sm:$0xff] %vm1000, %v4469
      %4524 = vst.msk [vmem:[%s251 + $0xa8] sm:$0xff] %vm1000, %v4470
      %4525 = vst.msk [vmem:[%s251 + $0xb0] sm:$0xff] %vm1000, %v4471
      %4526 = vst.msk [vmem:[%s251 + $0xb8] sm:$0xff] %vm1000, %v4472
      %4527 = vst.msk [vmem:[%s251 + $0xc0] sm:$0xff] %vm1000, %v4473
      %4528 = vst.msk [vmem:[%s251 + $0xc8] sm:$0xff] %vm1000, %v4474
      %4529 = vst.msk [vmem:[%s251 + $0xd0] sm:$0xff] %vm1000, %v4475
      %4530 = vst.msk [vmem:[%s251 + $0xd8] sm:$0xff] %vm1000, %v4476
      %4531 = vst.msk [vmem:[%s251 + $0xe0] sm:$0xff] %vm1000, %v4477
      %4532 = vst.msk [vmem:[%s251 + $0xe8] sm:$0xff] %vm1000, %v4478
      %4533 = vst.msk [vmem:[%s251 + $0xf0] sm:$0xff] %vm1000, %v4479
      %4534 = vst.msk [vmem:[%s251 + $0xf8] sm:$0xff] %vm1000, %v4480
      %4535 = vst.msk [vmem:[%s251 + $0x100] sm:$0xff] %vm1000, %v4481
      %4536 = vst.msk [vmem:[%s251 + $0x108] sm:$0xff] %vm1000, %v4482
      %4537 = vst.msk [vmem:[%s251 + $0x110] sm:$0xff] %vm1000, %v4483
      %4538 = vst.msk [vmem:[%s251 + $0x118] sm:$0xff] %vm1000, %v4484
      %4539 = vst.msk [vmem:[%s251 + $0x120] sm:$0xff] %vm1000, %v4485
      %4540 = vst.msk [vmem:[%s251 + $0x128] sm:$0xff] %vm1000, %v4486
      %4541 = vst.msk [vmem:[%s251 + $0x130] sm:$0xff] %vm1000, %v4487
      %4542 = vst.msk [vmem:[%s251 + $0x138] sm:$0xff] %vm1000, %v4488
      %4543 = vst.msk [vmem:[%s251 + $0x140] sm:$0xff] %vm1000, %v4489
      %4544 = vst.msk [vmem:[%s251 + $0x148] sm:$0xff] %vm1000, %v4490
      %4545 = vst.msk [vmem:[%s251 + $0x150] sm:$0xff] %vm1000, %v4491
      %4546 = vst.msk [vmem:[%s251 + $0x158] sm:$0xff] %vm1000, %v4492
      %4547 = vst.msk [vmem:[%s251 + $0x160] sm:$0xff] %vm1000, %v4493
      %4548 = vst.msk [vmem:[%s251 + $0x168] sm:$0xff] %vm1000, %v4494
      %4549 = vst.msk [vmem:[%s251 + $0x170] sm:$0xff] %vm1000, %v4495
      %4550 = vst.msk [vmem:[%s251 + $0x178] sm:$0xff] %vm1000, %v4496
      %4551 = vst.msk [vmem:[%s251 + $0x180] sm:$0xff] %vm1000, %v4497
      %4552 = vst.msk [vmem:[%s251 + $0x188] sm:$0xff] %vm1000, %v4498
      %4553 = vst.msk [vmem:[%s251 + $0x190] sm:$0xff] %vm1000, %v4499
      %4554 = vst.msk [vmem:[%s251 + $0x198] sm:$0xff] %vm1000, %v4500
      %4555 = vst.msk [vmem:[%s251 + $0x1a0] sm:$0xff] %vm1000, %v4501
      %4556 = vst.msk [vmem:[%s251 + $0x1a8] sm:$0xff] %vm1000, %v4502
      %p4557 = scmp.lt.s32.totalorder %s17, 1
      %s4558 = scalar_select %p4557, %s17, 1
      %s4559 = smul.addr %s4558, 54
      %s4560 = smul.addr %s4559, 8
      %s4561 = scalar_lea.vmem %s6, %s4560
      // Predicated region
      $region45: #{tpu_custom_call.1} parent=43 // pred_check
        %p4562 = pneg %p166
      $region46: #{tpu_custom_call.1} parent=43 // pred_check_branch
        %4564 = sbr.rel (%p4562) target = $region48
      $region47: #{tpu_custom_call.1} parent=43 // pred_region
        _
      $region48: #{tpu_custom_call.1} parent=43 // pred_fallthru
        _
    $region44: #{tpu_custom_call.1} parent=5 // pred_fallthru
      _
    %p4565 = scmp.le.s32.totalorder 2, %s12
    // Predicated region
    $region49: #{tpu_custom_call.1} parent=5 // pred_check
      %p4566 = pneg %p4565
    $region50: #{tpu_custom_call.1} parent=5 // pred_check_branch
      %4568 = sbr.rel (%p4566) target = $region52
    $region51: #{tpu_custom_call.1} parent=5 // pred_region
      %s4569 = ssub.s32 %s12, 2
      // Predicated region
      $region53: #{tpu_custom_call.1} parent=51 // pred_check
        %p4570 = pneg %p172
      $region54: #{tpu_custom_call.1} parent=51 // pred_check_branch
        %4572 = sbr.rel (%p4570) target = $region56
      $region55: #{tpu_custom_call.1} parent=51 // pred_region
        %p4573 = scmp.lt.s32.totalorder %s18, 1
        %s4574 = scalar_select %p4573, %s18, 1
        %s4575 = smul.addr %s4574, 54
        %s4576 = smul.addr %s4575, 8
        %s4577 = scalar_lea.vmem %s6, %s4576
      $region56: #{tpu_custom_call.1} parent=51 // pred_fallthru
        _
    $region52: #{tpu_custom_call.1} parent=5 // pred_fallthru
      _
  $region6: #{tpu_custom_call.1} parent=0 // loop_footer
    %s16 = sadd.s32 1, %s12
  $region7: #{tpu_custom_call.1} parent=0 // loop_footer_branch
    %11 = sbr.rel target = $region3
  $region8: #{tpu_custom_call.1} parent=0 // loop_exit
    _

</llo_original>
